<compile_context>
chip_gen: v5e
topology: v5e:2x2
jax: 0.10.0
libtpu: 0.0.40
codegen_flags: <defaults>
</compile_context>

<pallas_src>
import functools

import jax
import jax.numpy as jnp
from jax.experimental import pallas as pl
from jax.experimental.pallas import tpu as pltpu

BN_EPS = 1e-5
LANES = 128                      # lane-dense channel padding
VMEM_LIMIT = 64 * 1024 * 1024    # <= physical VMEM on v5e/v6e (128 MiB) and v7x (64 MiB)
EPILOGUE_ROWS = 2048             # mem-bound epilogue row-tile target
GEMM_ROWS = 512                  # fallback im2col GEMM row-tile target


# ------------------------------ helpers ----------------------------------- #
def _round_up(x, m):
    return ((x + m - 1) // m) * m


def _pad_vec(v, n):
    return jnp.pad(v, (0, n - v.shape[0]))


def _pick_tile(m, target):
    """Largest divisor of m that is <= target, preferring multiples of 16
    (bf16 sublane packing), then 8; falls back to m itself."""
    for step in (16, 8):
        best, d, lim = 0, step, min(m, target)
        while d <= lim:
            if m % d == 0:
                best = d
            d += step
        if best:
            return best
    return m


# ----------------------------- Pallas kernels ------------------------------ #
def _make_conv3x3_s1_kernel(ho, wo, cin_p, cout_p):
    """Fused 3x3/stride-1 conv (tap decomposition, bf16 MXU, f32 acc) + packed
    per-image BN partial stats. One grid step == one image."""
    def kernel(x_ref, w_ref, y_ref, st_ref):
        # x_ref: (ho+2, wo+2, cin_p) bf16 (zero spatial halo, zero channel pad)
        # w_ref: (9*cin_p, cout_p) bf16, tap-major
        acc = jnp.zeros((ho * wo, cout_p), jnp.float32)
        for kh in range(3):
            for kw in range(3):
                t = kh * 3 + kw
                win = x_ref[kh:kh + ho, kw:kw + wo, :].reshape(ho * wo, cin_p)
                acc = acc + jnp.dot(win, w_ref[t * cin_p:(t + 1) * cin_p, :],
                                    preferred_element_type=jnp.float32)
        y_ref[...] = acc.astype(y_ref.dtype)
        # packed BN partial stats from the f32 accumulator (row0 sum, row1 sumsq)
        s = jnp.sum(acc, axis=0, keepdims=True)
        q = jnp.sum(acc * acc, axis=0, keepdims=True)
        rows = jax.lax.broadcasted_iota(jnp.int32, (8, cout_p), 0)
        st_ref[...] = jnp.where(rows == 0, s, jnp.where(rows == 1, q, 0.0))
    return kernel


def _make_gemm_stats_kernel(write_y, cout_p):
    """Generic bf16 GEMM tile (f32 acc) + packed BN partial stats.
    write_y=False -> stats-only pass (used for the shortcut 1x1 conv)."""
    def kernel(p_ref, w_ref, *out_refs):
        acc = jnp.dot(p_ref[...], w_ref[...], preferred_element_type=jnp.float32)
        if write_y:
            out_refs[0][...] = acc.astype(out_refs[0].dtype)
        st_ref = out_refs[-1]
        s = jnp.sum(acc, axis=0, keepdims=True)
        q = jnp.sum(acc * acc, axis=0, keepdims=True)
        rows = jax.lax.broadcasted_iota(jnp.int32, (8, cout_p), 0)
        st_ref[...] = jnp.where(rows == 0, s, jnp.where(rows == 1, q, 0.0))
    return kernel


def _make_epilogue_kernel(mode):
    """Folded-BN normalize + ReLU. mode: 'plain' | 'identity' | 'conv'
    ('conv' recomputes the 1x1 shortcut GEMM on-the-fly — MXU is idle here)."""
    if mode == "plain":
        def kernel(y_ref, sc_ref, sh_ref, o_ref):
            v = y_ref[...].astype(jnp.float32) * sc_ref[...] + sh_ref[...]
            o_ref[...] = jnp.maximum(v, 0.0).astype(o_ref.dtype)
    elif mode == "identity":
        def kernel(y_ref, sc_ref, sh_ref, xs_ref, o_ref):
            v = y_ref[...].astype(jnp.float32) * sc_ref[...] + sh_ref[...]
            v = v + xs_ref[...].astype(jnp.float32)
            o_ref[...] = jnp.maximum(v, 0.0).astype(o_ref.dtype)
    else:  # "conv"
        def kernel(y_ref, sc_ref, sh_ref, xs_ref, wsc_ref, ssc_ref, shsc_ref, o_ref):
            v = y_ref[...].astype(jnp.float32) * sc_ref[...] + sh_ref[...]
            sc_out = jnp.dot(xs_ref[...], wsc_ref[...],
                             preferred_element_type=jnp.float32)
            v = v + sc_out * ssc_ref[...] + shsc_ref[...]
            o_ref[...] = jnp.maximum(v, 0.0).astype(o_ref.dtype)
    return kernel


# ----------------------------- Pallas wrappers ----------------------------- #
def _conv3x3_s1(x_sp, w2d, ho, wo):
    """x_sp: (N, ho+2, wo+2, cin_p) bf16; w2d: (9*cin_p, cout_p) bf16.
    Returns y (N*ho*wo, cout_p) bf16 and per-channel f32 sum / sum-of-squares."""
    n, hp, wp, cin_p = x_sp.shape
    cout_p = w2d.shape[1]
    m = n * ho * wo
    assert hp == ho + 2 and wp == wo + 2
    assert (ho * wo) % 8 == 0, "per-image output row count must be a multiple of 8"
    kernel = _make_conv3x3_s1_kernel(ho, wo, cin_p, cout_p)
    cost = pl.CostEstimate(
        flops=2 * m * 9 * cin_p * cout_p,
        transcendentals=0,
        bytes_accessed=x_sp.size * 2 + w2d.size * 2 + m * cout_p * 2 + n * 8 * cout_p * 4)
    y, st = pl.pallas_call(
        kernel,
        out_shape=(jax.ShapeDtypeStruct((m, cout_p), jnp.bfloat16),
                   jax.ShapeDtypeStruct((n * 8, cout_p), jnp.float32)),
        grid=(n,),
        in_specs=[
            pl.BlockSpec((None, hp, wp, cin_p), lambda i: (i, 0, 0, 0)),
            # TODO(synk): on v7x consider pipeline_mode=pl.Buffered(1) for this
            # grid-invariant weight block to save VMEM.
            pl.BlockSpec((9 * cin_p, cout_p), lambda i: (0, 0)),
        ],
        out_specs=(pl.BlockSpec((ho * wo, cout_p), lambda i: (i, 0)),
                   pl.BlockSpec((8, cout_p), lambda i: (i, 0))),
        compiler_params=pltpu.CompilerParams(
            dimension_semantics=("parallel",), vmem_limit_bytes=VMEM_LIMIT),
        cost_estimate=cost,
    )(x_sp, w2d)
    st = st.reshape(n, 8, cout_p)
    return y, st[:, 0, :].sum(axis=0), st[:, 1, :].sum(axis=0)


def _gemm_stats(p, w, *, write_y, tm_target):
    """p (M, K) bf16, w (K, C) bf16 -> (optional y bf16, sum, sumsq)."""
    m, k = p.shape
    c = w.shape[1]
    tm = _pick_tile(m, tm_target)
    t = m // tm
    kernel = _make_gemm_stats_kernel(write_y, c)
    if write_y:
        out_shape = (jax.ShapeDtypeStruct((m, c), jnp.bfloat16),
                     jax.ShapeDtypeStruct((t * 8, c), jnp.float32))
        out_specs = (pl.BlockSpec((tm, c), lambda i: (i, 0)),
                     pl.BlockSpec((8, c), lambda i: (i, 0)))
    else:
        out_shape = jax.ShapeDtypeStruct((t * 8, c), jnp.float32)
        out_specs = pl.BlockSpec((8, c), lambda i: (i, 0))
    outs = pl.pallas_call(
        kernel,
        out_shape=out_shape,
        grid=(t,),
        in_specs=[pl.BlockSpec((tm, k), lambda i: (i, 0)),
                  pl.BlockSpec((k, c), lambda i: (0, 0))],
        out_specs=out_specs,
        compiler_params=pltpu.CompilerParams(
            dimension_semantics=("parallel",), vmem_limit_bytes=VMEM_LIMIT),
    )(p, w)
    if write_y:
        y, st = outs
    else:
        y, st = None, outs
    st = st.reshape(t, 8, c)
    return y, st[:, 0, :].sum(axis=0), st[:, 1, :].sum(axis=0)


def _bn_relu_epilogue(y, scale, shift, xs=None, wsc=None, sc_scale=None,
                      sc_shift=None, *, out_dtype):
    """Mem-bound pass: relu(y*scale+shift [+ shortcut])."""
    m, c = y.shape
    tm = _pick_tile(m, EPILOGUE_ROWS)
    t = m // tm
    mode = "plain" if xs is None else ("conv" if wsc is not None else "identity")
    kernel = _make_epilogue_kernel(mode)

    row = lambda i: (i, 0)
    rep = lambda i: (0, 0)
    inputs = [y, scale, shift]
    in_specs = [pl.BlockSpec((tm, c), row),
                pl.BlockSpec((1, c), rep),
                pl.BlockSpec((1, c), rep)]
    out_bytes = 2 if out_dtype == jnp.bfloat16 else 4
    flops = 3 * m * c
    bytes_acc = y.size * 2 + m * c * out_bytes + 2 * c * 4
    if mode != "plain":
        inputs.append(xs)
        in_specs.append(pl.BlockSpec((tm, xs.shape[1]), row))
        flops += m * c
        bytes_acc += xs.size * 2
    if mode == "conv":
        inputs += [wsc, sc_scale, sc_shift]
        in_specs += [pl.BlockSpec(wsc.shape, rep),
                     pl.BlockSpec((1, c), rep),
                     pl.BlockSpec((1, c), rep)]
        flops += 2 * m * wsc.shape[0] * c + 2 * m * c
        bytes_acc += wsc.size * 2 + 2 * c * 4
    return pl.pallas_call(
        kernel,
        out_shape=jax.ShapeDtypeStruct((m, c), out_dtype),
        grid=(t,),
        in_specs=in_specs,
        out_specs=pl.BlockSpec((tm, c), row),
        compiler_params=pltpu.CompilerParams(
            dimension_semantics=("parallel",), vmem_limit_bytes=VMEM_LIMIT),
        cost_estimate=pl.CostEstimate(flops=flops, transcendentals=0,
                                      bytes_accessed=bytes_acc),
    )(*inputs)


# ------------------------------- JAX glue ---------------------------------- #
def _bn_fold(psum, psq, count, gamma, beta, c_pad, eps=BN_EPS):
    """Finalize train-mode BN (f32, Cout-sized, negligible): scale/shift fold."""
    mean = psum / count
    var = jnp.maximum(psq / count - mean * mean, 0.0)
    scale = _pad_vec(gamma, c_pad) * jax.lax.rsqrt(var + eps)
    shift = _pad_vec(beta, c_pad) - mean * scale
    return scale.reshape(1, c_pad), shift.reshape(1, c_pad)


def _conv_weight_2d(w, cin_p, cout_p):
    """(cout, cin, 3, 3) OIHW -> (9*cin_p, cout_p) bf16, tap-major (kh, kw, cin)."""
    cout, cin = w.shape[0], w.shape[1]
    wt = jnp.transpose(w, (2, 3, 1, 0))
    wt = jnp.pad(wt, ((0, 0), (0, 0), (0, cin_p - cin), (0, cout_p - cout)))
    return wt.reshape(9 * cin_p, cout_p).astype(jnp.bfloat16)


def _im2col_from_padded(x_sp, ho, wo, stride):
    """stride!=1 fallback only: bf16 channel-padded im2col patches."""
    n, cin_p = x_sp.shape[0], x_sp.shape[3]
    cols = []
    for kh in range(3):
        for kw in range(3):
            cols.append(x_sp[:, kh:kh + stride * (ho - 1) + 1:stride,
                                kw:kw + stride * (wo - 1) + 1:stride, :])
    return jnp.concatenate(cols, axis=-1).reshape(n * ho * wo, 9 * cin_p)


def basic_block_forward(x_nchw, params, stride=1):
    """BasicBlock.forward; x_nchw (N, Cin, H, W) f32 -> (N, planes, Ho, Wo) f32."""
    n, cin, h, w = x_nchw.shape
    planes = params["w1"].shape[0]
    cin_p = _round_up(cin, LANES)
    cpl_p = _round_up(planes, LANES)

    # One-time layout prep: NHWC, zero spatial halo for the 3x3 conv, channel
    # pad to a lane multiple, bf16 (MXU-native). Shared by conv1 and shortcut.
    x_nhwc = jnp.transpose(x_nchw, (0, 2, 3, 1))
    x_sp = jnp.pad(x_nhwc, ((0, 0), (1, 1), (1, 1), (0, cin_p - cin))
                   ).astype(jnp.bfloat16)

    ho = (h - 1) // stride + 1
    wo = (w - 1) // stride + 1
    m = n * ho * wo

    w1 = _conv_weight_2d(params["w1"], cin_p, cpl_p)
    w2 = _conv_weight_2d(params["w2"], cpl_p, cpl_p)

    # ---- conv1 (3x3, stride, pad=1, no bias) + bn1 partial stats ----
    if stride == 1:
        y1, s1, q1 = _conv3x3_s1(x_sp, w1, ho, wo)
    else:
        # TODO(synk): fuse the strided conv too (even/odd phase decomposition);
        # until then stride!=1 uses a bf16, channel-padded im2col GEMM.
        p1 = _im2col_from_padded(x_sp, ho, wo, stride)
        y1, s1, q1 = _gemm_stats(p1, w1, write_y=True, tm_target=GEMM_ROWS)
    sc1, sh1 = _bn_fold(s1, q1, m, params["g1"], params["b1"], cpl_p)
    h1 = _bn_relu_epilogue(y1, sc1, sh1, out_dtype=jnp.bfloat16)   # (m, cpl_p) bf16

    # ---- conv2 (3x3, stride 1, pad=1) + bn2 partial stats ----
    # TODO(synk): the spatial zero-halo pad of h1 is still a wrapper-side copy.
    h1_sp = jnp.pad(h1.reshape(n, ho, wo, cpl_p), ((0, 0), (1, 1), (1, 1), (0, 0)))
    y2, s2, q2 = _conv3x3_s1(h1_sp, w2, ho, wo)
    sc2, sh2 = _bn_fold(s2, q2, m, params["g2"], params["b2"], cpl_p)

    # ---- shortcut branch, fused into conv2's epilogue ----
    xs = x_sp[:, 1:h + 1:stride, 1:w + 1:stride, :].reshape(m, cin_p)  # bf16
    if stride != 1 or cin != planes:
        wsc = jnp.pad(params["wsc"][:, :, 0, 0].T,
                      ((0, cin_p - cin), (0, cpl_p - planes))).astype(jnp.bfloat16)
        # Stats-only pass: shortcut-BN statistics without writing the 1x1 conv
        # output to HBM; the GEMM itself is recomputed inside the epilogue.
        _, ssc, qsc = _gemm_stats(xs, wsc, write_y=False, tm_target=EPILOGUE_ROWS)
        scsc, shsc = _bn_fold(ssc, qsc, m, params["gsc"], params["bsc"], cpl_p)
        out = _bn_relu_epilogue(y2, sc2, sh2, xs=xs, wsc=wsc, sc_scale=scsc,
                                sc_shift=shsc, out_dtype=jnp.float32)
    else:
        out = _bn_relu_epilogue(y2, sc2, sh2, xs=xs, out_dtype=jnp.float32)

    out = out[:, :planes].reshape(n, ho, wo, planes)
    return jnp.transpose(out, (0, 3, 1, 2))  # back to NCHW


# -------------------------- pure-JAX reference ----------------------------- #
def _bn_train_ref(x, g, b, eps=BN_EPS):
    mean = x.mean(axis=(0, 2, 3), keepdims=True)
    var = jnp.square(x - mean).mean(axis=(0, 2, 3), keepdims=True)
    return (x - mean) * (g.reshape(1, -1, 1, 1) * jax.lax.rsqrt(var + eps)) \
        + b.reshape(1, -1, 1, 1)


def _conv_ref(x, w, stride, pad):
    return jax.lax.conv_general_dilated(
        x, w, (stride, stride), ((pad, pad), (pad, pad)),
        dimension_numbers=("NCHW", "OIHW", "NCHW"),
        precision=jax.lax.Precision.HIGHEST)


def basic_block_reference(x, params, stride=1):
    out = jax.nn.relu(_bn_train_ref(_conv_ref(x, params["w1"], stride, 1),
                                    params["g1"], params["b1"]))
    out = _bn_train_ref(_conv_ref(out, params["w2"], 1, 1),
                        params["g2"], params["b2"])
    cin, planes = x.shape[1], params["w1"].shape[0]
    if stride != 1 or cin != planes:
        sc = _bn_train_ref(_conv_ref(x, params["wsc"], stride, 0),
                           params["gsc"], params["bsc"])
    else:
        sc = x
    return jax.nn.relu(out + sc)


# --------------------------------- main ------------------------------------ #
if __name__ == "__main__":
    key = jax.random.PRNGKey(0)
    N, in_planes, planes, H, W, stride = 2, 4, 8, 16, 16, 1  # Cin != planes -> conv shortcut
    ks = jax.random.split(key, 8)
    params = {
        "w1": 0.2 * jax.random.normal(ks[0], (planes, in_planes, 3, 3), jnp.float32),
        "g1": 1.0 + 0.1 * jax.random.normal(ks[1], (planes,), jnp.float32),
        "b1": 0.1 * jax.random.normal(ks[2], (planes,), jnp.float32),
        "w2": 0.2 * jax.random.normal(ks[3], (planes, planes, 3, 3), jnp.float32),
        "g2": 1.0 + 0.1 * jax.random.normal(ks[4], (planes,), jnp.float32),
        "b2": 0.1 * jax.random.normal(ks[5], (planes,), jnp.float32),
        "wsc": 0.2 * jax.random.normal(ks[6], (planes, in_planes, 1, 1), jnp.float32),
        "gsc": jnp.ones((planes,), jnp.float32),
        "bsc": jnp.zeros((planes,), jnp.float32),
    }
    x = jax.random.normal(ks[7], (N, in_planes, H, W), jnp.float32)

    fwd = jax.jit(functools.partial(basic_block_forward, stride=stride))
    out = jax.block_until_ready(fwd(x, params))

    ref = basic_block_reference(x, params, stride)
    assert out.shape == (N, planes, H // stride, W // stride)
    max_err = float(jnp.max(jnp.abs(out - ref)))
    # bf16 MXU operands / bf16 intermediates vs f32 HIGHEST reference
    assert jnp.allclose(out, ref, rtol=4e-2, atol=4e-2), f"max_err={max_err}"
    print("KERNEL_OK")
</pallas_src>

<mosaic_0001>
module attributes {stable_mosaic.version = 11 : i64} {
  func.func @kernel(%arg0: i32, %arg1: memref<1x18x18x128xbf16, #tpu.memory_space<vmem>>, %arg2: memref<1152x128xbf16, #tpu.memory_space<vmem>>, %arg3: memref<256x128xbf16, #tpu.memory_space<vmem>>, %arg4: memref<8x128xf32, #tpu.memory_space<vmem>>) attributes {dimension_semantics = [#tpu.dimension_semantics<parallel>], iteration_bounds = array<i64: 2>, scalar_prefetch = 0 : i64, scratch_operands = 0 : i64, tpu.core_type = #tpu.core_type<tc>, window_params = [{transform_indices = @transform_0, window_bounds = array<i64: 1, 18, 18, 128>}, {pipeline_mode = #tpu.pipeline_mode<synchronous>, transform_indices = @transform_1, window_bounds = array<i64: 1152, 128>}, {transform_indices = @transform_2, window_bounds = array<i64: 256, 128>}, {transform_indices = @transform_3, window_bounds = array<i64: 8, 128>}]} {
    %cst = arith.constant 0.000000e+00 : f32
    %0 = vector.broadcast %cst : f32 to vector<256x128xf32>
    %c0 = arith.constant 0 : index
    %c0_0 = arith.constant 0 : index
    %c0_1 = arith.constant 0 : index
    %c0_2 = arith.constant 0 : index
    %1 = vector.load %arg1[%c0, %c0_0, %c0_1, %c0_2] : memref<1x18x18x128xbf16, #tpu.memory_space<vmem>>, vector<1x16x16x128xbf16>
    %2 = vector.shape_cast %1 : vector<1x16x16x128xbf16> to vector<16x16x128xbf16>
    %3 = vector.shape_cast %2 : vector<16x16x128xbf16> to vector<256x128xbf16>
    %c0_3 = arith.constant 0 : index
    %c0_4 = arith.constant 0 : index
    %4 = vector.load %arg2[%c0_3, %c0_4] : memref<1152x128xbf16, #tpu.memory_space<vmem>>, vector<128x128xbf16>
    %cst_5 = arith.constant dense<0.000000e+00> : vector<256x128xf32>
    %5 = tpu.matmul %3, %4, %cst_5 {dimension_numbers = #tpu.dot_dimension_numbers<[1], [0], [0], [1], [0, 0, 1, 1], [], []>} : vector<256x128xbf16>, vector<128x128xbf16>, vector<256x128xf32> -> vector<256x128xf32>
    %6 = arith.addf %0, %5 : vector<256x128xf32>
    %c0_6 = arith.constant 0 : index
    %c0_7 = arith.constant 0 : index
    %c1 = arith.constant 1 : index
    %c0_8 = arith.constant 0 : index
    %7 = vector.load %arg1[%c0_6, %c0_7, %c1, %c0_8] : memref<1x18x18x128xbf16, #tpu.memory_space<vmem>>, vector<1x16x16x128xbf16>
    %8 = vector.shape_cast %7 : vector<1x16x16x128xbf16> to vector<16x16x128xbf16>
    %9 = vector.shape_cast %8 : vector<16x16x128xbf16> to vector<256x128xbf16>
    %c128 = arith.constant 128 : index
    %c0_9 = arith.constant 0 : index
    %10 = vector.load %arg2[%c128, %c0_9] : memref<1152x128xbf16, #tpu.memory_space<vmem>>, vector<128x128xbf16>
    %cst_10 = arith.constant dense<0.000000e+00> : vector<256x128xf32>
    %11 = tpu.matmul %9, %10, %cst_10 {dimension_numbers = #tpu.dot_dimension_numbers<[1], [0], [0], [1], [0, 0, 1, 1], [], []>} : vector<256x128xbf16>, vector<128x128xbf16>, vector<256x128xf32> -> vector<256x128xf32>
    %12 = arith.addf %6, %11 : vector<256x128xf32>
    %c0_11 = arith.constant 0 : index
    %c0_12 = arith.constant 0 : index
    %c2 = arith.constant 2 : index
    %c0_13 = arith.constant 0 : index
    %13 = vector.load %arg1[%c0_11, %c0_12, %c2, %c0_13] : memref<1x18x18x128xbf16, #tpu.memory_space<vmem>>, vector<1x16x16x128xbf16>
    %14 = vector.shape_cast %13 : vector<1x16x16x128xbf16> to vector<16x16x128xbf16>
    %15 = vector.shape_cast %14 : vector<16x16x128xbf16> to vector<256x128xbf16>
    %c256 = arith.constant 256 : index
    %c0_14 = arith.constant 0 : index
    %16 = vector.load %arg2[%c256, %c0_14] : memref<1152x128xbf16, #tpu.memory_space<vmem>>, vector<128x128xbf16>
    %cst_15 = arith.constant dense<0.000000e+00> : vector<256x128xf32>
    %17 = tpu.matmul %15, %16, %cst_15 {dimension_numbers = #tpu.dot_dimension_numbers<[1], [0], [0], [1], [0, 0, 1, 1], [], []>} : vector<256x128xbf16>, vector<128x128xbf16>, vector<256x128xf32> -> vector<256x128xf32>
    %18 = arith.addf %12, %17 : vector<256x128xf32>
    %c0_16 = arith.constant 0 : index
    %c1_17 = arith.constant 1 : index
    %c0_18 = arith.constant 0 : index
    %c0_19 = arith.constant 0 : index
    %19 = vector.load %arg1[%c0_16, %c1_17, %c0_18, %c0_19] : memref<1x18x18x128xbf16, #tpu.memory_space<vmem>>, vector<1x16x16x128xbf16>
    %20 = vector.shape_cast %19 : vector<1x16x16x128xbf16> to vector<16x16x128xbf16>
    %21 = vector.shape_cast %20 : vector<16x16x128xbf16> to vector<256x128xbf16>
    %c384 = arith.constant 384 : index
    %c0_20 = arith.constant 0 : index
    %22 = vector.load %arg2[%c384, %c0_20] : memref<1152x128xbf16, #tpu.memory_space<vmem>>, vector<128x128xbf16>
    %cst_21 = arith.constant dense<0.000000e+00> : vector<256x128xf32>
    %23 = tpu.matmul %21, %22, %cst_21 {dimension_numbers = #tpu.dot_dimension_numbers<[1], [0], [0], [1], [0, 0, 1, 1], [], []>} : vector<256x128xbf16>, vector<128x128xbf16>, vector<256x128xf32> -> vector<256x128xf32>
    %24 = arith.addf %18, %23 : vector<256x128xf32>
    %c0_22 = arith.constant 0 : index
    %c1_23 = arith.constant 1 : index
    %c1_24 = arith.constant 1 : index
    %c0_25 = arith.constant 0 : index
    %25 = vector.load %arg1[%c0_22, %c1_23, %c1_24, %c0_25] : memref<1x18x18x128xbf16, #tpu.memory_space<vmem>>, vector<1x16x16x128xbf16>
    %26 = vector.shape_cast %25 : vector<1x16x16x128xbf16> to vector<16x16x128xbf16>
    %27 = vector.shape_cast %26 : vector<16x16x128xbf16> to vector<256x128xbf16>
    %c512 = arith.constant 512 : index
    %c0_26 = arith.constant 0 : index
    %28 = vector.load %arg2[%c512, %c0_26] : memref<1152x128xbf16, #tpu.memory_space<vmem>>, vector<128x128xbf16>
    %cst_27 = arith.constant dense<0.000000e+00> : vector<256x128xf32>
    %29 = tpu.matmul %27, %28, %cst_27 {dimension_numbers = #tpu.dot_dimension_numbers<[1], [0], [0], [1], [0, 0, 1, 1], [], []>} : vector<256x128xbf16>, vector<128x128xbf16>, vector<256x128xf32> -> vector<256x128xf32>
    %30 = arith.addf %24, %29 : vector<256x128xf32>
    %c0_28 = arith.constant 0 : index
    %c1_29 = arith.constant 1 : index
    %c2_30 = arith.constant 2 : index
    %c0_31 = arith.constant 0 : index
    %31 = vector.load %arg1[%c0_28, %c1_29, %c2_30, %c0_31] : memref<1x18x18x128xbf16, #tpu.memory_space<vmem>>, vector<1x16x16x128xbf16>
    %32 = vector.shape_cast %31 : vector<1x16x16x128xbf16> to vector<16x16x128xbf16>
    %33 = vector.shape_cast %32 : vector<16x16x128xbf16> to vector<256x128xbf16>
    %c640 = arith.constant 640 : index
    %c0_32 = arith.constant 0 : index
    %34 = vector.load %arg2[%c640, %c0_32] : memref<1152x128xbf16, #tpu.memory_space<vmem>>, vector<128x128xbf16>
    %cst_33 = arith.constant dense<0.000000e+00> : vector<256x128xf32>
    %35 = tpu.matmul %33, %34, %cst_33 {dimension_numbers = #tpu.dot_dimension_numbers<[1], [0], [0], [1], [0, 0, 1, 1], [], []>} : vector<256x128xbf16>, vector<128x128xbf16>, vector<256x128xf32> -> vector<256x128xf32>
    %36 = arith.addf %30, %35 : vector<256x128xf32>
    %c0_34 = arith.constant 0 : index
    %c2_35 = arith.constant 2 : index
    %c0_36 = arith.constant 0 : index
    %c0_37 = arith.constant 0 : index
    %37 = vector.load %arg1[%c0_34, %c2_35, %c0_36, %c0_37] : memref<1x18x18x128xbf16, #tpu.memory_space<vmem>>, vector<1x16x16x128xbf16>
    %38 = vector.shape_cast %37 : vector<1x16x16x128xbf16> to vector<16x16x128xbf16>
    %39 = vector.shape_cast %38 : vector<16x16x128xbf16> to vector<256x128xbf16>
    %c768 = arith.constant 768 : index
    %c0_38 = arith.constant 0 : index
    %40 = vector.load %arg2[%c768, %c0_38] : memref<1152x128xbf16, #tpu.memory_space<vmem>>, vector<128x128xbf16>
    %cst_39 = arith.constant dense<0.000000e+00> : vector<256x128xf32>
    %41 = tpu.matmul %39, %40, %cst_39 {dimension_numbers = #tpu.dot_dimension_numbers<[1], [0], [0], [1], [0, 0, 1, 1], [], []>} : vector<256x128xbf16>, vector<128x128xbf16>, vector<256x128xf32> -> vector<256x128xf32>
    %42 = arith.addf %36, %41 : vector<256x128xf32>
    %c0_40 = arith.constant 0 : index
    %c2_41 = arith.constant 2 : index
    %c1_42 = arith.constant 1 : index
    %c0_43 = arith.constant 0 : index
    %43 = vector.load %arg1[%c0_40, %c2_41, %c1_42, %c0_43] : memref<1x18x18x128xbf16, #tpu.memory_space<vmem>>, vector<1x16x16x128xbf16>
    %44 = vector.shape_cast %43 : vector<1x16x16x128xbf16> to vector<16x16x128xbf16>
    %45 = vector.shape_cast %44 : vector<16x16x128xbf16> to vector<256x128xbf16>
    %c896 = arith.constant 896 : index
    %c0_44 = arith.constant 0 : index
    %46 = vector.load %arg2[%c896, %c0_44] : memref<1152x128xbf16, #tpu.memory_space<vmem>>, vector<128x128xbf16>
    %cst_45 = arith.constant dense<0.000000e+00> : vector<256x128xf32>
    %47 = tpu.matmul %45, %46, %cst_45 {dimension_numbers = #tpu.dot_dimension_numbers<[1], [0], [0], [1], [0, 0, 1, 1], [], []>} : vector<256x128xbf16>, vector<128x128xbf16>, vector<256x128xf32> -> vector<256x128xf32>
    %48 = arith.addf %42, %47 : vector<256x128xf32>
    %c0_46 = arith.constant 0 : index
    %c2_47 = arith.constant 2 : index
    %c2_48 = arith.constant 2 : index
    %c0_49 = arith.constant 0 : index
    %49 = vector.load %arg1[%c0_46, %c2_47, %c2_48, %c0_49] : memref<1x18x18x128xbf16, #tpu.memory_space<vmem>>, vector<1x16x16x128xbf16>
    %50 = vector.shape_cast %49 : vector<1x16x16x128xbf16> to vector<16x16x128xbf16>
    %51 = vector.shape_cast %50 : vector<16x16x128xbf16> to vector<256x128xbf16>
    %c1024 = arith.constant 1024 : index
    %c0_50 = arith.constant 0 : index
    %52 = vector.load %arg2[%c1024, %c0_50] : memref<1152x128xbf16, #tpu.memory_space<vmem>>, vector<128x128xbf16>
    %cst_51 = arith.constant dense<0.000000e+00> : vector<256x128xf32>
    %53 = tpu.matmul %51, %52, %cst_51 {dimension_numbers = #tpu.dot_dimension_numbers<[1], [0], [0], [1], [0, 0, 1, 1], [], []>} : vector<256x128xbf16>, vector<128x128xbf16>, vector<256x128xf32> -> vector<256x128xf32>
    %54 = arith.addf %48, %53 : vector<256x128xf32>
    %55 = arith.truncf %54 : vector<256x128xf32> to vector<256x128xbf16>
    %c0_52 = arith.constant 0 : index
    %c0_53 = arith.constant 0 : index
    %56 = vector.load %arg3[%c0_52, %c0_53] : memref<256x128xbf16, #tpu.memory_space<vmem>>, vector<256x128xbf16>
    tpu.vector_store %arg3[%c0_52, %c0_53], %55 {strides = array<i32>} : memref<256x128xbf16, #tpu.memory_space<vmem>>, vector<256x128xbf16>,
    %cst_54 = arith.constant dense<0.000000e+00> : vector<128xf32>
    %57 = vector.multi_reduction <add>, %54, %cst_54 [0] : vector<256x128xf32> to vector<128xf32>
    %58 = vector.shape_cast %57 : vector<128xf32> to vector<1x128xf32>
    %59 = arith.mulf %54, %54 : vector<256x128xf32>
    %cst_55 = arith.constant dense<0.000000e+00> : vector<128xf32>
    %60 = vector.multi_reduction <add>, %59, %cst_55 [0] : vector<256x128xf32> to vector<128xf32>
    %61 = vector.shape_cast %60 : vector<128xf32> to vector<1x128xf32>
    %62 = tpu.iota {dimensions = array<i32: 0>} : vector<8x128xi32>
    %c0_i32 = arith.constant 0 : i32
    %63 = vector.broadcast %c0_i32 : i32 to vector<8x128xi32>
    %64 = arith.cmpi eq, %62, %63 : vector<8x128xi32>
    %c1_i32 = arith.constant 1 : i32
    %65 = vector.broadcast %c1_i32 : i32 to vector<8x128xi32>
    %66 = arith.cmpi eq, %62, %65 : vector<8x128xi32>
    %cst_56 = arith.constant 0.000000e+00 : f32
    %67 = vector.shape_cast %61 : vector<1x128xf32> to vector<1x128xf32>
    %68 = vector.broadcast %67 : vector<1x128xf32> to vector<8x128xf32>
    %69 = vector.broadcast %cst_56 : f32 to vector<8x128xf32>
    %70 = arith.select %66, %68, %69 : vector<8x128xi1>, vector<8x128xf32>
    %71 = vector.shape_cast %58 : vector<1x128xf32> to vector<1x128xf32>
    %72 = vector.broadcast %71 : vector<1x128xf32> to vector<8x128xf32>
    %73 = arith.select %64, %72, %70 : vector<8x128xi1>, vector<8x128xf32>
    %c0_57 = arith.constant 0 : index
    %c0_58 = arith.constant 0 : index
    %74 = vector.load %arg4[%c0_57, %c0_58] : memref<8x128xf32, #tpu.memory_space<vmem>>, vector<8x128xf32>
    tpu.vector_store %arg4[%c0_57, %c0_58], %73 {strides = array<i32>} : memref<8x128xf32, #tpu.memory_space<vmem>>, vector<8x128xf32>,
    return
  }
  func.func @transform_0(%arg0: i32) -> (i32, i32, i32, i32) {
    %c0_i32 = arith.constant 0 : i32
    %c0_i32_0 = arith.constant 0 : i32
    %c0_i32_1 = arith.constant 0 : i32
    %c0_i32_2 = arith.constant 0 : i32
    return %arg0, %c0_i32, %c0_i32_0, %c0_i32_1 : i32, i32, i32, i32
  }
  func.func @transform_1(%arg0: i32) -> (i32, i32) {
    %c0_i32 = arith.constant 0 : i32
    %c0_i32_0 = arith.constant 0 : i32
    %c0_i32_1 = arith.constant 0 : i32
    return %c0_i32, %c0_i32_0 : i32, i32
  }
  func.func @transform_2(%arg0: i32) -> (i32, i32) {
    %c0_i32 = arith.constant 0 : i32
    %c0_i32_0 = arith.constant 0 : i32
    return %arg0, %c0_i32 : i32, i32
  }
  func.func @transform_3(%arg0: i32) -> (i32, i32) {
    %c0_i32 = arith.constant 0 : i32
    %c0_i32_0 = arith.constant 0 : i32
    return %arg0, %c0_i32 : i32, i32
  }
}

module attributes {stable_mosaic.version = 11 : i64} {
  func.func @kernel(%arg0: i32, %arg1: memref<512x128xbf16, #tpu.memory_space<vmem>>, %arg2: memref<1x128xf32, #tpu.memory_space<vmem>>, %arg3: memref<1x128xf32, #tpu.memory_space<vmem>>, %arg4: memref<512x128xbf16, #tpu.memory_space<vmem>>) attributes {dimension_semantics = [#tpu.dimension_semantics<parallel>], iteration_bounds = array<i64: 1>, scalar_prefetch = 0 : i64, scratch_operands = 0 : i64, tpu.core_type = #tpu.core_type<tc>, window_params = [{transform_indices = @transform_0, window_bounds = array<i64: 512, 128>}, {pipeline_mode = #tpu.pipeline_mode<synchronous>, transform_indices = @transform_1, window_bounds = array<i64: 1, 128>}, {pipeline_mode = #tpu.pipeline_mode<synchronous>, transform_indices = @transform_2, window_bounds = array<i64: 1, 128>}, {transform_indices = @transform_3, window_bounds = array<i64: 512, 128>}]} {
    %c0 = arith.constant 0 : index
    %c0_0 = arith.constant 0 : index
    %0 = vector.load %arg1[%c0, %c0_0] : memref<512x128xbf16, #tpu.memory_space<vmem>>, vector<512x128xbf16>
    %1 = arith.extf %0 : vector<512x128xbf16> to vector<512x128xf32>
    %c0_1 = arith.constant 0 : index
    %c0_2 = arith.constant 0 : index
    %2 = vector.load %arg2[%c0_1, %c0_2] : memref<1x128xf32, #tpu.memory_space<vmem>>, vector<1x128xf32>
    %3 = vector.broadcast %2 : vector<1x128xf32> to vector<512x128xf32>
    %4 = arith.mulf %1, %3 : vector<512x128xf32>
    %c0_3 = arith.constant 0 : index
    %c0_4 = arith.constant 0 : index
    %5 = vector.load %arg3[%c0_3, %c0_4] : memref<1x128xf32, #tpu.memory_space<vmem>>, vector<1x128xf32>
    %6 = vector.broadcast %5 : vector<1x128xf32> to vector<512x128xf32>
    %7 = arith.addf %4, %6 : vector<512x128xf32>
    %cst = arith.constant 0.000000e+00 : f32
    %8 = vector.broadcast %cst : f32 to vector<512x128xf32>
    %9 = arith.maximumf %7, %8 : vector<512x128xf32>
    %10 = arith.truncf %9 : vector<512x128xf32> to vector<512x128xbf16>
    %c0_5 = arith.constant 0 : index
    %c0_6 = arith.constant 0 : index
    %11 = vector.load %arg4[%c0_5, %c0_6] : memref<512x128xbf16, #tpu.memory_space<vmem>>, vector<512x128xbf16>
    tpu.vector_store %arg4[%c0_5, %c0_6], %10 {strides = array<i32>} : memref<512x128xbf16, #tpu.memory_space<vmem>>, vector<512x128xbf16>,
    return
  }
  func.func @transform_0(%arg0: i32) -> (i32, i32) {
    %c0_i32 = arith.constant 0 : i32
    %c0_i32_0 = arith.constant 0 : i32
    return %arg0, %c0_i32 : i32, i32
  }
  func.func @transform_1(%arg0: i32) -> (i32, i32) {
    %c0_i32 = arith.constant 0 : i32
    %c0_i32_0 = arith.constant 0 : i32
    %c0_i32_1 = arith.constant 0 : i32
    return %c0_i32, %c0_i32_0 : i32, i32
  }
  func.func @transform_2(%arg0: i32) -> (i32, i32) {
    %c0_i32 = arith.constant 0 : i32
    %c0_i32_0 = arith.constant 0 : i32
    %c0_i32_1 = arith.constant 0 : i32
    return %c0_i32, %c0_i32_0 : i32, i32
  }
  func.func @transform_3(%arg0: i32) -> (i32, i32) {
    %c0_i32 = arith.constant 0 : i32
    %c0_i32_0 = arith.constant 0 : i32
    return %arg0, %c0_i32 : i32, i32
  }
}

module attributes {stable_mosaic.version = 11 : i64} {
  func.func @kernel(%arg0: i32, %arg1: memref<512x128xbf16, #tpu.memory_space<vmem>>, %arg2: memref<128x128xbf16, #tpu.memory_space<vmem>>, %arg3: memref<8x128xf32, #tpu.memory_space<vmem>>) attributes {dimension_semantics = [#tpu.dimension_semantics<parallel>], iteration_bounds = array<i64: 1>, scalar_prefetch = 0 : i64, scratch_operands = 0 : i64, tpu.core_type = #tpu.core_type<tc>, window_params = [{transform_indices = @transform_0, window_bounds = array<i64: 512, 128>}, {pipeline_mode = #tpu.pipeline_mode<synchronous>, transform_indices = @transform_1, window_bounds = array<i64: 128, 128>}, {transform_indices = @transform_2, window_bounds = array<i64: 8, 128>}]} {
    %c0 = arith.constant 0 : index
    %c0_0 = arith.constant 0 : index
    %0 = vector.load %arg1[%c0, %c0_0] : memref<512x128xbf16, #tpu.memory_space<vmem>>, vector<512x128xbf16>
    %c0_1 = arith.constant 0 : index
    %c0_2 = arith.constant 0 : index
    %1 = vector.load %arg2[%c0_1, %c0_2] : memref<128x128xbf16, #tpu.memory_space<vmem>>, vector<128x128xbf16>
    %cst = arith.constant dense<0.000000e+00> : vector<512x128xf32>
    %2 = tpu.matmul %0, %1, %cst {dimension_numbers = #tpu.dot_dimension_numbers<[1], [0], [0], [1], [0, 0, 1, 1], [], []>} : vector<512x128xbf16>, vector<128x128xbf16>, vector<512x128xf32> -> vector<512x128xf32>
    %cst_3 = arith.constant dense<0.000000e+00> : vector<128xf32>
    %3 = vector.multi_reduction <add>, %2, %cst_3 [0] : vector<512x128xf32> to vector<128xf32>
    %4 = vector.shape_cast %3 : vector<128xf32> to vector<1x128xf32>
    %5 = arith.mulf %2, %2 : vector<512x128xf32>
    %cst_4 = arith.constant dense<0.000000e+00> : vector<128xf32>
    %6 = vector.multi_reduction <add>, %5, %cst_4 [0] : vector<512x128xf32> to vector<128xf32>
    %7 = vector.shape_cast %6 : vector<128xf32> to vector<1x128xf32>
    %8 = tpu.iota {dimensions = array<i32: 0>} : vector<8x128xi32>
    %c0_i32 = arith.constant 0 : i32
    %9 = vector.broadcast %c0_i32 : i32 to vector<8x128xi32>
    %10 = arith.cmpi eq, %8, %9 : vector<8x128xi32>
    %c1_i32 = arith.constant 1 : i32
    %11 = vector.broadcast %c1_i32 : i32 to vector<8x128xi32>
    %12 = arith.cmpi eq, %8, %11 : vector<8x128xi32>
    %cst_5 = arith.constant 0.000000e+00 : f32
    %13 = vector.shape_cast %7 : vector<1x128xf32> to vector<1x128xf32>
    %14 = vector.broadcast %13 : vector<1x128xf32> to vector<8x128xf32>
    %15 = vector.broadcast %cst_5 : f32 to vector<8x128xf32>
    %16 = arith.select %12, %14, %15 : vector<8x128xi1>, vector<8x128xf32>
    %17 = vector.shape_cast %4 : vector<1x128xf32> to vector<1x128xf32>
    %18 = vector.broadcast %17 : vector<1x128xf32> to vector<8x128xf32>
    %19 = arith.select %10, %18, %16 : vector<8x128xi1>, vector<8x128xf32>
    %c0_6 = arith.constant 0 : index
    %c0_7 = arith.constant 0 : index
    %20 = vector.load %arg3[%c0_6, %c0_7] : memref<8x128xf32, #tpu.memory_space<vmem>>, vector<8x128xf32>
    tpu.vector_store %arg3[%c0_6, %c0_7], %19 {strides = array<i32>} : memref<8x128xf32, #tpu.memory_space<vmem>>, vector<8x128xf32>,
    return
  }
  func.func @transform_0(%arg0: i32) -> (i32, i32) {
    %c0_i32 = arith.constant 0 : i32
    %c0_i32_0 = arith.constant 0 : i32
    return %arg0, %c0_i32 : i32, i32
  }
  func.func @transform_1(%arg0: i32) -> (i32, i32) {
    %c0_i32 = arith.constant 0 : i32
    %c0_i32_0 = arith.constant 0 : i32
    %c0_i32_1 = arith.constant 0 : i32
    return %c0_i32, %c0_i32_0 : i32, i32
  }
  func.func @transform_2(%arg0: i32) -> (i32, i32) {
    %c0_i32 = arith.constant 0 : i32
    %c0_i32_0 = arith.constant 0 : i32
    return %arg0, %c0_i32 : i32, i32
  }
}

module attributes {stable_mosaic.version = 11 : i64} {
  func.func @kernel(%arg0: i32, %arg1: memref<512x128xbf16, #tpu.memory_space<vmem>>, %arg2: memref<1x128xf32, #tpu.memory_space<vmem>>, %arg3: memref<1x128xf32, #tpu.memory_space<vmem>>, %arg4: memref<512x128xbf16, #tpu.memory_space<vmem>>, %arg5: memref<128x128xbf16, #tpu.memory_space<vmem>>, %arg6: memref<1x128xf32, #tpu.memory_space<vmem>>, %arg7: memref<1x128xf32, #tpu.memory_space<vmem>>, %arg8: memref<512x128xf32, #tpu.memory_space<vmem>>) attributes {dimension_semantics = [#tpu.dimension_semantics<parallel>], iteration_bounds = array<i64: 1>, scalar_prefetch = 0 : i64, scratch_operands = 0 : i64, tpu.core_type = #tpu.core_type<tc>, window_params = [{transform_indices = @transform_0, window_bounds = array<i64: 512, 128>}, {pipeline_mode = #tpu.pipeline_mode<synchronous>, transform_indices = @transform_1, window_bounds = array<i64: 1, 128>}, {pipeline_mode = #tpu.pipeline_mode<synchronous>, transform_indices = @transform_2, window_bounds = array<i64: 1, 128>}, {transform_indices = @transform_3, window_bounds = array<i64: 512, 128>}, {pipeline_mode = #tpu.pipeline_mode<synchronous>, transform_indices = @transform_4, window_bounds = array<i64: 128, 128>}, {pipeline_mode = #tpu.pipeline_mode<synchronous>, transform_indices = @transform_5, window_bounds = array<i64: 1, 128>}, {pipeline_mode = #tpu.pipeline_mode<synchronous>, transform_indices = @transform_6, window_bounds = array<i64: 1, 128>}, {transform_indices = @transform_7, window_bounds = array<i64: 512, 128>}]} {
    %c0 = arith.constant 0 : index
    %c0_0 = arith.constant 0 : index
    %0 = vector.load %arg1[%c0, %c0_0] : memref<512x128xbf16, #tpu.memory_space<vmem>>, vector<512x128xbf16>
    %1 = arith.extf %0 : vector<512x128xbf16> to vector<512x128xf32>
    %c0_1 = arith.constant 0 : index
    %c0_2 = arith.constant 0 : index
    %2 = vector.load %arg2[%c0_1, %c0_2] : memref<1x128xf32, #tpu.memory_space<vmem>>, vector<1x128xf32>
    %3 = vector.broadcast %2 : vector<1x128xf32> to vector<512x128xf32>
    %4 = arith.mulf %1, %3 : vector<512x128xf32>
    %c0_3 = arith.constant 0 : index
    %c0_4 = arith.constant 0 : index
    %5 = vector.load %arg3[%c0_3, %c0_4] : memref<1x128xf32, #tpu.memory_space<vmem>>, vector<1x128xf32>
    %6 = vector.broadcast %5 : vector<1x128xf32> to vector<512x128xf32>
    %7 = arith.addf %4, %6 : vector<512x128xf32>
    %c0_5 = arith.constant 0 : index
    %c0_6 = arith.constant 0 : index
    %8 = vector.load %arg4[%c0_5, %c0_6] : memref<512x128xbf16, #tpu.memory_space<vmem>>, vector<512x128xbf16>
    %c0_7 = arith.constant 0 : index
    %c0_8 = arith.constant 0 : index
    %9 = vector.load %arg5[%c0_7, %c0_8] : memref<128x128xbf16, #tpu.memory_space<vmem>>, vector<128x128xbf16>
    %cst = arith.constant dense<0.000000e+00> : vector<512x128xf32>
    %10 = tpu.matmul %8, %9, %cst {dimension_numbers = #tpu.dot_dimension_numbers<[1], [0], [0], [1], [0, 0, 1, 1], [], []>} : vector<512x128xbf16>, vector<128x128xbf16>, vector<512x128xf32> -> vector<512x128xf32>
    %c0_9 = arith.constant 0 : index
    %c0_10 = arith.constant 0 : index
    %11 = vector.load %arg6[%c0_9, %c0_10] : memref<1x128xf32, #tpu.memory_space<vmem>>, vector<1x128xf32>
    %12 = vector.broadcast %11 : vector<1x128xf32> to vector<512x128xf32>
    %13 = arith.mulf %10, %12 : vector<512x128xf32>
    %14 = arith.addf %7, %13 : vector<512x128xf32>
    %c0_11 = arith.constant 0 : index
    %c0_12 = arith.constant 0 : index
    %15 = vector.load %arg7[%c0_11, %c0_12] : memref<1x128xf32, #tpu.memory_space<vmem>>, vector<1x128xf32>
    %16 = vector.broadcast %15 : vector<1x128xf32> to vector<512x128xf32>
    %17 = arith.addf %14, %16 : vector<512x128xf32>
    %cst_13 = arith.constant 0.000000e+00 : f32
    %18 = vector.broadcast %cst_13 : f32 to vector<512x128xf32>
    %19 = arith.maximumf %17, %18 : vector<512x128xf32>
    %c0_14 = arith.constant 0 : index
    %c0_15 = arith.constant 0 : index
    %20 = vector.load %arg8[%c0_14, %c0_15] : memref<512x128xf32, #tpu.memory_space<vmem>>, vector<512x128xf32>
    tpu.vector_store %arg8[%c0_14, %c0_15], %19 {strides = array<i32>} : memref<512x128xf32, #tpu.memory_space<vmem>>, vector<512x128xf32>,
    return
  }
  func.func @transform_0(%arg0: i32) -> (i32, i32) {
    %c0_i32 = arith.constant 0 : i32
    %c0_i32_0 = arith.constant 0 : i32
    return %arg0, %c0_i32 : i32, i32
  }
  func.func @transform_1(%arg0: i32) -> (i32, i32) {
    %c0_i32 = arith.constant 0 : i32
    %c0_i32_0 = arith.constant 0 : i32
    %c0_i32_1 = arith.constant 0 : i32
    return %c0_i32, %c0_i32_0 : i32, i32
  }
  func.func @transform_2(%arg0: i32) -> (i32, i32) {
    %c0_i32 = arith.constant 0 : i32
    %c0_i32_0 = arith.constant 0 : i32
    %c0_i32_1 = arith.constant 0 : i32
    return %c0_i32, %c0_i32_0 : i32, i32
  }
  func.func @transform_3(%arg0: i32) -> (i32, i32) {
    %c0_i32 = arith.constant 0 : i32
    %c0_i32_0 = arith.constant 0 : i32
    return %arg0, %c0_i32 : i32, i32
  }
  func.func @transform_4(%arg0: i32) -> (i32, i32) {
    %c0_i32 = arith.constant 0 : i32
    %c0_i32_0 = arith.constant 0 : i32
    %c0_i32_1 = arith.constant 0 : i32
    return %c0_i32, %c0_i32_0 : i32, i32
  }
  func.func @transform_5(%arg0: i32) -> (i32, i32) {
    %c0_i32 = arith.constant 0 : i32
    %c0_i32_0 = arith.constant 0 : i32
    %c0_i32_1 = arith.constant 0 : i32
    return %c0_i32, %c0_i32_0 : i32, i32
  }
  func.func @transform_6(%arg0: i32) -> (i32, i32) {
    %c0_i32 = arith.constant 0 : i32
    %c0_i32_0 = arith.constant 0 : i32
    %c0_i32_1 = arith.constant 0 : i32
    return %c0_i32, %c0_i32_0 : i32, i32
  }
  func.func @transform_7(%arg0: i32) -> (i32, i32) {
    %c0_i32 = arith.constant 0 : i32
    %c0_i32_0 = arith.constant 0 : i32
    return %arg0, %c0_i32 : i32, i32
  }
}

</mosaic_0001>

<llo_original>
// kernel: basic_block_forward.6
$region0: #{basic_block_forward.6}
  #allocation0 [shape = 'u32[]', space=smem, size = 0x4, offset = 0x4, fixed_abs, tag = 'smem constant byte address 0x4 - core index']
  #allocation1 [shape = 'u32[72,128]{1,0:T(1,128)}', space=vmem, size = 0x9000, scoped, tag = 'internal scratch']
  %s0 = inlined_call_operand.vmem [shape: bf16[512,128], index: 0, kind: input, shape index: {}]
  %s1 = inlined_call_operand.vmem [shape: f32[1,128], index: 1, kind: input, shape index: {}]
  %s2 = inlined_call_operand.vmem [shape: f32[1,128], index: 2, kind: input, shape index: {}]
  %s3 = inlined_call_operand.vmem [shape: bf16[512,128], index: 3, kind: output, shape index: {}]
  %s4 = sld [smem:[#allocation0]]
  $region22: #{basic_block_forward.6} parent=0
    _
  %s6 = ssub.s32 1, %s4
  %s7 = scalar_select 0, %s6, %s4
  // Predicated region
  $region2: #{basic_block_forward.6} parent=0 // pred_check
    _
  $region3: #{basic_block_forward.6} parent=0 // pred_check_branch
    %9 = sbr.rel (0) target = $region5
  $region4: #{basic_block_forward.6} parent=0 // pred_region
    _
  $region5: #{basic_block_forward.6} parent=0 // pred_fallthru
    _
  // Predicated region
  $region6: #{basic_block_forward.6} parent=0 // pred_check
    _
  $region7: #{basic_block_forward.6} parent=0 // pred_check_branch
    %11 = sbr.rel (0) target = $region9
  $region8: #{basic_block_forward.6} parent=0 // pred_region
    _
  $region9: #{basic_block_forward.6} parent=0 // pred_fallthru
    _
  // Predicated region
  $region10: #{basic_block_forward.6} parent=0 // pred_check
    _
  $region11: #{basic_block_forward.6} parent=0 // pred_check_branch
    %13 = sbr.rel (0) target = $region13
  $region12: #{basic_block_forward.6} parent=0 // pred_region
    _
  $region13: #{basic_block_forward.6} parent=0 // pred_fallthru
    _
  %v14 = vld [vmem:[%s0] sm:$0xf]
  %v15 = vld [vmem:[%s0 + $0x4] sm:$0xf]
  %v16 = vld [vmem:[%s0 + $0x8] sm:$0xf]
  %v17 = vld [vmem:[%s0 + $0xc] sm:$0xf]
  %v18 = vld [vmem:[%s0 + $0x10] sm:$0xf]
  %v19 = vld [vmem:[%s0 + $0x14] sm:$0xf]
  %v20 = vld [vmem:[%s0 + $0x18] sm:$0xf]
  %v21 = vld [vmem:[%s0 + $0x1c] sm:$0xf]
  %v22 = vld [vmem:[%s0 + $0x20] sm:$0xf]
  %v23 = vld [vmem:[%s0 + $0x24] sm:$0xf]
  %v24 = vld [vmem:[%s0 + $0x28] sm:$0xf]
  %v25 = vld [vmem:[%s0 + $0x2c] sm:$0xf]
  %v26 = vld [vmem:[%s0 + $0x30] sm:$0xf]
  %v27 = vld [vmem:[%s0 + $0x34] sm:$0xf]
  %v28 = vld [vmem:[%s0 + $0x38] sm:$0xf]
  %v29 = vld [vmem:[%s0 + $0x3c] sm:$0xf]
  %v30 = vld [vmem:[%s0 + $0x40] sm:$0xf]
  %v31 = vld [vmem:[%s0 + $0x44] sm:$0xf]
  %v32 = vld [vmem:[%s0 + $0x48] sm:$0xf]
  %v33 = vld [vmem:[%s0 + $0x4c] sm:$0xf]
  %v34 = vld [vmem:[%s0 + $0x50] sm:$0xf]
  %v35 = vld [vmem:[%s0 + $0x54] sm:$0xf]
  %v36 = vld [vmem:[%s0 + $0x58] sm:$0xf]
  %v37 = vld [vmem:[%s0 + $0x5c] sm:$0xf]
  %v38 = vld [vmem:[%s0 + $0x60] sm:$0xf]
  %v39 = vld [vmem:[%s0 + $0x64] sm:$0xf]
  %v40 = vld [vmem:[%s0 + $0x68] sm:$0xf]
  %v41 = vld [vmem:[%s0 + $0x6c] sm:$0xf]
  %v42 = vld [vmem:[%s0 + $0x70] sm:$0xf]
  %v43 = vld [vmem:[%s0 + $0x74] sm:$0xf]
  %v44 = vld [vmem:[%s0 + $0x78] sm:$0xf]
  %v45 = vld [vmem:[%s0 + $0x7c] sm:$0xf]
  %v46 = vld [vmem:[%s0 + $0x80] sm:$0xf]
  %v47 = vld [vmem:[%s0 + $0x84] sm:$0xf]
  %v48 = vld [vmem:[%s0 + $0x88] sm:$0xf]
  %v49 = vld [vmem:[%s0 + $0x8c] sm:$0xf]
  %v50 = vld [vmem:[%s0 + $0x90] sm:$0xf]
  %v51 = vld [vmem:[%s0 + $0x94] sm:$0xf]
  %v52 = vld [vmem:[%s0 + $0x98] sm:$0xf]
  %v53 = vld [vmem:[%s0 + $0x9c] sm:$0xf]
  %v54 = vld [vmem:[%s0 + $0xa0] sm:$0xf]
  %v55 = vld [vmem:[%s0 + $0xa4] sm:$0xf]
  %v56 = vld [vmem:[%s0 + $0xa8] sm:$0xf]
  %v57 = vld [vmem:[%s0 + $0xac] sm:$0xf]
  %v58 = vld [vmem:[%s0 + $0xb0] sm:$0xf]
  %v59 = vld [vmem:[%s0 + $0xb4] sm:$0xf]
  %v60 = vld [vmem:[%s0 + $0xb8] sm:$0xf]
  %v61 = vld [vmem:[%s0 + $0xbc] sm:$0xf]
  %v62 = vld [vmem:[%s0 + $0xc0] sm:$0xf]
  %v63 = vld [vmem:[%s0 + $0xc4] sm:$0xf]
  %v64 = vld [vmem:[%s0 + $0xc8] sm:$0xf]
  %v65 = vld [vmem:[%s0 + $0xcc] sm:$0xf]
  %v66 = vld [vmem:[%s0 + $0xd0] sm:$0xf]
  %v67 = vld [vmem:[%s0 + $0xd4] sm:$0xf]
  %v68 = vld [vmem:[%s0 + $0xd8] sm:$0xf]
  %v69 = vld [vmem:[%s0 + $0xdc] sm:$0xf]
  %v70 = vld [vmem:[%s0 + $0xe0] sm:$0xf]
  %v71 = vld [vmem:[%s0 + $0xe4] sm:$0xf]
  %v72 = vld [vmem:[%s0 + $0xe8] sm:$0xf]
  %v73 = vld [vmem:[%s0 + $0xec] sm:$0xf]
  %v74 = vld [vmem:[%s0 + $0xf0] sm:$0xf]
  %v75 = vld [vmem:[%s0 + $0xf4] sm:$0xf]
  %v76 = vld [vmem:[%s0 + $0xf8] sm:$0xf]
  %v77 = vld [vmem:[%s0 + $0xfc] sm:$0xf]
  %v78 = vunpack.c.l.bf16 %v14
  %v79 = vunpack.c.l.bf16 %v15
  %v80 = vunpack.c.l.bf16 %v16
  %v81 = vunpack.c.l.bf16 %v17
  %v82 = vunpack.c.l.bf16 %v18
  %v83 = vunpack.c.l.bf16 %v19
  %v84 = vunpack.c.l.bf16 %v20
  %v85 = vunpack.c.l.bf16 %v21
  %v86 = vunpack.c.l.bf16 %v22
  %v87 = vunpack.c.l.bf16 %v23
  %v88 = vunpack.c.l.bf16 %v24
  %v89 = vunpack.c.l.bf16 %v25
  %v90 = vunpack.c.l.bf16 %v26
  %v91 = vunpack.c.l.bf16 %v27
  %v92 = vunpack.c.l.bf16 %v28
  %v93 = vunpack.c.l.bf16 %v29
  %v94 = vunpack.c.l.bf16 %v30
  %v95 = vunpack.c.l.bf16 %v31
  %v96 = vunpack.c.l.bf16 %v32
  %v97 = vunpack.c.l.bf16 %v33
  %v98 = vunpack.c.l.bf16 %v34
  %v99 = vunpack.c.l.bf16 %v35
  %v100 = vunpack.c.l.bf16 %v36
  %v101 = vunpack.c.l.bf16 %v37
  %v102 = vunpack.c.l.bf16 %v38
  %v103 = vunpack.c.l.bf16 %v39
  %v104 = vunpack.c.l.bf16 %v40
  %v105 = vunpack.c.l.bf16 %v41
  %v106 = vunpack.c.l.bf16 %v42
  %v107 = vunpack.c.l.bf16 %v43
  %v108 = vunpack.c.l.bf16 %v44
  %v109 = vunpack.c.l.bf16 %v45
  %v110 = vunpack.c.l.bf16 %v46
  %v111 = vunpack.c.l.bf16 %v47
  %v112 = vunpack.c.l.bf16 %v48
  %v113 = vunpack.c.l.bf16 %v49
  %v114 = vunpack.c.l.bf16 %v50
  %v115 = vunpack.c.l.bf16 %v51
  %v116 = vunpack.c.l.bf16 %v52
  %v117 = vunpack.c.l.bf16 %v53
  %v118 = vunpack.c.l.bf16 %v54
  %v119 = vunpack.c.l.bf16 %v55
  %v120 = vunpack.c.l.bf16 %v56
  %v121 = vunpack.c.l.bf16 %v57
  %v122 = vunpack.c.l.bf16 %v58
  %v123 = vunpack.c.l.bf16 %v59
  %v124 = vunpack.c.l.bf16 %v60
  %v125 = vunpack.c.l.bf16 %v61
  %v126 = vunpack.c.l.bf16 %v62
  %v127 = vunpack.c.l.bf16 %v63
  %v128 = vunpack.c.l.bf16 %v64
  %v129 = vunpack.c.l.bf16 %v65
  %v130 = vunpack.c.l.bf16 %v66
  %v131 = vunpack.c.l.bf16 %v67
  %v132 = vunpack.c.l.bf16 %v68
  %v133 = vunpack.c.l.bf16 %v69
  %v134 = vunpack.c.l.bf16 %v70
  %v135 = vunpack.c.l.bf16 %v71
  %v136 = vunpack.c.l.bf16 %v72
  %v137 = vunpack.c.l.bf16 %v73
  %v138 = vunpack.c.l.bf16 %v74
  %v139 = vunpack.c.l.bf16 %v75
  %v140 = vunpack.c.l.bf16 %v76
  %v141 = vunpack.c.l.bf16 %v77
  %v142 = vld [vmem:[%s1] sm:$0x1]
  %v144 = vperm.slane %v142, 0
  %v146 = vmul.f32 %v78, %v144
  %v147 = vmul.f32 %v79, %v144
  %v148 = vmul.f32 %v80, %v144
  %v149 = vmul.f32 %v81, %v144
  %v150 = vmul.f32 %v82, %v144
  %v151 = vmul.f32 %v83, %v144
  %v152 = vmul.f32 %v84, %v144
  %v153 = vmul.f32 %v85, %v144
  %v154 = vmul.f32 %v86, %v144
  %v155 = vmul.f32 %v87, %v144
  %v156 = vmul.f32 %v88, %v144
  %v157 = vmul.f32 %v89, %v144
  %v158 = vmul.f32 %v90, %v144
  %v159 = vmul.f32 %v91, %v144
  %v160 = vmul.f32 %v92, %v144
  %v161 = vmul.f32 %v93, %v144
  %v162 = vmul.f32 %v94, %v144
  %v163 = vmul.f32 %v95, %v144
  %v164 = vmul.f32 %v96, %v144
  %v165 = vmul.f32 %v97, %v144
  %v166 = vmul.f32 %v98, %v144
  %v167 = vmul.f32 %v99, %v144
  %v168 = vmul.f32 %v100, %v144
  %v169 = vmul.f32 %v101, %v144
  %v170 = vmul.f32 %v102, %v144
  %v171 = vmul.f32 %v103, %v144
  %v172 = vmul.f32 %v104, %v144
  %v173 = vmul.f32 %v105, %v144
  %v174 = vmul.f32 %v106, %v144
  %v175 = vmul.f32 %v107, %v144
  %v176 = vmul.f32 %v108, %v144
  %v177 = vmul.f32 %v109, %v144
  %v178 = vmul.f32 %v110, %v144
  %v179 = vmul.f32 %v111, %v144
  %v180 = vmul.f32 %v112, %v144
  %v181 = vmul.f32 %v113, %v144
  %v182 = vmul.f32 %v114, %v144
  %v183 = vmul.f32 %v115, %v144
  %v184 = vmul.f32 %v116, %v144
  %v185 = vmul.f32 %v117, %v144
  %v186 = vmul.f32 %v118, %v144
  %v187 = vmul.f32 %v119, %v144
  %v188 = vmul.f32 %v120, %v144
  %v189 = vmul.f32 %v121, %v144
  %v190 = vmul.f32 %v122, %v144
  %v191 = vmul.f32 %v123, %v144
  %v192 = vmul.f32 %v124, %v144
  %v193 = vmul.f32 %v125, %v144
  %v194 = vmul.f32 %v126, %v144
  %v195 = vmul.f32 %v127, %v144
  %v196 = vmul.f32 %v128, %v144
  %v197 = vmul.f32 %v129, %v144
  %v198 = vmul.f32 %v130, %v144
  %v199 = vmul.f32 %v131, %v144
  %v200 = vmul.f32 %v132, %v144
  %v201 = vmul.f32 %v133, %v144
  %v202 = vmul.f32 %v134, %v144
  %v203 = vmul.f32 %v135, %v144
  %v204 = vmul.f32 %v136, %v144
  %v205 = vmul.f32 %v137, %v144
  %v206 = vmul.f32 %v138, %v144
  %v207 = vmul.f32 %v139, %v144
  %v208 = vmul.f32 %v140, %v144
  %v209 = vmul.f32 %v141, %v144
  %v210 = vld [vmem:[%s2] sm:$0x1]
  %v212 = vperm.slane %v210, 0
  %v214 = vadd.f32 %v146, %v212
  %v215 = vadd.f32 %v147, %v212
  %v216 = vadd.f32 %v148, %v212
  %v217 = vadd.f32 %v149, %v212
  %v218 = vadd.f32 %v150, %v212
  %v219 = vadd.f32 %v151, %v212
  %v220 = vadd.f32 %v152, %v212
  %v221 = vadd.f32 %v153, %v212
  %v222 = vadd.f32 %v154, %v212
  %v223 = vadd.f32 %v155, %v212
  %v224 = vadd.f32 %v156, %v212
  %v225 = vadd.f32 %v157, %v212
  %v226 = vadd.f32 %v158, %v212
  %v227 = vadd.f32 %v159, %v212
  %v228 = vadd.f32 %v160, %v212
  %v229 = vadd.f32 %v161, %v212
  %v230 = vadd.f32 %v162, %v212
  %v231 = vadd.f32 %v163, %v212
  %v232 = vadd.f32 %v164, %v212
  %v233 = vadd.f32 %v165, %v212
  %v234 = vadd.f32 %v166, %v212
  %v235 = vadd.f32 %v167, %v212
  %v236 = vadd.f32 %v168, %v212
  %v237 = vadd.f32 %v169, %v212
  %v238 = vadd.f32 %v170, %v212
  %v239 = vadd.f32 %v171, %v212
  %v240 = vadd.f32 %v172, %v212
  %v241 = vadd.f32 %v173, %v212
  %v242 = vadd.f32 %v174, %v212
  %v243 = vadd.f32 %v175, %v212
  %v244 = vadd.f32 %v176, %v212
  %v245 = vadd.f32 %v177, %v212
  %v246 = vadd.f32 %v178, %v212
  %v247 = vadd.f32 %v179, %v212
  %v248 = vadd.f32 %v180, %v212
  %v249 = vadd.f32 %v181, %v212
  %v250 = vadd.f32 %v182, %v212
  %v251 = vadd.f32 %v183, %v212
  %v252 = vadd.f32 %v184, %v212
  %v253 = vadd.f32 %v185, %v212
  %v254 = vadd.f32 %v186, %v212
  %v255 = vadd.f32 %v187, %v212
  %v256 = vadd.f32 %v188, %v212
  %v257 = vadd.f32 %v189, %v212
  %v258 = vadd.f32 %v190, %v212
  %v259 = vadd.f32 %v191, %v212
  %v260 = vadd.f32 %v192, %v212
  %v261 = vadd.f32 %v193, %v212
  %v262 = vadd.f32 %v194, %v212
  %v263 = vadd.f32 %v195, %v212
  %v264 = vadd.f32 %v196, %v212
  %v265 = vadd.f32 %v197, %v212
  %v266 = vadd.f32 %v198, %v212
  %v267 = vadd.f32 %v199, %v212
  %v268 = vadd.f32 %v200, %v212
  %v269 = vadd.f32 %v201, %v212
  %v270 = vadd.f32 %v202, %v212
  %v271 = vadd.f32 %v203, %v212
  %v272 = vadd.f32 %v204, %v212
  %v273 = vadd.f32 %v205, %v212
  %v274 = vadd.f32 %v206, %v212
  %v275 = vadd.f32 %v207, %v212
  %v276 = vadd.f32 %v208, %v212
  %v277 = vadd.f32 %v209, %v212
  %v278 = vmax.f32 %v214, 0.0
  %v279 = vmax.f32 %v215, 0.0
  %v280 = vmax.f32 %v216, 0.0
  %v281 = vmax.f32 %v217, 0.0
  %v282 = vmax.f32 %v218, 0.0
  %v283 = vmax.f32 %v219, 0.0
  %v284 = vmax.f32 %v220, 0.0
  %v285 = vmax.f32 %v221, 0.0
  %v286 = vmax.f32 %v222, 0.0
  %v287 = vmax.f32 %v223, 0.0
  %v288 = vmax.f32 %v224, 0.0
  %v289 = vmax.f32 %v225, 0.0
  %v290 = vmax.f32 %v226, 0.0
  %v291 = vmax.f32 %v227, 0.0
  %v292 = vmax.f32 %v228, 0.0
  %v293 = vmax.f32 %v229, 0.0
  %v294 = vmax.f32 %v230, 0.0
  %v295 = vmax.f32 %v231, 0.0
  %v296 = vmax.f32 %v232, 0.0
  %v297 = vmax.f32 %v233, 0.0
  %v298 = vmax.f32 %v234, 0.0
  %v299 = vmax.f32 %v235, 0.0
  %v300 = vmax.f32 %v236, 0.0
  %v301 = vmax.f32 %v237, 0.0
  %v302 = vmax.f32 %v238, 0.0
  %v303 = vmax.f32 %v239, 0.0
  %v304 = vmax.f32 %v240, 0.0
  %v305 = vmax.f32 %v241, 0.0
  %v306 = vmax.f32 %v242, 0.0
  %v307 = vmax.f32 %v243, 0.0
  %v308 = vmax.f32 %v244, 0.0
  %v309 = vmax.f32 %v245, 0.0
  %v310 = vmax.f32 %v246, 0.0
  %v311 = vmax.f32 %v247, 0.0
  %v312 = vmax.f32 %v248, 0.0
  %v313 = vmax.f32 %v249, 0.0
  %v314 = vmax.f32 %v250, 0.0
  %v315 = vmax.f32 %v251, 0.0
  %v316 = vmax.f32 %v252, 0.0
  %v317 = vmax.f32 %v253, 0.0
  %v318 = vmax.f32 %v254, 0.0
  %v319 = vmax.f32 %v255, 0.0
  %v320 = vmax.f32 %v256, 0.0
  %v321 = vmax.f32 %v257, 0.0
  %v322 = vmax.f32 %v258, 0.0
  %v323 = vmax.f32 %v259, 0.0
  %v324 = vmax.f32 %v260, 0.0
  %v325 = vmax.f32 %v261, 0.0
  %v326 = vmax.f32 %v262, 0.0
  %v327 = vmax.f32 %v263, 0.0
  %v328 = vmax.f32 %v264, 0.0
  %v329 = vmax.f32 %v265, 0.0
  %v330 = vmax.f32 %v266, 0.0
  %v331 = vmax.f32 %v267, 0.0
  %v332 = vmax.f32 %v268, 0.0
  %v333 = vmax.f32 %v269, 0.0
  %v334 = vmax.f32 %v270, 0.0
  %v335 = vmax.f32 %v271, 0.0
  %v336 = vmax.f32 %v272, 0.0
  %v337 = vmax.f32 %v273, 0.0
  %v338 = vmax.f32 %v274, 0.0
  %v339 = vmax.f32 %v275, 0.0
  %v340 = vmax.f32 %v276, 0.0
  %v341 = vmax.f32 %v277, 0.0
  %v342 = vpack.c.bf16 %v278, %v278
  %v343 = vpack.c.bf16 %v279, %v279
  %v344 = vpack.c.bf16 %v280, %v280
  %v345 = vpack.c.bf16 %v281, %v281
  %v346 = vpack.c.bf16 %v282, %v282
  %v347 = vpack.c.bf16 %v283, %v283
  %v348 = vpack.c.bf16 %v284, %v284
  %v349 = vpack.c.bf16 %v285, %v285
  %v350 = vpack.c.bf16 %v286, %v286
  %v351 = vpack.c.bf16 %v287, %v287
  %v352 = vpack.c.bf16 %v288, %v288
  %v353 = vpack.c.bf16 %v289, %v289
  %v354 = vpack.c.bf16 %v290, %v290
  %v355 = vpack.c.bf16 %v291, %v291
  %v356 = vpack.c.bf16 %v292, %v292
  %v357 = vpack.c.bf16 %v293, %v293
  %v358 = vpack.c.bf16 %v294, %v294
  %v359 = vpack.c.bf16 %v295, %v295
  %v360 = vpack.c.bf16 %v296, %v296
  %v361 = vpack.c.bf16 %v297, %v297
  %v362 = vpack.c.bf16 %v298, %v298
  %v363 = vpack.c.bf16 %v299, %v299
  %v364 = vpack.c.bf16 %v300, %v300
  %v365 = vpack.c.bf16 %v301, %v301
  %v366 = vpack.c.bf16 %v302, %v302
  %v367 = vpack.c.bf16 %v303, %v303
  %v368 = vpack.c.bf16 %v304, %v304
  %v369 = vpack.c.bf16 %v305, %v305
  %v370 = vpack.c.bf16 %v306, %v306
  %v371 = vpack.c.bf16 %v307, %v307
  %v372 = vpack.c.bf16 %v308, %v308
  %v373 = vpack.c.bf16 %v309, %v309
  %v374 = vpack.c.bf16 %v310, %v310
  %v375 = vpack.c.bf16 %v311, %v311
  %v376 = vpack.c.bf16 %v312, %v312
  %v377 = vpack.c.bf16 %v313, %v313
  %v378 = vpack.c.bf16 %v314, %v314
  %v379 = vpack.c.bf16 %v315, %v315
  %v380 = vpack.c.bf16 %v316, %v316
  %v381 = vpack.c.bf16 %v317, %v317
  %v382 = vpack.c.bf16 %v318, %v318
  %v383 = vpack.c.bf16 %v319, %v319
  %v384 = vpack.c.bf16 %v320, %v320
  %v385 = vpack.c.bf16 %v321, %v321
  %v386 = vpack.c.bf16 %v322, %v322
  %v387 = vpack.c.bf16 %v323, %v323
  %v388 = vpack.c.bf16 %v324, %v324
  %v389 = vpack.c.bf16 %v325, %v325
  %v390 = vpack.c.bf16 %v326, %v326
  %v391 = vpack.c.bf16 %v327, %v327
  %v392 = vpack.c.bf16 %v328, %v328
  %v393 = vpack.c.bf16 %v329, %v329
  %v394 = vpack.c.bf16 %v330, %v330
  %v395 = vpack.c.bf16 %v331, %v331
  %v396 = vpack.c.bf16 %v332, %v332
  %v397 = vpack.c.bf16 %v333, %v333
  %v398 = vpack.c.bf16 %v334, %v334
  %v399 = vpack.c.bf16 %v335, %v335
  %v400 = vpack.c.bf16 %v336, %v336
  %v401 = vpack.c.bf16 %v337, %v337
  %v402 = vpack.c.bf16 %v338, %v338
  %v403 = vpack.c.bf16 %v339, %v339
  %v404 = vpack.c.bf16 %v340, %v340
  %v405 = vpack.c.bf16 %v341, %v341
  %406 = vst [vmem:[%s3] sm:$0xf] %v342
  %407 = vst [vmem:[%s3 + $0x4] sm:$0xf] %v343
  %408 = vst [vmem:[%s3 + $0x8] sm:$0xf] %v344
  %409 = vst [vmem:[%s3 + $0xc] sm:$0xf] %v345
  %410 = vst [vmem:[%s3 + $0x10] sm:$0xf] %v346
  %411 = vst [vmem:[%s3 + $0x14] sm:$0xf] %v347
  %412 = vst [vmem:[%s3 + $0x18] sm:$0xf] %v348
  %413 = vst [vmem:[%s3 + $0x1c] sm:$0xf] %v349
  %414 = vst [vmem:[%s3 + $0x20] sm:$0xf] %v350
  %415 = vst [vmem:[%s3 + $0x24] sm:$0xf] %v351
  %416 = vst [vmem:[%s3 + $0x28] sm:$0xf] %v352
  %417 = vst [vmem:[%s3 + $0x2c] sm:$0xf] %v353
  %418 = vst [vmem:[%s3 + $0x30] sm:$0xf] %v354
  %419 = vst [vmem:[%s3 + $0x34] sm:$0xf] %v355
  %420 = vst [vmem:[%s3 + $0x38] sm:$0xf] %v356
  %421 = vst [vmem:[%s3 + $0x3c] sm:$0xf] %v357
  %422 = vst [vmem:[%s3 + $0x40] sm:$0xf] %v358
  %423 = vst [vmem:[%s3 + $0x44] sm:$0xf] %v359
  %424 = vst [vmem:[%s3 + $0x48] sm:$0xf] %v360
  %425 = vst [vmem:[%s3 + $0x4c] sm:$0xf] %v361
  %426 = vst [vmem:[%s3 + $0x50] sm:$0xf] %v362
  %427 = vst [vmem:[%s3 + $0x54] sm:$0xf] %v363
  %428 = vst [vmem:[%s3 + $0x58] sm:$0xf] %v364
  %429 = vst [vmem:[%s3 + $0x5c] sm:$0xf] %v365
  %430 = vst [vmem:[%s3 + $0x60] sm:$0xf] %v366
  %431 = vst [vmem:[%s3 + $0x64] sm:$0xf] %v367
  %432 = vst [vmem:[%s3 + $0x68] sm:$0xf] %v368
  %433 = vst [vmem:[%s3 + $0x6c] sm:$0xf] %v369
  %434 = vst [vmem:[%s3 + $0x70] sm:$0xf] %v370
  %435 = vst [vmem:[%s3 + $0x74] sm:$0xf] %v371
  %436 = vst [vmem:[%s3 + $0x78] sm:$0xf] %v372
  %437 = vst [vmem:[%s3 + $0x7c] sm:$0xf] %v373
  %438 = vst [vmem:[%s3 + $0x80] sm:$0xf] %v374
  %439 = vst [vmem:[%s3 + $0x84] sm:$0xf] %v375
  %440 = vst [vmem:[%s3 + $0x88] sm:$0xf] %v376
  %441 = vst [vmem:[%s3 + $0x8c] sm:$0xf] %v377
  %442 = vst [vmem:[%s3 + $0x90] sm:$0xf] %v378
  %443 = vst [vmem:[%s3 + $0x94] sm:$0xf] %v379
  %444 = vst [vmem:[%s3 + $0x98] sm:$0xf] %v380
  %445 = vst [vmem:[%s3 + $0x9c] sm:$0xf] %v381
  %446 = vst [vmem:[%s3 + $0xa0] sm:$0xf] %v382
  %447 = vst [vmem:[%s3 + $0xa4] sm:$0xf] %v383
  %448 = vst [vmem:[%s3 + $0xa8] sm:$0xf] %v384
  %449 = vst [vmem:[%s3 + $0xac] sm:$0xf] %v385
  %450 = vst [vmem:[%s3 + $0xb0] sm:$0xf] %v386
  %451 = vst [vmem:[%s3 + $0xb4] sm:$0xf] %v387
  %452 = vst [vmem:[%s3 + $0xb8] sm:$0xf] %v388
  %453 = vst [vmem:[%s3 + $0xbc] sm:$0xf] %v389
  %454 = vst [vmem:[%s3 + $0xc0] sm:$0xf] %v390
  %455 = vst [vmem:[%s3 + $0xc4] sm:$0xf] %v391
  %456 = vst [vmem:[%s3 + $0xc8] sm:$0xf] %v392
  %457 = vst [vmem:[%s3 + $0xcc] sm:$0xf] %v393
  %458 = vst [vmem:[%s3 + $0xd0] sm:$0xf] %v394
  %459 = vst [vmem:[%s3 + $0xd4] sm:$0xf] %v395
  %460 = vst [vmem:[%s3 + $0xd8] sm:$0xf] %v396
  %461 = vst [vmem:[%s3 + $0xdc] sm:$0xf] %v397
  %462 = vst [vmem:[%s3 + $0xe0] sm:$0xf] %v398
  %463 = vst [vmem:[%s3 + $0xe4] sm:$0xf] %v399
  %464 = vst [vmem:[%s3 + $0xe8] sm:$0xf] %v400
  %465 = vst [vmem:[%s3 + $0xec] sm:$0xf] %v401
  %466 = vst [vmem:[%s3 + $0xf0] sm:$0xf] %v402
  %467 = vst [vmem:[%s3 + $0xf4] sm:$0xf] %v403
  %468 = vst [vmem:[%s3 + $0xf8] sm:$0xf] %v404
  %469 = vst [vmem:[%s3 + $0xfc] sm:$0xf] %v405
  // Predicated region
  $region14: #{basic_block_forward.6} parent=0 // pred_check
    _
  $region15: #{basic_block_forward.6} parent=0 // pred_check_branch
    %471 = sbr.rel (0) target = $region17
  $region16: #{basic_block_forward.6} parent=0 // pred_region
    _
  $region17: #{basic_block_forward.6} parent=0 // pred_fallthru
    _
  // Predicated region
  $region18: #{basic_block_forward.6} parent=0 // pred_check
    _
  $region19: #{basic_block_forward.6} parent=0 // pred_check_branch
    %473 = sbr.rel (0) target = $region21
  $region20: #{basic_block_forward.6} parent=0 // pred_region
    _
  $region21: #{basic_block_forward.6} parent=0 // pred_fallthru
    _

// kernel: basic_block_forward.8
$region0: #{basic_block_forward.8}
  #allocation0 [shape = 'u32[]', space=smem, size = 0x4, offset = 0x4, fixed_abs, tag = 'smem constant byte address 0x4 - core index']
  #allocation1 [shape = 'u32[72,128]{1,0:T(1,128)}', space=vmem, size = 0x9000, scoped, tag = 'internal scratch']
  %s0 = inlined_call_operand.vmem [shape: bf16[512,128], index: 0, kind: input, shape index: {}]
  %s1 = inlined_call_operand.vmem [shape: bf16[128,128], index: 1, kind: input, shape index: {}]
  %s2 = inlined_call_operand.vmem [shape: f32[8,128], index: 2, kind: output, shape index: {}]
  %s3 = sld [smem:[#allocation0]]
  $region18: #{basic_block_forward.8} parent=0
    _
  %s5 = ssub.s32 1, %s3
  %s6 = scalar_select 0, %s5, %s3
  // Predicated region
  $region2: #{basic_block_forward.8} parent=0 // pred_check
    _
  $region3: #{basic_block_forward.8} parent=0 // pred_check_branch
    %8 = sbr.rel (0) target = $region5
  $region4: #{basic_block_forward.8} parent=0 // pred_region
    _
  $region5: #{basic_block_forward.8} parent=0 // pred_fallthru
    _
  // Predicated region
  $region6: #{basic_block_forward.8} parent=0 // pred_check
    _
  $region7: #{basic_block_forward.8} parent=0 // pred_check_branch
    %10 = sbr.rel (0) target = $region9
  $region8: #{basic_block_forward.8} parent=0 // pred_region
    _
  $region9: #{basic_block_forward.8} parent=0 // pred_fallthru
    _
  %v11 = vld [vmem:[%s0] sm:$0xf]
  %v12 = vld [vmem:[%s0 + $0x4] sm:$0xf]
  %v13 = vld [vmem:[%s0 + $0x8] sm:$0xf]
  %v14 = vld [vmem:[%s0 + $0xc] sm:$0xf]
  %v15 = vld [vmem:[%s0 + $0x10] sm:$0xf]
  %v16 = vld [vmem:[%s0 + $0x14] sm:$0xf]
  %v17 = vld [vmem:[%s0 + $0x18] sm:$0xf]
  %v18 = vld [vmem:[%s0 + $0x1c] sm:$0xf]
  %v19 = vld [vmem:[%s0 + $0x20] sm:$0xf]
  %v20 = vld [vmem:[%s0 + $0x24] sm:$0xf]
  %v21 = vld [vmem:[%s0 + $0x28] sm:$0xf]
  %v22 = vld [vmem:[%s0 + $0x2c] sm:$0xf]
  %v23 = vld [vmem:[%s0 + $0x30] sm:$0xf]
  %v24 = vld [vmem:[%s0 + $0x34] sm:$0xf]
  %v25 = vld [vmem:[%s0 + $0x38] sm:$0xf]
  %v26 = vld [vmem:[%s0 + $0x3c] sm:$0xf]
  %v27 = vld [vmem:[%s0 + $0x40] sm:$0xf]
  %v28 = vld [vmem:[%s0 + $0x44] sm:$0xf]
  %v29 = vld [vmem:[%s0 + $0x48] sm:$0xf]
  %v30 = vld [vmem:[%s0 + $0x4c] sm:$0xf]
  %v31 = vld [vmem:[%s0 + $0x50] sm:$0xf]
  %v32 = vld [vmem:[%s0 + $0x54] sm:$0xf]
  %v33 = vld [vmem:[%s0 + $0x58] sm:$0xf]
  %v34 = vld [vmem:[%s0 + $0x5c] sm:$0xf]
  %v35 = vld [vmem:[%s0 + $0x60] sm:$0xf]
  %v36 = vld [vmem:[%s0 + $0x64] sm:$0xf]
  %v37 = vld [vmem:[%s0 + $0x68] sm:$0xf]
  %v38 = vld [vmem:[%s0 + $0x6c] sm:$0xf]
  %v39 = vld [vmem:[%s0 + $0x70] sm:$0xf]
  %v40 = vld [vmem:[%s0 + $0x74] sm:$0xf]
  %v41 = vld [vmem:[%s0 + $0x78] sm:$0xf]
  %v42 = vld [vmem:[%s0 + $0x7c] sm:$0xf]
  %v43 = vld [vmem:[%s0 + $0x80] sm:$0xf]
  %v44 = vld [vmem:[%s0 + $0x84] sm:$0xf]
  %v45 = vld [vmem:[%s0 + $0x88] sm:$0xf]
  %v46 = vld [vmem:[%s0 + $0x8c] sm:$0xf]
  %v47 = vld [vmem:[%s0 + $0x90] sm:$0xf]
  %v48 = vld [vmem:[%s0 + $0x94] sm:$0xf]
  %v49 = vld [vmem:[%s0 + $0x98] sm:$0xf]
  %v50 = vld [vmem:[%s0 + $0x9c] sm:$0xf]
  %v51 = vld [vmem:[%s0 + $0xa0] sm:$0xf]
  %v52 = vld [vmem:[%s0 + $0xa4] sm:$0xf]
  %v53 = vld [vmem:[%s0 + $0xa8] sm:$0xf]
  %v54 = vld [vmem:[%s0 + $0xac] sm:$0xf]
  %v55 = vld [vmem:[%s0 + $0xb0] sm:$0xf]
  %v56 = vld [vmem:[%s0 + $0xb4] sm:$0xf]
  %v57 = vld [vmem:[%s0 + $0xb8] sm:$0xf]
  %v58 = vld [vmem:[%s0 + $0xbc] sm:$0xf]
  %v59 = vld [vmem:[%s0 + $0xc0] sm:$0xf]
  %v60 = vld [vmem:[%s0 + $0xc4] sm:$0xf]
  %v61 = vld [vmem:[%s0 + $0xc8] sm:$0xf]
  %v62 = vld [vmem:[%s0 + $0xcc] sm:$0xf]
  %v63 = vld [vmem:[%s0 + $0xd0] sm:$0xf]
  %v64 = vld [vmem:[%s0 + $0xd4] sm:$0xf]
  %v65 = vld [vmem:[%s0 + $0xd8] sm:$0xf]
  %v66 = vld [vmem:[%s0 + $0xdc] sm:$0xf]
  %v67 = vld [vmem:[%s0 + $0xe0] sm:$0xf]
  %v68 = vld [vmem:[%s0 + $0xe4] sm:$0xf]
  %v69 = vld [vmem:[%s0 + $0xe8] sm:$0xf]
  %v70 = vld [vmem:[%s0 + $0xec] sm:$0xf]
  %v71 = vld [vmem:[%s0 + $0xf0] sm:$0xf]
  %v72 = vld [vmem:[%s0 + $0xf4] sm:$0xf]
  %v73 = vld [vmem:[%s0 + $0xf8] sm:$0xf]
  %v74 = vld [vmem:[%s0 + $0xfc] sm:$0xf]
  %v75 = vld [vmem:[%s1] sm:$0xf]
  %v76 = vld [vmem:[%s1 + $0x4] sm:$0xf]
  %v77 = vld [vmem:[%s1 + $0x8] sm:$0xf]
  %v78 = vld [vmem:[%s1 + $0xc] sm:$0xf]
  %v79 = vld [vmem:[%s1 + $0x10] sm:$0xf]
  %v80 = vld [vmem:[%s1 + $0x14] sm:$0xf]
  %v81 = vld [vmem:[%s1 + $0x18] sm:$0xf]
  %v82 = vld [vmem:[%s1 + $0x1c] sm:$0xf]
  %v83 = vld [vmem:[%s1 + $0x20] sm:$0xf]
  %v84 = vld [vmem:[%s1 + $0x24] sm:$0xf]
  %v85 = vld [vmem:[%s1 + $0x28] sm:$0xf]
  %v86 = vld [vmem:[%s1 + $0x2c] sm:$0xf]
  %v87 = vld [vmem:[%s1 + $0x30] sm:$0xf]
  %v88 = vld [vmem:[%s1 + $0x34] sm:$0xf]
  %v89 = vld [vmem:[%s1 + $0x38] sm:$0xf]
  %v90 = vld [vmem:[%s1 + $0x3c] sm:$0xf]
  %v155 = vunpack.c.l.b16 %v11
  %v156 = vunpack.c.l.b16 %v12
  %v157 = vunpack.c.l.b16 %v13
  %v158 = vunpack.c.l.b16 %v14
  %v159 = vunpack.c.l.b16 %v15
  %v160 = vunpack.c.l.b16 %v16
  %v161 = vunpack.c.l.b16 %v17
  %v162 = vunpack.c.l.b16 %v18
  %v163 = vunpack.c.l.b16 %v19
  %v164 = vunpack.c.l.b16 %v20
  %v165 = vunpack.c.l.b16 %v21
  %v166 = vunpack.c.l.b16 %v22
  %v167 = vunpack.c.l.b16 %v23
  %v168 = vunpack.c.l.b16 %v24
  %v169 = vunpack.c.l.b16 %v25
  %v170 = vunpack.c.l.b16 %v26
  %v171 = vunpack.c.l.b16 %v27
  %v172 = vunpack.c.l.b16 %v28
  %v173 = vunpack.c.l.b16 %v29
  %v174 = vunpack.c.l.b16 %v30
  %v175 = vunpack.c.l.b16 %v31
  %v176 = vunpack.c.l.b16 %v32
  %v177 = vunpack.c.l.b16 %v33
  %v178 = vunpack.c.l.b16 %v34
  %v179 = vunpack.c.l.b16 %v35
  %v180 = vunpack.c.l.b16 %v36
  %v181 = vunpack.c.l.b16 %v37
  %v182 = vunpack.c.l.b16 %v38
  %v183 = vunpack.c.l.b16 %v39
  %v184 = vunpack.c.l.b16 %v40
  %v185 = vunpack.c.l.b16 %v41
  %v186 = vunpack.c.l.b16 %v42
  %v187 = vunpack.c.l.b16 %v43
  %v188 = vunpack.c.l.b16 %v44
  %v189 = vunpack.c.l.b16 %v45
  %v190 = vunpack.c.l.b16 %v46
  %v191 = vunpack.c.l.b16 %v47
  %v192 = vunpack.c.l.b16 %v48
  %v193 = vunpack.c.l.b16 %v49
  %v194 = vunpack.c.l.b16 %v50
  %v195 = vunpack.c.l.b16 %v51
  %v196 = vunpack.c.l.b16 %v52
  %v197 = vunpack.c.l.b16 %v53
  %v198 = vunpack.c.l.b16 %v54
  %v199 = vunpack.c.l.b16 %v55
  %v200 = vunpack.c.l.b16 %v56
  %v201 = vunpack.c.l.b16 %v57
  %v202 = vunpack.c.l.b16 %v58
  %v203 = vunpack.c.l.b16 %v59
  %v204 = vunpack.c.l.b16 %v60
  %v205 = vunpack.c.l.b16 %v61
  %v206 = vunpack.c.l.b16 %v62
  %v207 = vunpack.c.l.b16 %v63
  %v208 = vunpack.c.l.b16 %v64
  %v209 = vunpack.c.l.b16 %v65
  %v210 = vunpack.c.l.b16 %v66
  %v211 = vunpack.c.l.b16 %v67
  %v212 = vunpack.c.l.b16 %v68
  %v213 = vunpack.c.l.b16 %v69
  %v214 = vunpack.c.l.b16 %v70
  %v215 = vunpack.c.l.b16 %v71
  %v216 = vunpack.c.l.b16 %v72
  %v217 = vunpack.c.l.b16 %v73
  %v218 = vunpack.c.l.b16 %v74
  %v219 = vpack.c.b16 %v156, %v155
  %v220 = vpack.c.b16 %v158, %v157
  %v221 = vpack.c.b16 %v160, %v159
  %v222 = vpack.c.b16 %v162, %v161
  %v223 = vpack.c.b16 %v164, %v163
  %v224 = vpack.c.b16 %v166, %v165
  %v225 = vpack.c.b16 %v168, %v167
  %v226 = vpack.c.b16 %v170, %v169
  %v227 = vpack.c.b16 %v172, %v171
  %v228 = vpack.c.b16 %v174, %v173
  %v229 = vpack.c.b16 %v176, %v175
  %v230 = vpack.c.b16 %v178, %v177
  %v231 = vpack.c.b16 %v180, %v179
  %v232 = vpack.c.b16 %v182, %v181
  %v233 = vpack.c.b16 %v184, %v183
  %v234 = vpack.c.b16 %v186, %v185
  %v235 = vpack.c.b16 %v188, %v187
  %v236 = vpack.c.b16 %v190, %v189
  %v237 = vpack.c.b16 %v192, %v191
  %v238 = vpack.c.b16 %v194, %v193
  %v239 = vpack.c.b16 %v196, %v195
  %v240 = vpack.c.b16 %v198, %v197
  %v241 = vpack.c.b16 %v200, %v199
  %v242 = vpack.c.b16 %v202, %v201
  %v243 = vpack.c.b16 %v204, %v203
  %v244 = vpack.c.b16 %v206, %v205
  %v245 = vpack.c.b16 %v208, %v207
  %v246 = vpack.c.b16 %v210, %v209
  %v247 = vpack.c.b16 %v212, %v211
  %v248 = vpack.c.b16 %v214, %v213
  %v249 = vpack.c.b16 %v216, %v215
  %v250 = vpack.c.b16 %v218, %v217
  %v299 = vunpack.c.l.b16 %v75
  %v300 = vunpack.c.l.b16 %v76
  %v301 = vunpack.c.l.b16 %v77
  %v302 = vunpack.c.l.b16 %v78
  %v303 = vunpack.c.l.b16 %v79
  %v304 = vunpack.c.l.b16 %v80
  %v305 = vunpack.c.l.b16 %v81
  %v306 = vunpack.c.l.b16 %v82
  %v307 = vunpack.c.l.b16 %v83
  %v308 = vunpack.c.l.b16 %v84
  %v309 = vunpack.c.l.b16 %v85
  %v310 = vunpack.c.l.b16 %v86
  %v311 = vunpack.c.l.b16 %v87
  %v312 = vunpack.c.l.b16 %v88
  %v313 = vunpack.c.l.b16 %v89
  %v314 = vunpack.c.l.b16 %v90
  %v315 = vpack.c.b16 %v300, %v299
  %v316 = vpack.c.b16 %v302, %v301
  %v317 = vpack.c.b16 %v304, %v303
  %v318 = vpack.c.b16 %v306, %v305
  %v319 = vpack.c.b16 %v308, %v307
  %v320 = vpack.c.b16 %v310, %v309
  %v321 = vpack.c.b16 %v312, %v311
  %v322 = vpack.c.b16 %v314, %v313
  %331 = vmatpush.bf16.msra.mxu0 %v322
  %332 = vmatpush.bf16.msra.mxu0 %v321
  %333 = vmatpush.bf16.msra.mxu0 %v320
  %334 = vmatpush.bf16.msra.mxu0 %v319
  %335 = vmatpush.bf16.msra.mxu0 %v318
  %336 = vmatpush.bf16.msra.mxu0 %v317
  %337 = vmatpush.bf16.msra.mxu0 %v316
  %338 = vmatpush.bf16.msra.mxu0 %v315
  %339 = vmatmul.bf16.gmra.mxu0 %v219
  %v340 = vpop.f32.mrf.mxu0
  %v341 = vadd.f32 0.0, %v340
  %v342 = vpop.f32.mrf.mxu0
  %v343 = vadd.f32 0.0, %v342
  %344 = vmatmul.bf16.gmra.mxu0 %v220
  %v345 = vpop.f32.mrf.mxu0
  %v346 = vadd.f32 0.0, %v345
  %v347 = vpop.f32.mrf.mxu0
  %v348 = vadd.f32 0.0, %v347
  %349 = vmatmul.bf16.gmra.mxu0 %v221
  %v350 = vpop.f32.mrf.mxu0
  %v351 = vadd.f32 0.0, %v350
  %v352 = vpop.f32.mrf.mxu0
  %v353 = vadd.f32 0.0, %v352
  %354 = vmatmul.bf16.gmra.mxu0 %v222
  %v355 = vpop.f32.mrf.mxu0
  %v356 = vadd.f32 0.0, %v355
  %v357 = vpop.f32.mrf.mxu0
  %v358 = vadd.f32 0.0, %v357
  %359 = vmatmul.bf16.gmra.mxu0 %v223
  %v360 = vpop.f32.mrf.mxu0
  %v361 = vadd.f32 0.0, %v360
  %v362 = vpop.f32.mrf.mxu0
  %v363 = vadd.f32 0.0, %v362
  %364 = vmatmul.bf16.gmra.mxu0 %v224
  %v365 = vpop.f32.mrf.mxu0
  %v366 = vadd.f32 0.0, %v365
  %v367 = vpop.f32.mrf.mxu0
  %v368 = vadd.f32 0.0, %v367
  %369 = vmatmul.bf16.gmra.mxu0 %v225
  %v370 = vpop.f32.mrf.mxu0
  %v371 = vadd.f32 0.0, %v370
  %v372 = vpop.f32.mrf.mxu0
  %v373 = vadd.f32 0.0, %v372
  %374 = vmatmul.bf16.gmra.mxu0 %v226
  %v375 = vpop.f32.mrf.mxu0
  %v376 = vadd.f32 0.0, %v375
  %v377 = vpop.f32.mrf.mxu0
  %v378 = vadd.f32 0.0, %v377
  %379 = vmatmul.bf16.gmra.mxu0 %v227
  %v380 = vpop.f32.mrf.mxu0
  %v381 = vadd.f32 0.0, %v380
  %v382 = vpop.f32.mrf.mxu0
  %v383 = vadd.f32 0.0, %v382
  %384 = vmatmul.bf16.gmra.mxu0 %v228
  %v385 = vpop.f32.mrf.mxu0
  %v386 = vadd.f32 0.0, %v385
  %v387 = vpop.f32.mrf.mxu0
  %v388 = vadd.f32 0.0, %v387
  %389 = vmatmul.bf16.gmra.mxu0 %v229
  %v390 = vpop.f32.mrf.mxu0
  %v391 = vadd.f32 0.0, %v390
  %v392 = vpop.f32.mrf.mxu0
  %v393 = vadd.f32 0.0, %v392
  %394 = vmatmul.bf16.gmra.mxu0 %v230
  %v395 = vpop.f32.mrf.mxu0
  %v396 = vadd.f32 0.0, %v395
  %v397 = vpop.f32.mrf.mxu0
  %v398 = vadd.f32 0.0, %v397
  %399 = vmatmul.bf16.gmra.mxu0 %v231
  %v400 = vpop.f32.mrf.mxu0
  %v401 = vadd.f32 0.0, %v400
  %v402 = vpop.f32.mrf.mxu0
  %v403 = vadd.f32 0.0, %v402
  %404 = vmatmul.bf16.gmra.mxu0 %v232
  %v405 = vpop.f32.mrf.mxu0
  %v406 = vadd.f32 0.0, %v405
  %v407 = vpop.f32.mrf.mxu0
  %v408 = vadd.f32 0.0, %v407
  %409 = vmatmul.bf16.gmra.mxu0 %v233
  %v410 = vpop.f32.mrf.mxu0
  %v411 = vadd.f32 0.0, %v410
  %v412 = vpop.f32.mrf.mxu0
  %v413 = vadd.f32 0.0, %v412
  %414 = vmatmul.bf16.gmra.mxu0 %v234
  %v415 = vpop.f32.mrf.mxu0
  %v416 = vadd.f32 0.0, %v415
  %v417 = vpop.f32.mrf.mxu0
  %v418 = vadd.f32 0.0, %v417
  %419 = vmatmul.bf16.gmra.mxu0 %v235
  %v420 = vpop.f32.mrf.mxu0
  %v421 = vadd.f32 0.0, %v420
  %v422 = vpop.f32.mrf.mxu0
  %v423 = vadd.f32 0.0, %v422
  %424 = vmatmul.bf16.gmra.mxu0 %v236
  %v425 = vpop.f32.mrf.mxu0
  %v426 = vadd.f32 0.0, %v425
  %v427 = vpop.f32.mrf.mxu0
  %v428 = vadd.f32 0.0, %v427
  %429 = vmatmul.bf16.gmra.mxu0 %v237
  %v430 = vpop.f32.mrf.mxu0
  %v431 = vadd.f32 0.0, %v430
  %v432 = vpop.f32.mrf.mxu0
  %v433 = vadd.f32 0.0, %v432
  %434 = vmatmul.bf16.gmra.mxu0 %v238
  %v435 = vpop.f32.mrf.mxu0
  %v436 = vadd.f32 0.0, %v435
  %v437 = vpop.f32.mrf.mxu0
  %v438 = vadd.f32 0.0, %v437
  %439 = vmatmul.bf16.gmra.mxu0 %v239
  %v440 = vpop.f32.mrf.mxu0
  %v441 = vadd.f32 0.0, %v440
  %v442 = vpop.f32.mrf.mxu0
  %v443 = vadd.f32 0.0, %v442
  %444 = vmatmul.bf16.gmra.mxu0 %v240
  %v445 = vpop.f32.mrf.mxu0
  %v446 = vadd.f32 0.0, %v445
  %v447 = vpop.f32.mrf.mxu0
  %v448 = vadd.f32 0.0, %v447
  %449 = vmatmul.bf16.gmra.mxu0 %v241
  %v450 = vpop.f32.mrf.mxu0
  %v451 = vadd.f32 0.0, %v450
  %v452 = vpop.f32.mrf.mxu0
  %v453 = vadd.f32 0.0, %v452
  %454 = vmatmul.bf16.gmra.mxu0 %v242
  %v455 = vpop.f32.mrf.mxu0
  %v456 = vadd.f32 0.0, %v455
  %v457 = vpop.f32.mrf.mxu0
  %v458 = vadd.f32 0.0, %v457
  %459 = vmatmul.bf16.gmra.mxu0 %v243
  %v460 = vpop.f32.mrf.mxu0
  %v461 = vadd.f32 0.0, %v460
  %v462 = vpop.f32.mrf.mxu0
  %v463 = vadd.f32 0.0, %v462
  %464 = vmatmul.bf16.gmra.mxu0 %v244
  %v465 = vpop.f32.mrf.mxu0
  %v466 = vadd.f32 0.0, %v465
  %v467 = vpop.f32.mrf.mxu0
  %v468 = vadd.f32 0.0, %v467
  %469 = vmatmul.bf16.gmra.mxu0 %v245
  %v470 = vpop.f32.mrf.mxu0
  %v471 = vadd.f32 0.0, %v470
  %v472 = vpop.f32.mrf.mxu0
  %v473 = vadd.f32 0.0, %v472
  %474 = vmatmul.bf16.gmra.mxu0 %v246
  %v475 = vpop.f32.mrf.mxu0
  %v476 = vadd.f32 0.0, %v475
  %v477 = vpop.f32.mrf.mxu0
  %v478 = vadd.f32 0.0, %v477
  %479 = vmatmul.bf16.gmra.mxu0 %v247
  %v480 = vpop.f32.mrf.mxu0
  %v481 = vadd.f32 0.0, %v480
  %v482 = vpop.f32.mrf.mxu0
  %v483 = vadd.f32 0.0, %v482
  %484 = vmatmul.bf16.gmra.mxu0 %v248
  %v485 = vpop.f32.mrf.mxu0
  %v486 = vadd.f32 0.0, %v485
  %v487 = vpop.f32.mrf.mxu0
  %v488 = vadd.f32 0.0, %v487
  %489 = vmatmul.bf16.gmra.mxu0 %v249
  %v490 = vpop.f32.mrf.mxu0
  %v491 = vadd.f32 0.0, %v490
  %v492 = vpop.f32.mrf.mxu0
  %v493 = vadd.f32 0.0, %v492
  %494 = vmatmul.bf16.gmra.mxu0 %v250
  %v495 = vpop.f32.mrf.mxu0
  %v496 = vadd.f32 0.0, %v495
  %v497 = vpop.f32.mrf.mxu0
  %v498 = vadd.f32 0.0, %v497
  %499 = vdwg.mxu0
  %v500 = vadd.f32 %v341, %v343
  %v501 = vadd.f32 %v500, %v346
  %v502 = vadd.f32 %v501, %v348
  %v503 = vadd.f32 %v502, %v351
  %v504 = vadd.f32 %v503, %v353
  %v505 = vadd.f32 %v504, %v356
  %v506 = vadd.f32 %v505, %v358
  %v507 = vadd.f32 %v506, %v361
  %v508 = vadd.f32 %v507, %v363
  %v509 = vadd.f32 %v508, %v366
  %v510 = vadd.f32 %v509, %v368
  %v511 = vadd.f32 %v510, %v371
  %v512 = vadd.f32 %v511, %v373
  %v513 = vadd.f32 %v512, %v376
  %v514 = vadd.f32 %v513, %v378
  %v515 = vadd.f32 %v514, %v381
  %v516 = vadd.f32 %v515, %v383
  %v517 = vadd.f32 %v516, %v386
  %v518 = vadd.f32 %v517, %v388
  %v519 = vadd.f32 %v518, %v391
  %v520 = vadd.f32 %v519, %v393
  %v521 = vadd.f32 %v520, %v396
  %v522 = vadd.f32 %v521, %v398
  %v523 = vadd.f32 %v522, %v401
  %v524 = vadd.f32 %v523, %v403
  %v525 = vadd.f32 %v524, %v406
  %v526 = vadd.f32 %v525, %v408
  %v527 = vadd.f32 %v526, %v411
  %v528 = vadd.f32 %v527, %v413
  %v529 = vadd.f32 %v528, %v416
  %v530 = vadd.f32 %v529, %v418
  %v531 = vadd.f32 %v530, %v421
  %v532 = vadd.f32 %v531, %v423
  %v533 = vadd.f32 %v532, %v426
  %v534 = vadd.f32 %v533, %v428
  %v535 = vadd.f32 %v534, %v431
  %v536 = vadd.f32 %v535, %v433
  %v537 = vadd.f32 %v536, %v436
  %v538 = vadd.f32 %v537, %v438
  %v539 = vadd.f32 %v538, %v441
  %v540 = vadd.f32 %v539, %v443
  %v541 = vadd.f32 %v540, %v446
  %v542 = vadd.f32 %v541, %v448
  %v543 = vadd.f32 %v542, %v451
  %v544 = vadd.f32 %v543, %v453
  %v545 = vadd.f32 %v544, %v456
  %v546 = vadd.f32 %v545, %v458
  %v547 = vadd.f32 %v546, %v461
  %v548 = vadd.f32 %v547, %v463
  %v549 = vadd.f32 %v548, %v466
  %v550 = vadd.f32 %v549, %v468
  %v551 = vadd.f32 %v550, %v471
  %v552 = vadd.f32 %v551, %v473
  %v553 = vadd.f32 %v552, %v476
  %v554 = vadd.f32 %v553, %v478
  %v555 = vadd.f32 %v554, %v481
  %v556 = vadd.f32 %v555, %v483
  %v557 = vadd.f32 %v556, %v486
  %v558 = vadd.f32 %v557, %v488
  %v559 = vadd.f32 %v558, %v491
  %v560 = vadd.f32 %v559, %v493
  %v561 = vadd.f32 %v560, %v496
  %v562 = vadd.f32 %v561, %v498
  %v563 = vrot.slane %v562, 4
  %v564 = vadd.f32 %v562, %v563
  %v565 = vrot.slane %v564, 2
  %v566 = vadd.f32 %v564, %v565
  %v567 = vrot.slane %v566, 1
  %v568 = vadd.f32 %v566, %v567
  %v569 = vmul.f32 %v341, %v341
  %v570 = vmul.f32 %v343, %v343
  %v571 = vmul.f32 %v346, %v346
  %v572 = vmul.f32 %v348, %v348
  %v573 = vmul.f32 %v351, %v351
  %v574 = vmul.f32 %v353, %v353
  %v575 = vmul.f32 %v356, %v356
  %v576 = vmul.f32 %v358, %v358
  %v577 = vmul.f32 %v361, %v361
  %v578 = vmul.f32 %v363, %v363
  %v579 = vmul.f32 %v366, %v366
  %v580 = vmul.f32 %v368, %v368
  %v581 = vmul.f32 %v371, %v371
  %v582 = vmul.f32 %v373, %v373
  %v583 = vmul.f32 %v376, %v376
  %v584 = vmul.f32 %v378, %v378
  %v585 = vmul.f32 %v381, %v381
  %v586 = vmul.f32 %v383, %v383
  %v587 = vmul.f32 %v386, %v386
  %v588 = vmul.f32 %v388, %v388
  %v589 = vmul.f32 %v391, %v391
  %v590 = vmul.f32 %v393, %v393
  %v591 = vmul.f32 %v396, %v396
  %v592 = vmul.f32 %v398, %v398
  %v593 = vmul.f32 %v401, %v401
  %v594 = vmul.f32 %v403, %v403
  %v595 = vmul.f32 %v406, %v406
  %v596 = vmul.f32 %v408, %v408
  %v597 = vmul.f32 %v411, %v411
  %v598 = vmul.f32 %v413, %v413
  %v599 = vmul.f32 %v416, %v416
  %v600 = vmul.f32 %v418, %v418
  %v601 = vmul.f32 %v421, %v421
  %v602 = vmul.f32 %v423, %v423
  %v603 = vmul.f32 %v426, %v426
  %v604 = vmul.f32 %v428, %v428
  %v605 = vmul.f32 %v431, %v431
  %v606 = vmul.f32 %v433, %v433
  %v607 = vmul.f32 %v436, %v436
  %v608 = vmul.f32 %v438, %v438
  %v609 = vmul.f32 %v441, %v441
  %v610 = vmul.f32 %v443, %v443
  %v611 = vmul.f32 %v446, %v446
  %v612 = vmul.f32 %v448, %v448
  %v613 = vmul.f32 %v451, %v451
  %v614 = vmul.f32 %v453, %v453
  %v615 = vmul.f32 %v456, %v456
  %v616 = vmul.f32 %v458, %v458
  %v617 = vmul.f32 %v461, %v461
  %v618 = vmul.f32 %v463, %v463
  %v619 = vmul.f32 %v466, %v466
  %v620 = vmul.f32 %v468, %v468
  %v621 = vmul.f32 %v471, %v471
  %v622 = vmul.f32 %v473, %v473
  %v623 = vmul.f32 %v476, %v476
  %v624 = vmul.f32 %v478, %v478
  %v625 = vmul.f32 %v481, %v481
  %v626 = vmul.f32 %v483, %v483
  %v627 = vmul.f32 %v486, %v486
  %v628 = vmul.f32 %v488, %v488
  %v629 = vmul.f32 %v491, %v491
  %v630 = vmul.f32 %v493, %v493
  %v631 = vmul.f32 %v496, %v496
  %v632 = vmul.f32 %v498, %v498
  %v633 = vadd.f32 %v569, %v570
  %v634 = vadd.f32 %v633, %v571
  %v635 = vadd.f32 %v634, %v572
  %v636 = vadd.f32 %v635, %v573
  %v637 = vadd.f32 %v636, %v574
  %v638 = vadd.f32 %v637, %v575
  %v639 = vadd.f32 %v638, %v576
  %v640 = vadd.f32 %v639, %v577
  %v641 = vadd.f32 %v640, %v578
  %v642 = vadd.f32 %v641, %v579
  %v643 = vadd.f32 %v642, %v580
  %v644 = vadd.f32 %v643, %v581
  %v645 = vadd.f32 %v644, %v582
  %v646 = vadd.f32 %v645, %v583
  %v647 = vadd.f32 %v646, %v584
  %v648 = vadd.f32 %v647, %v585
  %v649 = vadd.f32 %v648, %v586
  %v650 = vadd.f32 %v649, %v587
  %v651 = vadd.f32 %v650, %v588
  %v652 = vadd.f32 %v651, %v589
  %v653 = vadd.f32 %v652, %v590
  %v654 = vadd.f32 %v653, %v591
  %v655 = vadd.f32 %v654, %v592
  %v656 = vadd.f32 %v655, %v593
  %v657 = vadd.f32 %v656, %v594
  %v658 = vadd.f32 %v657, %v595
  %v659 = vadd.f32 %v658, %v596
  %v660 = vadd.f32 %v659, %v597
  %v661 = vadd.f32 %v660, %v598
  %v662 = vadd.f32 %v661, %v599
  %v663 = vadd.f32 %v662, %v600
  %v664 = vadd.f32 %v663, %v601
  %v665 = vadd.f32 %v664, %v602
  %v666 = vadd.f32 %v665, %v603
  %v667 = vadd.f32 %v666, %v604
  %v668 = vadd.f32 %v667, %v605
  %v669 = vadd.f32 %v668, %v606
  %v670 = vadd.f32 %v669, %v607
  %v671 = vadd.f32 %v670, %v608
  %v672 = vadd.f32 %v671, %v609
  %v673 = vadd.f32 %v672, %v610
  %v674 = vadd.f32 %v673, %v611
  %v675 = vadd.f32 %v674, %v612
  %v676 = vadd.f32 %v675, %v613
  %v677 = vadd.f32 %v676, %v614
  %v678 = vadd.f32 %v677, %v615
  %v679 = vadd.f32 %v678, %v616
  %v680 = vadd.f32 %v679, %v617
  %v681 = vadd.f32 %v680, %v618
  %v682 = vadd.f32 %v681, %v619
  %v683 = vadd.f32 %v682, %v620
  %v684 = vadd.f32 %v683, %v621
  %v685 = vadd.f32 %v684, %v622
  %v686 = vadd.f32 %v685, %v623
  %v687 = vadd.f32 %v686, %v624
  %v688 = vadd.f32 %v687, %v625
  %v689 = vadd.f32 %v688, %v626
  %v690 = vadd.f32 %v689, %v627
  %v691 = vadd.f32 %v690, %v628
  %v692 = vadd.f32 %v691, %v629
  %v693 = vadd.f32 %v692, %v630
  %v694 = vadd.f32 %v693, %v631
  %v695 = vadd.f32 %v694, %v632
  %v696 = vrot.slane %v695, 4
  %v697 = vadd.f32 %v695, %v696
  %v698 = vrot.slane %v697, 2
  %v699 = vadd.f32 %v697, %v698
  %v700 = vrot.slane %v699, 1
  %v701 = vadd.f32 %v699, %v700
  %v702 = vlaneseq
  %v703 = vshrl.u32 %v702, 7
  %vm704 = vcmp.eq.s32.totalorder %v703, 0
  %vm705 = vcmp.eq.s32.totalorder %v703, 1
  %v706 = vsel %vm705, %v701, 0.0
  %v707 = vsel %vm704, %v568, %v706
  %708 = vst [vmem:[%s2] sm:$0xff] %v707
  // Predicated region
  $region10: #{basic_block_forward.8} parent=0 // pred_check
    _
  $region11: #{basic_block_forward.8} parent=0 // pred_check_branch
    %710 = sbr.rel (0) target = $region13
  $region12: #{basic_block_forward.8} parent=0 // pred_region
    _
  $region13: #{basic_block_forward.8} parent=0 // pred_fallthru
    _
  // Predicated region
  $region14: #{basic_block_forward.8} parent=0 // pred_check
    _
  $region15: #{basic_block_forward.8} parent=0 // pred_check_branch
    %712 = sbr.rel (0) target = $region17
  $region16: #{basic_block_forward.8} parent=0 // pred_region
    _
  $region17: #{basic_block_forward.8} parent=0 // pred_fallthru
    _

// kernel: basic_block_forward.9
$region0: #{basic_block_forward.9}
  #allocation0 [shape = 'u32[]', space=smem, size = 0x4, offset = 0x4, fixed_abs, tag = 'smem constant byte address 0x4 - core index']
  #allocation1 [shape = 'u32[72,128]{1,0:T(1,128)}', space=vmem, size = 0x9000, scoped, tag = 'internal scratch']
  %s0 = inlined_call_operand.vmem [shape: bf16[512,128], index: 0, kind: input, shape index: {}]
  %s1 = inlined_call_operand.vmem [shape: f32[1,128], index: 1, kind: input, shape index: {}]
  %s2 = inlined_call_operand.vmem [shape: f32[1,128], index: 2, kind: input, shape index: {}]
  %s3 = inlined_call_operand.vmem [shape: bf16[512,128], index: 3, kind: input, shape index: {}]
  %s4 = inlined_call_operand.vmem [shape: bf16[128,128], index: 4, kind: input, shape index: {}]
  %s5 = inlined_call_operand.vmem [shape: f32[1,128], index: 5, kind: input, shape index: {}]
  %s6 = inlined_call_operand.vmem [shape: f32[1,128], index: 6, kind: input, shape index: {}]
  %s7 = inlined_call_operand.vmem [shape: f32[512,128], index: 7, kind: output, shape index: {}]
  %s8 = sld [smem:[#allocation0]]
  $region38: #{basic_block_forward.9} parent=0
    _
  %s10 = ssub.s32 1, %s8
  %s11 = scalar_select 0, %s10, %s8
  // Predicated region
  $region2: #{basic_block_forward.9} parent=0 // pred_check
    _
  $region3: #{basic_block_forward.9} parent=0 // pred_check_branch
    %13 = sbr.rel (0) target = $region5
  $region4: #{basic_block_forward.9} parent=0 // pred_region
    _
  $region5: #{basic_block_forward.9} parent=0 // pred_fallthru
    _
  // Predicated region
  $region6: #{basic_block_forward.9} parent=0 // pred_check
    _
  $region7: #{basic_block_forward.9} parent=0 // pred_check_branch
    %15 = sbr.rel (0) target = $region9
  $region8: #{basic_block_forward.9} parent=0 // pred_region
    _
  $region9: #{basic_block_forward.9} parent=0 // pred_fallthru
    _
  // Predicated region
  $region10: #{basic_block_forward.9} parent=0 // pred_check
    _
  $region11: #{basic_block_forward.9} parent=0 // pred_check_branch
    %17 = sbr.rel (0) target = $region13
  $region12: #{basic_block_forward.9} parent=0 // pred_region
    _
  $region13: #{basic_block_forward.9} parent=0 // pred_fallthru
    _
  // Predicated region
  $region14: #{basic_block_forward.9} parent=0 // pred_check
    _
  $region15: #{basic_block_forward.9} parent=0 // pred_check_branch
    %19 = sbr.rel (0) target = $region17
  $region16: #{basic_block_forward.9} parent=0 // pred_region
    _
  $region17: #{basic_block_forward.9} parent=0 // pred_fallthru
    _
  // Predicated region
  $region18: #{basic_block_forward.9} parent=0 // pred_check
    _
  $region19: #{basic_block_forward.9} parent=0 // pred_check_branch
    %21 = sbr.rel (0) target = $region21
  $region20: #{basic_block_forward.9} parent=0 // pred_region
    _
  $region21: #{basic_block_forward.9} parent=0 // pred_fallthru
    _
  // Predicated region
  $region22: #{basic_block_forward.9} parent=0 // pred_check
    _
  $region23: #{basic_block_forward.9} parent=0 // pred_check_branch
    %23 = sbr.rel (0) target = $region25
  $region24: #{basic_block_forward.9} parent=0 // pred_region
    _
  $region25: #{basic_block_forward.9} parent=0 // pred_fallthru
    _
  // Predicated region
  $region26: #{basic_block_forward.9} parent=0 // pred_check
    _
  $region27: #{basic_block_forward.9} parent=0 // pred_check_branch
    %25 = sbr.rel (0) target = $region29
  $region28: #{basic_block_forward.9} parent=0 // pred_region
    _
  $region29: #{basic_block_forward.9} parent=0 // pred_fallthru
    _
  %v26 = vld [vmem:[%s0] sm:$0xf]
  %v27 = vld [vmem:[%s0 + $0x4] sm:$0xf]
  %v28 = vld [vmem:[%s0 + $0x8] sm:$0xf]
  %v29 = vld [vmem:[%s0 + $0xc] sm:$0xf]
  %v30 = vld [vmem:[%s0 + $0x10] sm:$0xf]
  %v31 = vld [vmem:[%s0 + $0x14] sm:$0xf]
  %v32 = vld [vmem:[%s0 + $0x18] sm:$0xf]
  %v33 = vld [vmem:[%s0 + $0x1c] sm:$0xf]
  %v34 = vld [vmem:[%s0 + $0x20] sm:$0xf]
  %v35 = vld [vmem:[%s0 + $0x24] sm:$0xf]
  %v36 = vld [vmem:[%s0 + $0x28] sm:$0xf]
  %v37 = vld [vmem:[%s0 + $0x2c] sm:$0xf]
  %v38 = vld [vmem:[%s0 + $0x30] sm:$0xf]
  %v39 = vld [vmem:[%s0 + $0x34] sm:$0xf]
  %v40 = vld [vmem:[%s0 + $0x38] sm:$0xf]
  %v41 = vld [vmem:[%s0 + $0x3c] sm:$0xf]
  %v42 = vld [vmem:[%s0 + $0x40] sm:$0xf]
  %v43 = vld [vmem:[%s0 + $0x44] sm:$0xf]
  %v44 = vld [vmem:[%s0 + $0x48] sm:$0xf]
  %v45 = vld [vmem:[%s0 + $0x4c] sm:$0xf]
  %v46 = vld [vmem:[%s0 + $0x50] sm:$0xf]
  %v47 = vld [vmem:[%s0 + $0x54] sm:$0xf]
  %v48 = vld [vmem:[%s0 + $0x58] sm:$0xf]
  %v49 = vld [vmem:[%s0 + $0x5c] sm:$0xf]
  %v50 = vld [vmem:[%s0 + $0x60] sm:$0xf]
  %v51 = vld [vmem:[%s0 + $0x64] sm:$0xf]
  %v52 = vld [vmem:[%s0 + $0x68] sm:$0xf]
  %v53 = vld [vmem:[%s0 + $0x6c] sm:$0xf]
  %v54 = vld [vmem:[%s0 + $0x70] sm:$0xf]
  %v55 = vld [vmem:[%s0 + $0x74] sm:$0xf]
  %v56 = vld [vmem:[%s0 + $0x78] sm:$0xf]
  %v57 = vld [vmem:[%s0 + $0x7c] sm:$0xf]
  %v58 = vld [vmem:[%s0 + $0x80] sm:$0xf]
  %v59 = vld [vmem:[%s0 + $0x84] sm:$0xf]
  %v60 = vld [vmem:[%s0 + $0x88] sm:$0xf]
  %v61 = vld [vmem:[%s0 + $0x8c] sm:$0xf]
  %v62 = vld [vmem:[%s0 + $0x90] sm:$0xf]
  %v63 = vld [vmem:[%s0 + $0x94] sm:$0xf]
  %v64 = vld [vmem:[%s0 + $0x98] sm:$0xf]
  %v65 = vld [vmem:[%s0 + $0x9c] sm:$0xf]
  %v66 = vld [vmem:[%s0 + $0xa0] sm:$0xf]
  %v67 = vld [vmem:[%s0 + $0xa4] sm:$0xf]
  %v68 = vld [vmem:[%s0 + $0xa8] sm:$0xf]
  %v69 = vld [vmem:[%s0 + $0xac] sm:$0xf]
  %v70 = vld [vmem:[%s0 + $0xb0] sm:$0xf]
  %v71 = vld [vmem:[%s0 + $0xb4] sm:$0xf]
  %v72 = vld [vmem:[%s0 + $0xb8] sm:$0xf]
  %v73 = vld [vmem:[%s0 + $0xbc] sm:$0xf]
  %v74 = vld [vmem:[%s0 + $0xc0] sm:$0xf]
  %v75 = vld [vmem:[%s0 + $0xc4] sm:$0xf]
  %v76 = vld [vmem:[%s0 + $0xc8] sm:$0xf]
  %v77 = vld [vmem:[%s0 + $0xcc] sm:$0xf]
  %v78 = vld [vmem:[%s0 + $0xd0] sm:$0xf]
  %v79 = vld [vmem:[%s0 + $0xd4] sm:$0xf]
  %v80 = vld [vmem:[%s0 + $0xd8] sm:$0xf]
  %v81 = vld [vmem:[%s0 + $0xdc] sm:$0xf]
  %v82 = vld [vmem:[%s0 + $0xe0] sm:$0xf]
  %v83 = vld [vmem:[%s0 + $0xe4] sm:$0xf]
  %v84 = vld [vmem:[%s0 + $0xe8] sm:$0xf]
  %v85 = vld [vmem:[%s0 + $0xec] sm:$0xf]
  %v86 = vld [vmem:[%s0 + $0xf0] sm:$0xf]
  %v87 = vld [vmem:[%s0 + $0xf4] sm:$0xf]
  %v88 = vld [vmem:[%s0 + $0xf8] sm:$0xf]
  %v89 = vld [vmem:[%s0 + $0xfc] sm:$0xf]
  %v90 = vunpack.c.l.bf16 %v26
  %v91 = vunpack.c.l.bf16 %v27
  %v92 = vunpack.c.l.bf16 %v28
  %v93 = vunpack.c.l.bf16 %v29
  %v94 = vunpack.c.l.bf16 %v30
  %v95 = vunpack.c.l.bf16 %v31
  %v96 = vunpack.c.l.bf16 %v32
  %v97 = vunpack.c.l.bf16 %v33
  %v98 = vunpack.c.l.bf16 %v34
  %v99 = vunpack.c.l.bf16 %v35
  %v100 = vunpack.c.l.bf16 %v36
  %v101 = vunpack.c.l.bf16 %v37
  %v102 = vunpack.c.l.bf16 %v38
  %v103 = vunpack.c.l.bf16 %v39
  %v104 = vunpack.c.l.bf16 %v40
  %v105 = vunpack.c.l.bf16 %v41
  %v106 = vunpack.c.l.bf16 %v42
  %v107 = vunpack.c.l.bf16 %v43
  %v108 = vunpack.c.l.bf16 %v44
  %v109 = vunpack.c.l.bf16 %v45
  %v110 = vunpack.c.l.bf16 %v46
  %v111 = vunpack.c.l.bf16 %v47
  %v112 = vunpack.c.l.bf16 %v48
  %v113 = vunpack.c.l.bf16 %v49
  %v114 = vunpack.c.l.bf16 %v50
  %v115 = vunpack.c.l.bf16 %v51
  %v116 = vunpack.c.l.bf16 %v52
  %v117 = vunpack.c.l.bf16 %v53
  %v118 = vunpack.c.l.bf16 %v54
  %v119 = vunpack.c.l.bf16 %v55
  %v120 = vunpack.c.l.bf16 %v56
  %v121 = vunpack.c.l.bf16 %v57
  %v122 = vunpack.c.l.bf16 %v58
  %v123 = vunpack.c.l.bf16 %v59
  %v124 = vunpack.c.l.bf16 %v60
  %v125 = vunpack.c.l.bf16 %v61
  %v126 = vunpack.c.l.bf16 %v62
  %v127 = vunpack.c.l.bf16 %v63
  %v128 = vunpack.c.l.bf16 %v64
  %v129 = vunpack.c.l.bf16 %v65
  %v130 = vunpack.c.l.bf16 %v66
  %v131 = vunpack.c.l.bf16 %v67
  %v132 = vunpack.c.l.bf16 %v68
  %v133 = vunpack.c.l.bf16 %v69
  %v134 = vunpack.c.l.bf16 %v70
  %v135 = vunpack.c.l.bf16 %v71
  %v136 = vunpack.c.l.bf16 %v72
  %v137 = vunpack.c.l.bf16 %v73
  %v138 = vunpack.c.l.bf16 %v74
  %v139 = vunpack.c.l.bf16 %v75
  %v140 = vunpack.c.l.bf16 %v76
  %v141 = vunpack.c.l.bf16 %v77
  %v142 = vunpack.c.l.bf16 %v78
  %v143 = vunpack.c.l.bf16 %v79
  %v144 = vunpack.c.l.bf16 %v80
  %v145 = vunpack.c.l.bf16 %v81
  %v146 = vunpack.c.l.bf16 %v82
  %v147 = vunpack.c.l.bf16 %v83
  %v148 = vunpack.c.l.bf16 %v84
  %v149 = vunpack.c.l.bf16 %v85
  %v150 = vunpack.c.l.bf16 %v86
  %v151 = vunpack.c.l.bf16 %v87
  %v152 = vunpack.c.l.bf16 %v88
  %v153 = vunpack.c.l.bf16 %v89
  %v154 = vld [vmem:[%s1] sm:$0x1]
  %v156 = vperm.slane %v154, 0
  %v158 = vmul.f32 %v90, %v156
  %v159 = vmul.f32 %v91, %v156
  %v160 = vmul.f32 %v92, %v156
  %v161 = vmul.f32 %v93, %v156
  %v162 = vmul.f32 %v94, %v156
  %v163 = vmul.f32 %v95, %v156
  %v164 = vmul.f32 %v96, %v156
  %v165 = vmul.f32 %v97, %v156
  %v166 = vmul.f32 %v98, %v156
  %v167 = vmul.f32 %v99, %v156
  %v168 = vmul.f32 %v100, %v156
  %v169 = vmul.f32 %v101, %v156
  %v170 = vmul.f32 %v102, %v156
  %v171 = vmul.f32 %v103, %v156
  %v172 = vmul.f32 %v104, %v156
  %v173 = vmul.f32 %v105, %v156
  %v174 = vmul.f32 %v106, %v156
  %v175 = vmul.f32 %v107, %v156
  %v176 = vmul.f32 %v108, %v156
  %v177 = vmul.f32 %v109, %v156
  %v178 = vmul.f32 %v110, %v156
  %v179 = vmul.f32 %v111, %v156
  %v180 = vmul.f32 %v112, %v156
  %v181 = vmul.f32 %v113, %v156
  %v182 = vmul.f32 %v114, %v156
  %v183 = vmul.f32 %v115, %v156
  %v184 = vmul.f32 %v116, %v156
  %v185 = vmul.f32 %v117, %v156
  %v186 = vmul.f32 %v118, %v156
  %v187 = vmul.f32 %v119, %v156
  %v188 = vmul.f32 %v120, %v156
  %v189 = vmul.f32 %v121, %v156
  %v190 = vmul.f32 %v122, %v156
  %v191 = vmul.f32 %v123, %v156
  %v192 = vmul.f32 %v124, %v156
  %v193 = vmul.f32 %v125, %v156
  %v194 = vmul.f32 %v126, %v156
  %v195 = vmul.f32 %v127, %v156
  %v196 = vmul.f32 %v128, %v156
  %v197 = vmul.f32 %v129, %v156
  %v198 = vmul.f32 %v130, %v156
  %v199 = vmul.f32 %v131, %v156
  %v200 = vmul.f32 %v132, %v156
  %v201 = vmul.f32 %v133, %v156
  %v202 = vmul.f32 %v134, %v156
  %v203 = vmul.f32 %v135, %v156
  %v204 = vmul.f32 %v136, %v156
  %v205 = vmul.f32 %v137, %v156
  %v206 = vmul.f32 %v138, %v156
  %v207 = vmul.f32 %v139, %v156
  %v208 = vmul.f32 %v140, %v156
  %v209 = vmul.f32 %v141, %v156
  %v210 = vmul.f32 %v142, %v156
  %v211 = vmul.f32 %v143, %v156
  %v212 = vmul.f32 %v144, %v156
  %v213 = vmul.f32 %v145, %v156
  %v214 = vmul.f32 %v146, %v156
  %v215 = vmul.f32 %v147, %v156
  %v216 = vmul.f32 %v148, %v156
  %v217 = vmul.f32 %v149, %v156
  %v218 = vmul.f32 %v150, %v156
  %v219 = vmul.f32 %v151, %v156
  %v220 = vmul.f32 %v152, %v156
  %v221 = vmul.f32 %v153, %v156
  %v222 = vld [vmem:[%s2] sm:$0x1]
  %v224 = vperm.slane %v222, 0
  %v226 = vadd.f32 %v158, %v224
  %v227 = vadd.f32 %v159, %v224
  %v228 = vadd.f32 %v160, %v224
  %v229 = vadd.f32 %v161, %v224
  %v230 = vadd.f32 %v162, %v224
  %v231 = vadd.f32 %v163, %v224
  %v232 = vadd.f32 %v164, %v224
  %v233 = vadd.f32 %v165, %v224
  %v234 = vadd.f32 %v166, %v224
  %v235 = vadd.f32 %v167, %v224
  %v236 = vadd.f32 %v168, %v224
  %v237 = vadd.f32 %v169, %v224
  %v238 = vadd.f32 %v170, %v224
  %v239 = vadd.f32 %v171, %v224
  %v240 = vadd.f32 %v172, %v224
  %v241 = vadd.f32 %v173, %v224
  %v242 = vadd.f32 %v174, %v224
  %v243 = vadd.f32 %v175, %v224
  %v244 = vadd.f32 %v176, %v224
  %v245 = vadd.f32 %v177, %v224
  %v246 = vadd.f32 %v178, %v224
  %v247 = vadd.f32 %v179, %v224
  %v248 = vadd.f32 %v180, %v224
  %v249 = vadd.f32 %v181, %v224
  %v250 = vadd.f32 %v182, %v224
  %v251 = vadd.f32 %v183, %v224
  %v252 = vadd.f32 %v184, %v224
  %v253 = vadd.f32 %v185, %v224
  %v254 = vadd.f32 %v186, %v224
  %v255 = vadd.f32 %v187, %v224
  %v256 = vadd.f32 %v188, %v224
  %v257 = vadd.f32 %v189, %v224
  %v258 = vadd.f32 %v190, %v224
  %v259 = vadd.f32 %v191, %v224
  %v260 = vadd.f32 %v192, %v224
  %v261 = vadd.f32 %v193, %v224
  %v262 = vadd.f32 %v194, %v224
  %v263 = vadd.f32 %v195, %v224
  %v264 = vadd.f32 %v196, %v224
  %v265 = vadd.f32 %v197, %v224
  %v266 = vadd.f32 %v198, %v224
  %v267 = vadd.f32 %v199, %v224
  %v268 = vadd.f32 %v200, %v224
  %v269 = vadd.f32 %v201, %v224
  %v270 = vadd.f32 %v202, %v224
  %v271 = vadd.f32 %v203, %v224
  %v272 = vadd.f32 %v204, %v224
  %v273 = vadd.f32 %v205, %v224
  %v274 = vadd.f32 %v206, %v224
  %v275 = vadd.f32 %v207, %v224
  %v276 = vadd.f32 %v208, %v224
  %v277 = vadd.f32 %v209, %v224
  %v278 = vadd.f32 %v210, %v224
  %v279 = vadd.f32 %v211, %v224
  %v280 = vadd.f32 %v212, %v224
  %v281 = vadd.f32 %v213, %v224
  %v282 = vadd.f32 %v214, %v224
  %v283 = vadd.f32 %v215, %v224
  %v284 = vadd.f32 %v216, %v224
  %v285 = vadd.f32 %v217, %v224
  %v286 = vadd.f32 %v218, %v224
  %v287 = vadd.f32 %v219, %v224
  %v288 = vadd.f32 %v220, %v224
  %v289 = vadd.f32 %v221, %v224
  %v290 = vld [vmem:[%s3] sm:$0xf]
  %v291 = vld [vmem:[%s3 + $0x4] sm:$0xf]
  %v292 = vld [vmem:[%s3 + $0x8] sm:$0xf]
  %v293 = vld [vmem:[%s3 + $0xc] sm:$0xf]
  %v294 = vld [vmem:[%s3 + $0x10] sm:$0xf]
  %v295 = vld [vmem:[%s3 + $0x14] sm:$0xf]
  %v296 = vld [vmem:[%s3 + $0x18] sm:$0xf]
  %v297 = vld [vmem:[%s3 + $0x1c] sm:$0xf]
  %v298 = vld [vmem:[%s3 + $0x20] sm:$0xf]
  %v299 = vld [vmem:[%s3 + $0x24] sm:$0xf]
  %v300 = vld [vmem:[%s3 + $0x28] sm:$0xf]
  %v301 = vld [vmem:[%s3 + $0x2c] sm:$0xf]
  %v302 = vld [vmem:[%s3 + $0x30] sm:$0xf]
  %v303 = vld [vmem:[%s3 + $0x34] sm:$0xf]
  %v304 = vld [vmem:[%s3 + $0x38] sm:$0xf]
  %v305 = vld [vmem:[%s3 + $0x3c] sm:$0xf]
  %v306 = vld [vmem:[%s3 + $0x40] sm:$0xf]
  %v307 = vld [vmem:[%s3 + $0x44] sm:$0xf]
  %v308 = vld [vmem:[%s3 + $0x48] sm:$0xf]
  %v309 = vld [vmem:[%s3 + $0x4c] sm:$0xf]
  %v310 = vld [vmem:[%s3 + $0x50] sm:$0xf]
  %v311 = vld [vmem:[%s3 + $0x54] sm:$0xf]
  %v312 = vld [vmem:[%s3 + $0x58] sm:$0xf]
  %v313 = vld [vmem:[%s3 + $0x5c] sm:$0xf]
  %v314 = vld [vmem:[%s3 + $0x60] sm:$0xf]
  %v315 = vld [vmem:[%s3 + $0x64] sm:$0xf]
  %v316 = vld [vmem:[%s3 + $0x68] sm:$0xf]
  %v317 = vld [vmem:[%s3 + $0x6c] sm:$0xf]
  %v318 = vld [vmem:[%s3 + $0x70] sm:$0xf]
  %v319 = vld [vmem:[%s3 + $0x74] sm:$0xf]
  %v320 = vld [vmem:[%s3 + $0x78] sm:$0xf]
  %v321 = vld [vmem:[%s3 + $0x7c] sm:$0xf]
  %v322 = vld [vmem:[%s3 + $0x80] sm:$0xf]
  %v323 = vld [vmem:[%s3 + $0x84] sm:$0xf]
  %v324 = vld [vmem:[%s3 + $0x88] sm:$0xf]
  %v325 = vld [vmem:[%s3 + $0x8c] sm:$0xf]
  %v326 = vld [vmem:[%s3 + $0x90] sm:$0xf]
  %v327 = vld [vmem:[%s3 + $0x94] sm:$0xf]
  %v328 = vld [vmem:[%s3 + $0x98] sm:$0xf]
  %v329 = vld [vmem:[%s3 + $0x9c] sm:$0xf]
  %v330 = vld [vmem:[%s3 + $0xa0] sm:$0xf]
  %v331 = vld [vmem:[%s3 + $0xa4] sm:$0xf]
  %v332 = vld [vmem:[%s3 + $0xa8] sm:$0xf]
  %v333 = vld [vmem:[%s3 + $0xac] sm:$0xf]
  %v334 = vld [vmem:[%s3 + $0xb0] sm:$0xf]
  %v335 = vld [vmem:[%s3 + $0xb4] sm:$0xf]
  %v336 = vld [vmem:[%s3 + $0xb8] sm:$0xf]
  %v337 = vld [vmem:[%s3 + $0xbc] sm:$0xf]
  %v338 = vld [vmem:[%s3 + $0xc0] sm:$0xf]
  %v339 = vld [vmem:[%s3 + $0xc4] sm:$0xf]
  %v340 = vld [vmem:[%s3 + $0xc8] sm:$0xf]
  %v341 = vld [vmem:[%s3 + $0xcc] sm:$0xf]
  %v342 = vld [vmem:[%s3 + $0xd0] sm:$0xf]
  %v343 = vld [vmem:[%s3 + $0xd4] sm:$0xf]
  %v344 = vld [vmem:[%s3 + $0xd8] sm:$0xf]
  %v345 = vld [vmem:[%s3 + $0xdc] sm:$0xf]
  %v346 = vld [vmem:[%s3 + $0xe0] sm:$0xf]
  %v347 = vld [vmem:[%s3 + $0xe4] sm:$0xf]
  %v348 = vld [vmem:[%s3 + $0xe8] sm:$0xf]
  %v349 = vld [vmem:[%s3 + $0xec] sm:$0xf]
  %v350 = vld [vmem:[%s3 + $0xf0] sm:$0xf]
  %v351 = vld [vmem:[%s3 + $0xf4] sm:$0xf]
  %v352 = vld [vmem:[%s3 + $0xf8] sm:$0xf]
  %v353 = vld [vmem:[%s3 + $0xfc] sm:$0xf]
  %v354 = vld [vmem:[%s4] sm:$0xf]
  %v355 = vld [vmem:[%s4 + $0x4] sm:$0xf]
  %v356 = vld [vmem:[%s4 + $0x8] sm:$0xf]
  %v357 = vld [vmem:[%s4 + $0xc] sm:$0xf]
  %v358 = vld [vmem:[%s4 + $0x10] sm:$0xf]
  %v359 = vld [vmem:[%s4 + $0x14] sm:$0xf]
  %v360 = vld [vmem:[%s4 + $0x18] sm:$0xf]
  %v361 = vld [vmem:[%s4 + $0x1c] sm:$0xf]
  %v362 = vld [vmem:[%s4 + $0x20] sm:$0xf]
  %v363 = vld [vmem:[%s4 + $0x24] sm:$0xf]
  %v364 = vld [vmem:[%s4 + $0x28] sm:$0xf]
  %v365 = vld [vmem:[%s4 + $0x2c] sm:$0xf]
  %v366 = vld [vmem:[%s4 + $0x30] sm:$0xf]
  %v367 = vld [vmem:[%s4 + $0x34] sm:$0xf]
  %v368 = vld [vmem:[%s4 + $0x38] sm:$0xf]
  %v369 = vld [vmem:[%s4 + $0x3c] sm:$0xf]
  %v434 = vunpack.c.l.b16 %v290
  %v435 = vunpack.c.l.b16 %v291
  %v436 = vunpack.c.l.b16 %v292
  %v437 = vunpack.c.l.b16 %v293
  %v438 = vunpack.c.l.b16 %v294
  %v439 = vunpack.c.l.b16 %v295
  %v440 = vunpack.c.l.b16 %v296
  %v441 = vunpack.c.l.b16 %v297
  %v442 = vunpack.c.l.b16 %v298
  %v443 = vunpack.c.l.b16 %v299
  %v444 = vunpack.c.l.b16 %v300
  %v445 = vunpack.c.l.b16 %v301
  %v446 = vunpack.c.l.b16 %v302
  %v447 = vunpack.c.l.b16 %v303
  %v448 = vunpack.c.l.b16 %v304
  %v449 = vunpack.c.l.b16 %v305
  %v450 = vunpack.c.l.b16 %v306
  %v451 = vunpack.c.l.b16 %v307
  %v452 = vunpack.c.l.b16 %v308
  %v453 = vunpack.c.l.b16 %v309
  %v454 = vunpack.c.l.b16 %v310
  %v455 = vunpack.c.l.b16 %v311
  %v456 = vunpack.c.l.b16 %v312
  %v457 = vunpack.c.l.b16 %v313
  %v458 = vunpack.c.l.b16 %v314
  %v459 = vunpack.c.l.b16 %v315
  %v460 = vunpack.c.l.b16 %v316
  %v461 = vunpack.c.l.b16 %v317
  %v462 = vunpack.c.l.b16 %v318
  %v463 = vunpack.c.l.b16 %v319
  %v464 = vunpack.c.l.b16 %v320
  %v465 = vunpack.c.l.b16 %v321
  %v466 = vunpack.c.l.b16 %v322
  %v467 = vunpack.c.l.b16 %v323
  %v468 = vunpack.c.l.b16 %v324
  %v469 = vunpack.c.l.b16 %v325
  %v470 = vunpack.c.l.b16 %v326
  %v471 = vunpack.c.l.b16 %v327
  %v472 = vunpack.c.l.b16 %v328
  %v473 = vunpack.c.l.b16 %v329
  %v474 = vunpack.c.l.b16 %v330
  %v475 = vunpack.c.l.b16 %v331
  %v476 = vunpack.c.l.b16 %v332
  %v477 = vunpack.c.l.b16 %v333
  %v478 = vunpack.c.l.b16 %v334
  %v479 = vunpack.c.l.b16 %v335
  %v480 = vunpack.c.l.b16 %v336
  %v481 = vunpack.c.l.b16 %v337
  %v482 = vunpack.c.l.b16 %v338
  %v483 = vunpack.c.l.b16 %v339
  %v484 = vunpack.c.l.b16 %v340
  %v485 = vunpack.c.l.b16 %v341
  %v486 = vunpack.c.l.b16 %v342
  %v487 = vunpack.c.l.b16 %v343
  %v488 = vunpack.c.l.b16 %v344
  %v489 = vunpack.c.l.b16 %v345
  %v490 = vunpack.c.l.b16 %v346
  %v491 = vunpack.c.l.b16 %v347
  %v492 = vunpack.c.l.b16 %v348
  %v493 = vunpack.c.l.b16 %v349
  %v494 = vunpack.c.l.b16 %v350
  %v495 = vunpack.c.l.b16 %v351
  %v496 = vunpack.c.l.b16 %v352
  %v497 = vunpack.c.l.b16 %v353
  %v498 = vpack.c.b16 %v435, %v434
  %v499 = vpack.c.b16 %v437, %v436
  %v500 = vpack.c.b16 %v439, %v438
  %v501 = vpack.c.b16 %v441, %v440
  %v502 = vpack.c.b16 %v443, %v442
  %v503 = vpack.c.b16 %v445, %v444
  %v504 = vpack.c.b16 %v447, %v446
  %v505 = vpack.c.b16 %v449, %v448
  %v506 = vpack.c.b16 %v451, %v450
  %v507 = vpack.c.b16 %v453, %v452
  %v508 = vpack.c.b16 %v455, %v454
  %v509 = vpack.c.b16 %v457, %v456
  %v510 = vpack.c.b16 %v459, %v458
  %v511 = vpack.c.b16 %v461, %v460
  %v512 = vpack.c.b16 %v463, %v462
  %v513 = vpack.c.b16 %v465, %v464
  %v514 = vpack.c.b16 %v467, %v466
  %v515 = vpack.c.b16 %v469, %v468
  %v516 = vpack.c.b16 %v471, %v470
  %v517 = vpack.c.b16 %v473, %v472
  %v518 = vpack.c.b16 %v475, %v474
  %v519 = vpack.c.b16 %v477, %v476
  %v520 = vpack.c.b16 %v479, %v478
  %v521 = vpack.c.b16 %v481, %v480
  %v522 = vpack.c.b16 %v483, %v482
  %v523 = vpack.c.b16 %v485, %v484
  %v524 = vpack.c.b16 %v487, %v486
  %v525 = vpack.c.b16 %v489, %v488
  %v526 = vpack.c.b16 %v491, %v490
  %v527 = vpack.c.b16 %v493, %v492
  %v528 = vpack.c.b16 %v495, %v494
  %v529 = vpack.c.b16 %v497, %v496
  %v578 = vunpack.c.l.b16 %v354
  %v579 = vunpack.c.l.b16 %v355
  %v580 = vunpack.c.l.b16 %v356
  %v581 = vunpack.c.l.b16 %v357
  %v582 = vunpack.c.l.b16 %v358
  %v583 = vunpack.c.l.b16 %v359
  %v584 = vunpack.c.l.b16 %v360
  %v585 = vunpack.c.l.b16 %v361
  %v586 = vunpack.c.l.b16 %v362
  %v587 = vunpack.c.l.b16 %v363
  %v588 = vunpack.c.l.b16 %v364
  %v589 = vunpack.c.l.b16 %v365
  %v590 = vunpack.c.l.b16 %v366
  %v591 = vunpack.c.l.b16 %v367
  %v592 = vunpack.c.l.b16 %v368
  %v593 = vunpack.c.l.b16 %v369
  %v594 = vpack.c.b16 %v579, %v578
  %v595 = vpack.c.b16 %v581, %v580
  %v596 = vpack.c.b16 %v583, %v582
  %v597 = vpack.c.b16 %v585, %v584
  %v598 = vpack.c.b16 %v587, %v586
  %v599 = vpack.c.b16 %v589, %v588
  %v600 = vpack.c.b16 %v591, %v590
  %v601 = vpack.c.b16 %v593, %v592
  %610 = vmatpush.bf16.msra.mxu0 %v601
  %611 = vmatpush.bf16.msra.mxu0 %v600
  %612 = vmatpush.bf16.msra.mxu0 %v599
  %613 = vmatpush.bf16.msra.mxu0 %v598
  %614 = vmatpush.bf16.msra.mxu0 %v597
  %615 = vmatpush.bf16.msra.mxu0 %v596
  %616 = vmatpush.bf16.msra.mxu0 %v595
  %617 = vmatpush.bf16.msra.mxu0 %v594
  %618 = vmatmul.bf16.gmra.mxu0 %v498
  %v619 = vpop.f32.mrf.mxu0
  %v620 = vadd.f32 0.0, %v619
  %v621 = vpop.f32.mrf.mxu0
  %v622 = vadd.f32 0.0, %v621
  %623 = vmatmul.bf16.gmra.mxu0 %v499
  %v624 = vpop.f32.mrf.mxu0
  %v625 = vadd.f32 0.0, %v624
  %v626 = vpop.f32.mrf.mxu0
  %v627 = vadd.f32 0.0, %v626
  %628 = vmatmul.bf16.gmra.mxu0 %v500
  %v629 = vpop.f32.mrf.mxu0
  %v630 = vadd.f32 0.0, %v629
  %v631 = vpop.f32.mrf.mxu0
  %v632 = vadd.f32 0.0, %v631
  %633 = vmatmul.bf16.gmra.mxu0 %v501
  %v634 = vpop.f32.mrf.mxu0
  %v635 = vadd.f32 0.0, %v634
  %v636 = vpop.f32.mrf.mxu0
  %v637 = vadd.f32 0.0, %v636
  %638 = vmatmul.bf16.gmra.mxu0 %v502
  %v639 = vpop.f32.mrf.mxu0
  %v640 = vadd.f32 0.0, %v639
  %v641 = vpop.f32.mrf.mxu0
  %v642 = vadd.f32 0.0, %v641
  %643 = vmatmul.bf16.gmra.mxu0 %v503
  %v644 = vpop.f32.mrf.mxu0
  %v645 = vadd.f32 0.0, %v644
  %v646 = vpop.f32.mrf.mxu0
  %v647 = vadd.f32 0.0, %v646
  %648 = vmatmul.bf16.gmra.mxu0 %v504
  %v649 = vpop.f32.mrf.mxu0
  %v650 = vadd.f32 0.0, %v649
  %v651 = vpop.f32.mrf.mxu0
  %v652 = vadd.f32 0.0, %v651
  %653 = vmatmul.bf16.gmra.mxu0 %v505
  %v654 = vpop.f32.mrf.mxu0
  %v655 = vadd.f32 0.0, %v654
  %v656 = vpop.f32.mrf.mxu0
  %v657 = vadd.f32 0.0, %v656
  %658 = vmatmul.bf16.gmra.mxu0 %v506
  %v659 = vpop.f32.mrf.mxu0
  %v660 = vadd.f32 0.0, %v659
  %v661 = vpop.f32.mrf.mxu0
  %v662 = vadd.f32 0.0, %v661
  %663 = vmatmul.bf16.gmra.mxu0 %v507
  %v664 = vpop.f32.mrf.mxu0
  %v665 = vadd.f32 0.0, %v664
  %v666 = vpop.f32.mrf.mxu0
  %v667 = vadd.f32 0.0, %v666
  %668 = vmatmul.bf16.gmra.mxu0 %v508
  %v669 = vpop.f32.mrf.mxu0
  %v670 = vadd.f32 0.0, %v669
  %v671 = vpop.f32.mrf.mxu0
  %v672 = vadd.f32 0.0, %v671
  %673 = vmatmul.bf16.gmra.mxu0 %v509
  %v674 = vpop.f32.mrf.mxu0
  %v675 = vadd.f32 0.0, %v674
  %v676 = vpop.f32.mrf.mxu0
  %v677 = vadd.f32 0.0, %v676
  %678 = vmatmul.bf16.gmra.mxu0 %v510
  %v679 = vpop.f32.mrf.mxu0
  %v680 = vadd.f32 0.0, %v679
  %v681 = vpop.f32.mrf.mxu0
  %v682 = vadd.f32 0.0, %v681
  %683 = vmatmul.bf16.gmra.mxu0 %v511
  %v684 = vpop.f32.mrf.mxu0
  %v685 = vadd.f32 0.0, %v684
  %v686 = vpop.f32.mrf.mxu0
  %v687 = vadd.f32 0.0, %v686
  %688 = vmatmul.bf16.gmra.mxu0 %v512
  %v689 = vpop.f32.mrf.mxu0
  %v690 = vadd.f32 0.0, %v689
  %v691 = vpop.f32.mrf.mxu0
  %v692 = vadd.f32 0.0, %v691
  %693 = vmatmul.bf16.gmra.mxu0 %v513
  %v694 = vpop.f32.mrf.mxu0
  %v695 = vadd.f32 0.0, %v694
  %v696 = vpop.f32.mrf.mxu0
  %v697 = vadd.f32 0.0, %v696
  %698 = vmatmul.bf16.gmra.mxu0 %v514
  %v699 = vpop.f32.mrf.mxu0
  %v700 = vadd.f32 0.0, %v699
  %v701 = vpop.f32.mrf.mxu0
  %v702 = vadd.f32 0.0, %v701
  %703 = vmatmul.bf16.gmra.mxu0 %v515
  %v704 = vpop.f32.mrf.mxu0
  %v705 = vadd.f32 0.0, %v704
  %v706 = vpop.f32.mrf.mxu0
  %v707 = vadd.f32 0.0, %v706
  %708 = vmatmul.bf16.gmra.mxu0 %v516
  %v709 = vpop.f32.mrf.mxu0
  %v710 = vadd.f32 0.0, %v709
  %v711 = vpop.f32.mrf.mxu0
  %v712 = vadd.f32 0.0, %v711
  %713 = vmatmul.bf16.gmra.mxu0 %v517
  %v714 = vpop.f32.mrf.mxu0
  %v715 = vadd.f32 0.0, %v714
  %v716 = vpop.f32.mrf.mxu0
  %v717 = vadd.f32 0.0, %v716
  %718 = vmatmul.bf16.gmra.mxu0 %v518
  %v719 = vpop.f32.mrf.mxu0
  %v720 = vadd.f32 0.0, %v719
  %v721 = vpop.f32.mrf.mxu0
  %v722 = vadd.f32 0.0, %v721
  %723 = vmatmul.bf16.gmra.mxu0 %v519
  %v724 = vpop.f32.mrf.mxu0
  %v725 = vadd.f32 0.0, %v724
  %v726 = vpop.f32.mrf.mxu0
  %v727 = vadd.f32 0.0, %v726
  %728 = vmatmul.bf16.gmra.mxu0 %v520
  %v729 = vpop.f32.mrf.mxu0
  %v730 = vadd.f32 0.0, %v729
  %v731 = vpop.f32.mrf.mxu0
  %v732 = vadd.f32 0.0, %v731
  %733 = vmatmul.bf16.gmra.mxu0 %v521
  %v734 = vpop.f32.mrf.mxu0
  %v735 = vadd.f32 0.0, %v734
  %v736 = vpop.f32.mrf.mxu0
  %v737 = vadd.f32 0.0, %v736
  %738 = vmatmul.bf16.gmra.mxu0 %v522
  %v739 = vpop.f32.mrf.mxu0
  %v740 = vadd.f32 0.0, %v739
  %v741 = vpop.f32.mrf.mxu0
  %v742 = vadd.f32 0.0, %v741
  %743 = vmatmul.bf16.gmra.mxu0 %v523
  %v744 = vpop.f32.mrf.mxu0
  %v745 = vadd.f32 0.0, %v744
  %v746 = vpop.f32.mrf.mxu0
  %v747 = vadd.f32 0.0, %v746
  %748 = vmatmul.bf16.gmra.mxu0 %v524
  %v749 = vpop.f32.mrf.mxu0
  %v750 = vadd.f32 0.0, %v749
  %v751 = vpop.f32.mrf.mxu0
  %v752 = vadd.f32 0.0, %v751
  %753 = vmatmul.bf16.gmra.mxu0 %v525
  %v754 = vpop.f32.mrf.mxu0
  %v755 = vadd.f32 0.0, %v754
  %v756 = vpop.f32.mrf.mxu0
  %v757 = vadd.f32 0.0, %v756
  %758 = vmatmul.bf16.gmra.mxu0 %v526
  %v759 = vpop.f32.mrf.mxu0
  %v760 = vadd.f32 0.0, %v759
  %v761 = vpop.f32.mrf.mxu0
  %v762 = vadd.f32 0.0, %v761
  %763 = vmatmul.bf16.gmra.mxu0 %v527
  %v764 = vpop.f32.mrf.mxu0
  %v765 = vadd.f32 0.0, %v764
  %v766 = vpop.f32.mrf.mxu0
  %v767 = vadd.f32 0.0, %v766
  %768 = vmatmul.bf16.gmra.mxu0 %v528
  %v769 = vpop.f32.mrf.mxu0
  %v770 = vadd.f32 0.0, %v769
  %v771 = vpop.f32.mrf.mxu0
  %v772 = vadd.f32 0.0, %v771
  %773 = vmatmul.bf16.gmra.mxu0 %v529
  %v774 = vpop.f32.mrf.mxu0
  %v775 = vadd.f32 0.0, %v774
  %v776 = vpop.f32.mrf.mxu0
  %v777 = vadd.f32 0.0, %v776
  %778 = vdwg.mxu0
  %v779 = vld [vmem:[%s5] sm:$0x1]
  %v781 = vperm.slane %v779, 0
  %v783 = vmul.f32 %v620, %v781
  %v784 = vmul.f32 %v622, %v781
  %v785 = vmul.f32 %v625, %v781
  %v786 = vmul.f32 %v627, %v781
  %v787 = vmul.f32 %v630, %v781
  %v788 = vmul.f32 %v632, %v781
  %v789 = vmul.f32 %v635, %v781
  %v790 = vmul.f32 %v637, %v781
  %v791 = vmul.f32 %v640, %v781
  %v792 = vmul.f32 %v642, %v781
  %v793 = vmul.f32 %v645, %v781
  %v794 = vmul.f32 %v647, %v781
  %v795 = vmul.f32 %v650, %v781
  %v796 = vmul.f32 %v652, %v781
  %v797 = vmul.f32 %v655, %v781
  %v798 = vmul.f32 %v657, %v781
  %v799 = vmul.f32 %v660, %v781
  %v800 = vmul.f32 %v662, %v781
  %v801 = vmul.f32 %v665, %v781
  %v802 = vmul.f32 %v667, %v781
  %v803 = vmul.f32 %v670, %v781
  %v804 = vmul.f32 %v672, %v781
  %v805 = vmul.f32 %v675, %v781
  %v806 = vmul.f32 %v677, %v781
  %v807 = vmul.f32 %v680, %v781
  %v808 = vmul.f32 %v682, %v781
  %v809 = vmul.f32 %v685, %v781
  %v810 = vmul.f32 %v687, %v781
  %v811 = vmul.f32 %v690, %v781
  %v812 = vmul.f32 %v692, %v781
  %v813 = vmul.f32 %v695, %v781
  %v814 = vmul.f32 %v697, %v781
  %v815 = vmul.f32 %v700, %v781
  %v816 = vmul.f32 %v702, %v781
  %v817 = vmul.f32 %v705, %v781
  %v818 = vmul.f32 %v707, %v781
  %v819 = vmul.f32 %v710, %v781
  %v820 = vmul.f32 %v712, %v781
  %v821 = vmul.f32 %v715, %v781
  %v822 = vmul.f32 %v717, %v781
  %v823 = vmul.f32 %v720, %v781
  %v824 = vmul.f32 %v722, %v781
  %v825 = vmul.f32 %v725, %v781
  %v826 = vmul.f32 %v727, %v781
  %v827 = vmul.f32 %v730, %v781
  %v828 = vmul.f32 %v732, %v781
  %v829 = vmul.f32 %v735, %v781
  %v830 = vmul.f32 %v737, %v781
  %v831 = vmul.f32 %v740, %v781
  %v832 = vmul.f32 %v742, %v781
  %v833 = vmul.f32 %v745, %v781
  %v834 = vmul.f32 %v747, %v781
  %v835 = vmul.f32 %v750, %v781
  %v836 = vmul.f32 %v752, %v781
  %v837 = vmul.f32 %v755, %v781
  %v838 = vmul.f32 %v757, %v781
  %v839 = vmul.f32 %v760, %v781
  %v840 = vmul.f32 %v762, %v781
  %v841 = vmul.f32 %v765, %v781
  %v842 = vmul.f32 %v767, %v781
  %v843 = vmul.f32 %v770, %v781
  %v844 = vmul.f32 %v772, %v781
  %v845 = vmul.f32 %v775, %v781
  %v846 = vmul.f32 %v777, %v781
  %v847 = vadd.f32 %v226, %v783
  %v848 = vadd.f32 %v227, %v784
  %v849 = vadd.f32 %v228, %v785
  %v850 = vadd.f32 %v229, %v786
  %v851 = vadd.f32 %v230, %v787
  %v852 = vadd.f32 %v231, %v788
  %v853 = vadd.f32 %v232, %v789
  %v854 = vadd.f32 %v233, %v790
  %v855 = vadd.f32 %v234, %v791
  %v856 = vadd.f32 %v235, %v792
  %v857 = vadd.f32 %v236, %v793
  %v858 = vadd.f32 %v237, %v794
  %v859 = vadd.f32 %v238, %v795
  %v860 = vadd.f32 %v239, %v796
  %v861 = vadd.f32 %v240, %v797
  %v862 = vadd.f32 %v241, %v798
  %v863 = vadd.f32 %v242, %v799
  %v864 = vadd.f32 %v243, %v800
  %v865 = vadd.f32 %v244, %v801
  %v866 = vadd.f32 %v245, %v802
  %v867 = vadd.f32 %v246, %v803
  %v868 = vadd.f32 %v247, %v804
  %v869 = vadd.f32 %v248, %v805
  %v870 = vadd.f32 %v249, %v806
  %v871 = vadd.f32 %v250, %v807
  %v872 = vadd.f32 %v251, %v808
  %v873 = vadd.f32 %v252, %v809
  %v874 = vadd.f32 %v253, %v810
  %v875 = vadd.f32 %v254, %v811
  %v876 = vadd.f32 %v255, %v812
  %v877 = vadd.f32 %v256, %v813
  %v878 = vadd.f32 %v257, %v814
  %v879 = vadd.f32 %v258, %v815
  %v880 = vadd.f32 %v259, %v816
  %v881 = vadd.f32 %v260, %v817
  %v882 = vadd.f32 %v261, %v818
  %v883 = vadd.f32 %v262, %v819
  %v884 = vadd.f32 %v263, %v820
  %v885 = vadd.f32 %v264, %v821
  %v886 = vadd.f32 %v265, %v822
  %v887 = vadd.f32 %v266, %v823
  %v888 = vadd.f32 %v267, %v824
  %v889 = vadd.f32 %v268, %v825
  %v890 = vadd.f32 %v269, %v826
  %v891 = vadd.f32 %v270, %v827
  %v892 = vadd.f32 %v271, %v828
  %v893 = vadd.f32 %v272, %v829
  %v894 = vadd.f32 %v273, %v830
  %v895 = vadd.f32 %v274, %v831
  %v896 = vadd.f32 %v275, %v832
  %v897 = vadd.f32 %v276, %v833
  %v898 = vadd.f32 %v277, %v834
  %v899 = vadd.f32 %v278, %v835
  %v900 = vadd.f32 %v279, %v836
  %v901 = vadd.f32 %v280, %v837
  %v902 = vadd.f32 %v281, %v838
  %v903 = vadd.f32 %v282, %v839
  %v904 = vadd.f32 %v283, %v840
  %v905 = vadd.f32 %v284, %v841
  %v906 = vadd.f32 %v285, %v842
  %v907 = vadd.f32 %v286, %v843
  %v908 = vadd.f32 %v287, %v844
  %v909 = vadd.f32 %v288, %v845
  %v910 = vadd.f32 %v289, %v846
  %v911 = vld [vmem:[%s6] sm:$0x1]
  %v913 = vperm.slane %v911, 0
  %v915 = vadd.f32 %v847, %v913
  %v916 = vadd.f32 %v848, %v913
  %v917 = vadd.f32 %v849, %v913
  %v918 = vadd.f32 %v850, %v913
  %v919 = vadd.f32 %v851, %v913
  %v920 = vadd.f32 %v852, %v913
  %v921 = vadd.f32 %v853, %v913
  %v922 = vadd.f32 %v854, %v913
  %v923 = vadd.f32 %v855, %v913
  %v924 = vadd.f32 %v856, %v913
  %v925 = vadd.f32 %v857, %v913
  %v926 = vadd.f32 %v858, %v913
  %v927 = vadd.f32 %v859, %v913
  %v928 = vadd.f32 %v860, %v913
  %v929 = vadd.f32 %v861, %v913
  %v930 = vadd.f32 %v862, %v913
  %v931 = vadd.f32 %v863, %v913
  %v932 = vadd.f32 %v864, %v913
  %v933 = vadd.f32 %v865, %v913
  %v934 = vadd.f32 %v866, %v913
  %v935 = vadd.f32 %v867, %v913
  %v936 = vadd.f32 %v868, %v913
  %v937 = vadd.f32 %v869, %v913
  %v938 = vadd.f32 %v870, %v913
  %v939 = vadd.f32 %v871, %v913
  %v940 = vadd.f32 %v872, %v913
  %v941 = vadd.f32 %v873, %v913
  %v942 = vadd.f32 %v874, %v913
  %v943 = vadd.f32 %v875, %v913
  %v944 = vadd.f32 %v876, %v913
  %v945 = vadd.f32 %v877, %v913
  %v946 = vadd.f32 %v878, %v913
  %v947 = vadd.f32 %v879, %v913
  %v948 = vadd.f32 %v880, %v913
  %v949 = vadd.f32 %v881, %v913
  %v950 = vadd.f32 %v882, %v913
  %v951 = vadd.f32 %v883, %v913
  %v952 = vadd.f32 %v884, %v913
  %v953 = vadd.f32 %v885, %v913
  %v954 = vadd.f32 %v886, %v913
  %v955 = vadd.f32 %v887, %v913
  %v956 = vadd.f32 %v888, %v913
  %v957 = vadd.f32 %v889, %v913
  %v958 = vadd.f32 %v890, %v913
  %v959 = vadd.f32 %v891, %v913
  %v960 = vadd.f32 %v892, %v913
  %v961 = vadd.f32 %v893, %v913
  %v962 = vadd.f32 %v894, %v913
  %v963 = vadd.f32 %v895, %v913
  %v964 = vadd.f32 %v896, %v913
  %v965 = vadd.f32 %v897, %v913
  %v966 = vadd.f32 %v898, %v913
  %v967 = vadd.f32 %v899, %v913
  %v968 = vadd.f32 %v900, %v913
  %v969 = vadd.f32 %v901, %v913
  %v970 = vadd.f32 %v902, %v913
  %v971 = vadd.f32 %v903, %v913
  %v972 = vadd.f32 %v904, %v913
  %v973 = vadd.f32 %v905, %v913
  %v974 = vadd.f32 %v906, %v913
  %v975 = vadd.f32 %v907, %v913
  %v976 = vadd.f32 %v908, %v913
  %v977 = vadd.f32 %v909, %v913
  %v978 = vadd.f32 %v910, %v913
  %v979 = vmax.f32 %v915, 0.0
  %v980 = vmax.f32 %v916, 0.0
  %v981 = vmax.f32 %v917, 0.0
  %v982 = vmax.f32 %v918, 0.0
  %v983 = vmax.f32 %v919, 0.0
  %v984 = vmax.f32 %v920, 0.0
  %v985 = vmax.f32 %v921, 0.0
  %v986 = vmax.f32 %v922, 0.0
  %v987 = vmax.f32 %v923, 0.0
  %v988 = vmax.f32 %v924, 0.0
  %v989 = vmax.f32 %v925, 0.0
  %v990 = vmax.f32 %v926, 0.0
  %v991 = vmax.f32 %v927, 0.0
  %v992 = vmax.f32 %v928, 0.0
  %v993 = vmax.f32 %v929, 0.0
  %v994 = vmax.f32 %v930, 0.0
  %v995 = vmax.f32 %v931, 0.0
  %v996 = vmax.f32 %v932, 0.0
  %v997 = vmax.f32 %v933, 0.0
  %v998 = vmax.f32 %v934, 0.0
  %v999 = vmax.f32 %v935, 0.0
  %v1000 = vmax.f32 %v936, 0.0
  %v1001 = vmax.f32 %v937, 0.0
  %v1002 = vmax.f32 %v938, 0.0
  %v1003 = vmax.f32 %v939, 0.0
  %v1004 = vmax.f32 %v940, 0.0
  %v1005 = vmax.f32 %v941, 0.0
  %v1006 = vmax.f32 %v942, 0.0
  %v1007 = vmax.f32 %v943, 0.0
  %v1008 = vmax.f32 %v944, 0.0
  %v1009 = vmax.f32 %v945, 0.0
  %v1010 = vmax.f32 %v946, 0.0
  %v1011 = vmax.f32 %v947, 0.0
  %v1012 = vmax.f32 %v948, 0.0
  %v1013 = vmax.f32 %v949, 0.0
  %v1014 = vmax.f32 %v950, 0.0
  %v1015 = vmax.f32 %v951, 0.0
  %v1016 = vmax.f32 %v952, 0.0
  %v1017 = vmax.f32 %v953, 0.0
  %v1018 = vmax.f32 %v954, 0.0
  %v1019 = vmax.f32 %v955, 0.0
  %v1020 = vmax.f32 %v956, 0.0
  %v1021 = vmax.f32 %v957, 0.0
  %v1022 = vmax.f32 %v958, 0.0
  %v1023 = vmax.f32 %v959, 0.0
  %v1024 = vmax.f32 %v960, 0.0
  %v1025 = vmax.f32 %v961, 0.0
  %v1026 = vmax.f32 %v962, 0.0
  %v1027 = vmax.f32 %v963, 0.0
  %v1028 = vmax.f32 %v964, 0.0
  %v1029 = vmax.f32 %v965, 0.0
  %v1030 = vmax.f32 %v966, 0.0
  %v1031 = vmax.f32 %v967, 0.0
  %v1032 = vmax.f32 %v968, 0.0
  %v1033 = vmax.f32 %v969, 0.0
  %v1034 = vmax.f32 %v970, 0.0
  %v1035 = vmax.f32 %v971, 0.0
  %v1036 = vmax.f32 %v972, 0.0
  %v1037 = vmax.f32 %v973, 0.0
  %v1038 = vmax.f32 %v974, 0.0
  %v1039 = vmax.f32 %v975, 0.0
  %v1040 = vmax.f32 %v976, 0.0
  %v1041 = vmax.f32 %v977, 0.0
  %v1042 = vmax.f32 %v978, 0.0
  %1043 = vst [vmem:[%s7] sm:$0xff] %v979
  %1044 = vst [vmem:[%s7 + $0x8] sm:$0xff] %v980
  %1045 = vst [vmem:[%s7 + $0x10] sm:$0xff] %v981
  %1046 = vst [vmem:[%s7 + $0x18] sm:$0xff] %v982
  %1047 = vst [vmem:[%s7 + $0x20] sm:$0xff] %v983
  %1048 = vst [vmem:[%s7 + $0x28] sm:$0xff] %v984
  %1049 = vst [vmem:[%s7 + $0x30] sm:$0xff] %v985
  %1050 = vst [vmem:[%s7 + $0x38] sm:$0xff] %v986
  %1051 = vst [vmem:[%s7 + $0x40] sm:$0xff] %v987
  %1052 = vst [vmem:[%s7 + $0x48] sm:$0xff] %v988
  %1053 = vst [vmem:[%s7 + $0x50] sm:$0xff] %v989
  %1054 = vst [vmem:[%s7 + $0x58] sm:$0xff] %v990
  %1055 = vst [vmem:[%s7 + $0x60] sm:$0xff] %v991
  %1056 = vst [vmem:[%s7 + $0x68] sm:$0xff] %v992
  %1057 = vst [vmem:[%s7 + $0x70] sm:$0xff] %v993
  %1058 = vst [vmem:[%s7 + $0x78] sm:$0xff] %v994
  %1059 = vst [vmem:[%s7 + $0x80] sm:$0xff] %v995
  %1060 = vst [vmem:[%s7 + $0x88] sm:$0xff] %v996
  %1061 = vst [vmem:[%s7 + $0x90] sm:$0xff] %v997
  %1062 = vst [vmem:[%s7 + $0x98] sm:$0xff] %v998
  %1063 = vst [vmem:[%s7 + $0xa0] sm:$0xff] %v999
  %1064 = vst [vmem:[%s7 + $0xa8] sm:$0xff] %v1000
  %1065 = vst [vmem:[%s7 + $0xb0] sm:$0xff] %v1001
  %1066 = vst [vmem:[%s7 + $0xb8] sm:$0xff] %v1002
  %1067 = vst [vmem:[%s7 + $0xc0] sm:$0xff] %v1003
  %1068 = vst [vmem:[%s7 + $0xc8] sm:$0xff] %v1004
  %1069 = vst [vmem:[%s7 + $0xd0] sm:$0xff] %v1005
  %1070 = vst [vmem:[%s7 + $0xd8] sm:$0xff] %v1006
  %1071 = vst [vmem:[%s7 + $0xe0] sm:$0xff] %v1007
  %1072 = vst [vmem:[%s7 + $0xe8] sm:$0xff] %v1008
  %1073 = vst [vmem:[%s7 + $0xf0] sm:$0xff] %v1009
  %1074 = vst [vmem:[%s7 + $0xf8] sm:$0xff] %v1010
  %1075 = vst [vmem:[%s7 + $0x100] sm:$0xff] %v1011
  %1076 = vst [vmem:[%s7 + $0x108] sm:$0xff] %v1012
  %1077 = vst [vmem:[%s7 + $0x110] sm:$0xff] %v1013
  %1078 = vst [vmem:[%s7 + $0x118] sm:$0xff] %v1014
  %1079 = vst [vmem:[%s7 + $0x120] sm:$0xff] %v1015
  %1080 = vst [vmem:[%s7 + $0x128] sm:$0xff] %v1016
  %1081 = vst [vmem:[%s7 + $0x130] sm:$0xff] %v1017
  %1082 = vst [vmem:[%s7 + $0x138] sm:$0xff] %v1018
  %1083 = vst [vmem:[%s7 + $0x140] sm:$0xff] %v1019
  %1084 = vst [vmem:[%s7 + $0x148] sm:$0xff] %v1020
  %1085 = vst [vmem:[%s7 + $0x150] sm:$0xff] %v1021
  %1086 = vst [vmem:[%s7 + $0x158] sm:$0xff] %v1022
  %1087 = vst [vmem:[%s7 + $0x160] sm:$0xff] %v1023
  %1088 = vst [vmem:[%s7 + $0x168] sm:$0xff] %v1024
  %1089 = vst [vmem:[%s7 + $0x170] sm:$0xff] %v1025
  %1090 = vst [vmem:[%s7 + $0x178] sm:$0xff] %v1026
  %1091 = vst [vmem:[%s7 + $0x180] sm:$0xff] %v1027
  %1092 = vst [vmem:[%s7 + $0x188] sm:$0xff] %v1028
  %1093 = vst [vmem:[%s7 + $0x190] sm:$0xff] %v1029
  %1094 = vst [vmem:[%s7 + $0x198] sm:$0xff] %v1030
  %1095 = vst [vmem:[%s7 + $0x1a0] sm:$0xff] %v1031
  %1096 = vst [vmem:[%s7 + $0x1a8] sm:$0xff] %v1032
  %1097 = vst [vmem:[%s7 + $0x1b0] sm:$0xff] %v1033
  %1098 = vst [vmem:[%s7 + $0x1b8] sm:$0xff] %v1034
  %1099 = vst [vmem:[%s7 + $0x1c0] sm:$0xff] %v1035
  %1100 = vst [vmem:[%s7 + $0x1c8] sm:$0xff] %v1036
  %1101 = vst [vmem:[%s7 + $0x1d0] sm:$0xff] %v1037
  %1102 = vst [vmem:[%s7 + $0x1d8] sm:$0xff] %v1038
  %1103 = vst [vmem:[%s7 + $0x1e0] sm:$0xff] %v1039
  %1104 = vst [vmem:[%s7 + $0x1e8] sm:$0xff] %v1040
  %1105 = vst [vmem:[%s7 + $0x1f0] sm:$0xff] %v1041
  %1106 = vst [vmem:[%s7 + $0x1f8] sm:$0xff] %v1042
  // Predicated region
  $region30: #{basic_block_forward.9} parent=0 // pred_check
    _
  $region31: #{basic_block_forward.9} parent=0 // pred_check_branch
    %1108 = sbr.rel (0) target = $region33
  $region32: #{basic_block_forward.9} parent=0 // pred_region
    _
  $region33: #{basic_block_forward.9} parent=0 // pred_fallthru
    _
  // Predicated region
  $region34: #{basic_block_forward.9} parent=0 // pred_check
    _
  $region35: #{basic_block_forward.9} parent=0 // pred_check_branch
    %1110 = sbr.rel (0) target = $region37
  $region36: #{basic_block_forward.9} parent=0 // pred_region
    _
  $region37: #{basic_block_forward.9} parent=0 // pred_fallthru
    _

// kernel: basic_block_forward.5
$region0: #{basic_block_forward.5}
  #allocation0 [shape = 'u32[]', space=smem, size = 0x4, offset = 0x4, fixed_abs, tag = 'smem constant byte address 0x4 - core index']
  #allocation1 [shape = 'u32[72,128]{1,0:T(1,128)}', space=vmem, size = 0x9000, scoped, tag = 'internal scratch']
  %s0 = inlined_call_operand.vmem [shape: bf16[2,18,18,128], index: 0, kind: input, shape index: {}]
  %s1 = inlined_call_operand.vmem [shape: bf16[1152,128], index: 1, kind: input, shape index: {}]
  %s2 = inlined_call_operand.vmem [shape: bf16[512,128], index: 2, kind: output, shape index: {0}]
  %s3 = inlined_call_operand.vmem [shape: f32[16,128], index: 3, kind: output, shape index: {1}]
  %4 = xla_tuple %s2, %s3
  %s5 = sld [smem:[#allocation0]]
  $region49: #{basic_block_forward.5} parent=0
    _
  %s7 = ssub.s32 1, %s5
  %s8 = scalar_select 0, %s7, %s5
  loop: start=0, step=1, limit=4
  $region2: #{basic_block_forward.5} parent=0 // loop_pre_header
    _
  $region3: #{basic_block_forward.5} parent=0 // loop_header
    %s10 = sphi 0, %s14
    %p11 = scmp.ge.s32.totalorder %s10, 4
    %s20 = sphi 0, %s22
    %s23 = sphi 0, %s20
    %s24 = sphi 0, %s23
    %s40 = sphi 0, %s24
    %s44 = sphi 0, %s44
    %s46 = sphi 0, %s44
    %s47 = sphi 0, %s46
    %s61 = sphi 0, %s47
    %s67 = sphi 0, %s69
    %s70 = sphi 0, %s67
    %s71 = sphi 0, %s70
    %s87 = sphi 0, %s71
    %s93 = sphi 0, %s95
    %s96 = sphi 0, %s93
    %s97 = sphi 0, %s96
    %s113 = sphi 0, %s97
  $region4: #{basic_block_forward.5} parent=0 // loop_header_branch
    %13 = sbr.rel (%p11) target = $region8
  $region5: #{basic_block_forward.5} parent=0 // loop_body
    %s15 = ssub.s32 %s10, 1
    %s16 = ssub.s32 %s10, 2
    %s17 = sadd.s32 %s10, 1
    %s18 = ssub.s32 %s10, %s17
    %p19 = scmp.eq.s32.totalorder %s18, 0
    %s21 = sadd.s32 %s20, 1
    %s22 = scalar_select %p19, %s20, %s21
    %p25 = pneg %p19
    %p26 = scmp.eq.s32.totalorder %s10, 1
    %p27 = por %p25, %p26
    %p28 = scmp.ne.s32.totalorder %s20, %s23
    %p29 = scmp.eq.s32.totalorder %s10, 0
    %p30 = por %p28, %p29
    %p31 = scmp.ne.s32.totalorder %s20, %s23
    %p32 = scmp.eq.s32.totalorder %s15, 1
    %p33 = por %p31, %p32
    %p34 = scmp.ne.s32.totalorder %s23, %s24
    %p35 = scmp.eq.s32.totalorder %s15, 0
    %p36 = por %p34, %p35
    %p37 = scmp.ne.s32.totalorder %s23, %s24
    %p38 = scmp.eq.s32.totalorder %s16, 1
    %p39 = por %p37, %p38
    %p41 = scmp.ne.s32.totalorder %s24, %s40
    %p42 = scmp.eq.s32.totalorder %s16, 0
    %p43 = por %p41, %p42
    %s45 = sadd.s32 %s44, 1
    %p48 = scmp.eq.s32.totalorder %s10, 1
    %p49 = scmp.ne.s32.totalorder %s44, %s46
    %p50 = scmp.eq.s32.totalorder %s10, 0
    %p51 = por %p49, %p50
    %p52 = scmp.ne.s32.totalorder %s44, %s46
    %p53 = scmp.eq.s32.totalorder %s15, 1
    %p54 = por %p52, %p53
    %p55 = scmp.ne.s32.totalorder %s46, %s47
    %p56 = scmp.eq.s32.totalorder %s15, 0
    %p57 = por %p55, %p56
    %p58 = scmp.ne.s32.totalorder %s46, %s47
    %p59 = scmp.eq.s32.totalorder %s16, 1
    %p60 = por %p58, %p59
    %p62 = scmp.ne.s32.totalorder %s47, %s61
    %p63 = scmp.eq.s32.totalorder %s16, 0
    %p64 = por %p62, %p63
    %s65 = ssub.s32 %s10, %s17
    %p66 = scmp.eq.s32.totalorder %s65, 0
    %s68 = sadd.s32 %s67, 1
    %s69 = scalar_select %p66, %s67, %s68
    %p72 = pneg %p66
    %p73 = scmp.eq.s32.totalorder %s10, 1
    %p74 = por %p72, %p73
    %p75 = scmp.ne.s32.totalorder %s67, %s70
    %p76 = scmp.eq.s32.totalorder %s10, 0
    %p77 = por %p75, %p76
    %p78 = scmp.ne.s32.totalorder %s67, %s70
    %p79 = scmp.eq.s32.totalorder %s15, 1
    %p80 = por %p78, %p79
    %p81 = scmp.ne.s32.totalorder %s70, %s71
    %p82 = scmp.eq.s32.totalorder %s15, 0
    %p83 = por %p81, %p82
    %p84 = scmp.ne.s32.totalorder %s70, %s71
    %p85 = scmp.eq.s32.totalorder %s16, 1
    %p86 = por %p84, %p85
    %p88 = scmp.ne.s32.totalorder %s71, %s87
    %p89 = scmp.eq.s32.totalorder %s16, 0
    %p90 = por %p88, %p89
    %s91 = ssub.s32 %s10, %s17
    %p92 = scmp.eq.s32.totalorder %s91, 0
    %s94 = sadd.s32 %s93, 1
    %s95 = scalar_select %p92, %s93, %s94
    %p98 = pneg %p92
    %p99 = scmp.eq.s32.totalorder %s10, 1
    %p100 = por %p98, %p99
    %p101 = scmp.ne.s32.totalorder %s93, %s96
    %p102 = scmp.eq.s32.totalorder %s10, 0
    %p103 = por %p101, %p102
    %p104 = scmp.ne.s32.totalorder %s93, %s96
    %p105 = scmp.eq.s32.totalorder %s15, 1
    %p106 = por %p104, %p105
    %p107 = scmp.ne.s32.totalorder %s96, %s97
    %p108 = scmp.eq.s32.totalorder %s15, 0
    %p109 = por %p107, %p108
    %p110 = scmp.ne.s32.totalorder %s96, %s97
    %p111 = scmp.eq.s32.totalorder %s16, 1
    %p112 = por %p110, %p111
    %p114 = scmp.ne.s32.totalorder %s97, %s113
    %p115 = scmp.eq.s32.totalorder %s16, 0
    %p116 = por %p114, %p115
    %p117 = scmp.le.s32.totalorder 1, %s10
    %p118 = scmp.lt.s32.totalorder %s10, 3
    %p119 = pnand %p117, %p118
    %p120 = pneg %p119
    // Predicated region
    $region9: #{basic_block_forward.5} parent=5 // pred_check
      _
    $region10: #{basic_block_forward.5} parent=5 // pred_check_branch
      %122 = sbr.rel (%p119) target = $region12
    $region11: #{basic_block_forward.5} parent=5 // pred_region
      %s123 = ssub.s32 %s10, 1
      // Predicated region
      $region13: #{basic_block_forward.5} parent=11 // pred_check
        %p124 = pneg %p57
      $region14: #{basic_block_forward.5} parent=11 // pred_check_branch
        %126 = sbr.rel (%p124) target = $region16
      $region15: #{basic_block_forward.5} parent=11 // pred_region
        _
      $region16: #{basic_block_forward.5} parent=11 // pred_fallthru
        _
    $region12: #{basic_block_forward.5} parent=5 // pred_fallthru
      _
    %p127 = scmp.lt.s32.totalorder %s10, 2
    // Predicated region
    $region17: #{basic_block_forward.5} parent=5 // pred_check
      %p128 = pneg %p127
    $region18: #{basic_block_forward.5} parent=5 // pred_check_branch
      %130 = sbr.rel (%p128) target = $region20
    $region19: #{basic_block_forward.5} parent=5 // pred_region
      // Predicated region
      $region21: #{basic_block_forward.5} parent=19 // pred_check
        %p131 = pneg %p30
      $region22: #{basic_block_forward.5} parent=19 // pred_check_branch
        %133 = sbr.rel (%p131) target = $region24
      $region23: #{basic_block_forward.5} parent=19 // pred_region
        %p134 = scmp.lt.s32.totalorder %s10, 1
        %s135 = scalar_select %p134, %s10, 1
        %s136 = smul.addr %s135, 54
        %s137 = smul.addr %s136, 4
        %s138 = scalar_lea.vmem %s0, %s137
      $region24: #{basic_block_forward.5} parent=19 // pred_fallthru
        _
    $region20: #{basic_block_forward.5} parent=5 // pred_fallthru
      _
    %p139 = scmp.le.s32.totalorder 1, %s10
    %p140 = scmp.lt.s32.totalorder %s10, 3
    %p141 = pnand %p139, %p140
    %p142 = pneg %p141
    // Predicated region
    $region25: #{basic_block_forward.5} parent=5 // pred_check
      _
    $region26: #{basic_block_forward.5} parent=5 // pred_check_branch
      %144 = sbr.rel (%p141) target = $region28
    $region27: #{basic_block_forward.5} parent=5 // pred_region
      %s145 = ssub.s32 %s10, 1
      %p146 = scmp.lt.s32.totalorder %s15, 1
      %s147 = scalar_select %p146, %s15, 1
      %s148 = smul.addr %s147, 54
      %s149 = smul.addr %s148, 4
      %s150 = scalar_lea.vmem %s0, %s149
      %p151 = pneg %p36
      %p152 = pneg %p33
      %p153 = pneg %p57
      %p154 = pneg %p54
      %p155 = pneg %p83
      %p156 = pneg %p80
      %s157 = smul.u32 32, %s15
      %p158 = scmp.lt.s32.totalorder %s157, 63
      %s159 = scalar_select %p158, %s157, 63
      %s160 = smul.addr %s159, 4
      %s161 = scalar_lea.vmem %s2, %s160
      %p162 = pneg %p109
      %p163 = pneg %p106
      %p164 = scmp.lt.s32.totalorder %s15, 1
      %s165 = scalar_select %p164, %s15, 1
      %s166 = smul.addr %s165, 8
      %s167 = scalar_lea.vmem %s3, %s166
      %p168 = scmp.lt.s32.totalorder %s15, 1
      %s169 = scalar_select %p168, %s15, 1
      %s170 = smul.addr %s169, 54
      %s171 = smul.addr %s170, 4
      %s172 = scalar_lea.vmem %s0, %s171
      %s173 = smul.u32 32, %s15
      %p174 = scmp.lt.s32.totalorder %s173, 63
      %s175 = scalar_select %p174, %s173, 63
      %s176 = smul.addr %s175, 4
      %s177 = scalar_lea.vmem %s2, %s176
      %s178 = smul.u32 32, %s15
      %p179 = scmp.lt.s32.totalorder %s15, 1
      %s180 = scalar_select %p179, %s15, 1
      %s181 = smul.addr %s180, 8
      %s182 = scalar_lea.vmem %s3, %s181
      %v183 = vld [vmem:[%s172] sm:$0xf]
      %v184 = vld [vmem:[%s172 + $0x4] sm:$0xf]
      %v185 = vld [vmem:[%s172 + $0xc] sm:$0xf]
      %v186 = vld [vmem:[%s172 + $0x10] sm:$0xf]
      %v187 = vld [vmem:[%s172 + $0x18] sm:$0xf]
      %v188 = vld [vmem:[%s172 + $0x1c] sm:$0xf]
      %v189 = vld [vmem:[%s172 + $0x24] sm:$0xf]
      %v190 = vld [vmem:[%s172 + $0x28] sm:$0xf]
      %v191 = vld [vmem:[%s172 + $0x30] sm:$0xf]
      %v192 = vld [vmem:[%s172 + $0x34] sm:$0xf]
      %v193 = vld [vmem:[%s172 + $0x3c] sm:$0xf]
      %v194 = vld [vmem:[%s172 + $0x40] sm:$0xf]
      %v195 = vld [vmem:[%s172 + $0x48] sm:$0xf]
      %v196 = vld [vmem:[%s172 + $0x4c] sm:$0xf]
      %v197 = vld [vmem:[%s172 + $0x54] sm:$0xf]
      %v198 = vld [vmem:[%s172 + $0x58] sm:$0xf]
      %v199 = vld [vmem:[%s172 + $0x60] sm:$0xf]
      %v200 = vld [vmem:[%s172 + $0x64] sm:$0xf]
      %v201 = vld [vmem:[%s172 + $0x6c] sm:$0xf]
      %v202 = vld [vmem:[%s172 + $0x70] sm:$0xf]
      %v203 = vld [vmem:[%s172 + $0x78] sm:$0xf]
      %v204 = vld [vmem:[%s172 + $0x7c] sm:$0xf]
      %v205 = vld [vmem:[%s172 + $0x84] sm:$0xf]
      %v206 = vld [vmem:[%s172 + $0x88] sm:$0xf]
      %v207 = vld [vmem:[%s172 + $0x90] sm:$0xf]
      %v208 = vld [vmem:[%s172 + $0x94] sm:$0xf]
      %v209 = vld [vmem:[%s172 + $0x9c] sm:$0xf]
      %v210 = vld [vmem:[%s172 + $0xa0] sm:$0xf]
      %v211 = vld [vmem:[%s172 + $0xa8] sm:$0xf]
      %v212 = vld [vmem:[%s172 + $0xac] sm:$0xf]
      %v213 = vld [vmem:[%s172 + $0xb4] sm:$0xf]
      %v214 = vld [vmem:[%s172 + $0xb8] sm:$0xf]
      %v215 = vld [vmem:[%s1] sm:$0xf]
      %v216 = vld [vmem:[%s1 + $0x4] sm:$0xf]
      %v217 = vld [vmem:[%s1 + $0x8] sm:$0xf]
      %v218 = vld [vmem:[%s1 + $0xc] sm:$0xf]
      %v219 = vld [vmem:[%s1 + $0x10] sm:$0xf]
      %v220 = vld [vmem:[%s1 + $0x14] sm:$0xf]
      %v221 = vld [vmem:[%s1 + $0x18] sm:$0xf]
      %v222 = vld [vmem:[%s1 + $0x1c] sm:$0xf]
      %v223 = vld [vmem:[%s1 + $0x20] sm:$0xf]
      %v224 = vld [vmem:[%s1 + $0x24] sm:$0xf]
      %v225 = vld [vmem:[%s1 + $0x28] sm:$0xf]
      %v226 = vld [vmem:[%s1 + $0x2c] sm:$0xf]
      %v227 = vld [vmem:[%s1 + $0x30] sm:$0xf]
      %v228 = vld [vmem:[%s1 + $0x34] sm:$0xf]
      %v229 = vld [vmem:[%s1 + $0x38] sm:$0xf]
      %v230 = vld [vmem:[%s1 + $0x3c] sm:$0xf]
      %v231 = vld [vmem:[%s172 + $0x8] sm:$0x1]
      %v232 = vld [vmem:[%s172 + $0x14] sm:$0x1]
      %v233 = vld [vmem:[%s172 + $0x20] sm:$0x1]
      %v234 = vld [vmem:[%s172 + $0x2c] sm:$0x1]
      %v235 = vld [vmem:[%s172 + $0x38] sm:$0x1]
      %v236 = vld [vmem:[%s172 + $0x44] sm:$0x1]
      %v237 = vld [vmem:[%s172 + $0x50] sm:$0x1]
      %v238 = vld [vmem:[%s172 + $0x5c] sm:$0x1]
      %v239 = vld [vmem:[%s172 + $0x68] sm:$0x1]
      %v240 = vld [vmem:[%s172 + $0x74] sm:$0x1]
      %v241 = vld [vmem:[%s172 + $0x80] sm:$0x1]
      %v242 = vld [vmem:[%s172 + $0x8c] sm:$0x1]
      %v243 = vld [vmem:[%s172 + $0x98] sm:$0x1]
      %v244 = vld [vmem:[%s172 + $0xa4] sm:$0x1]
      %v245 = vld [vmem:[%s172 + $0xb0] sm:$0x1]
      %v246 = vld [vmem:[%s172 + $0xbc] sm:$0x1]
      %vm247 = vsmask.f32 3328
      %vm248 = vsmask.f32 7440
      %vm249 = vmor %vm247, %vm248
      %v251 = vshrl.u32 %v183, 16
      %v253 = vrot.slane %v251, 4
      %v254 = vshll.u32 %v183, 16
      %v256 = vrot.slane %v254, 5
      %v257 = vor.u32 %v253, %v256
      %v258 = vrot.slane %v257, 4
      %v260 = vshll.u32 %v184, 16
      %v262 = vrot.slane %v260, 5
      %v263 = vsel %vm249, %v258, %v262
      %v264 = vshrl.u32 %v184, 16
      %v266 = vrot.slane %v264, 4
      %v267 = vor.u32 %v266, %v262
      %v268 = vrot.slane %v267, 4
      %v270 = vshll.u32 %v231, 16
      %v272 = vrot.slane %v270, 5
      %v273 = vsel %vm249, %v268, %v272
      %v275 = vshrl.u32 %v185, 16
      %v277 = vrot.slane %v275, 4
      %v278 = vshll.u32 %v185, 16
      %v280 = vrot.slane %v278, 5
      %v281 = vor.u32 %v277, %v280
      %v282 = vrot.slane %v281, 4
      %v284 = vshll.u32 %v186, 16
      %v286 = vrot.slane %v284, 5
      %v287 = vsel %vm249, %v282, %v286
      %v288 = vshrl.u32 %v186, 16
      %v290 = vrot.slane %v288, 4
      %v291 = vor.u32 %v290, %v286
      %v292 = vrot.slane %v291, 4
      %v294 = vshll.u32 %v232, 16
      %v296 = vrot.slane %v294, 5
      %v297 = vsel %vm249, %v292, %v296
      %v299 = vshrl.u32 %v187, 16
      %v301 = vrot.slane %v299, 4
      %v302 = vshll.u32 %v187, 16
      %v304 = vrot.slane %v302, 5
      %v305 = vor.u32 %v301, %v304
      %v306 = vrot.slane %v305, 4
      %v308 = vshll.u32 %v188, 16
      %v310 = vrot.slane %v308, 5
      %v311 = vsel %vm249, %v306, %v310
      %v312 = vshrl.u32 %v188, 16
      %v314 = vrot.slane %v312, 4
      %v315 = vor.u32 %v314, %v310
      %v316 = vrot.slane %v315, 4
      %v318 = vshll.u32 %v233, 16
      %v320 = vrot.slane %v318, 5
      %v321 = vsel %vm249, %v316, %v320
      %v323 = vshrl.u32 %v189, 16
      %v325 = vrot.slane %v323, 4
      %v326 = vshll.u32 %v189, 16
      %v328 = vrot.slane %v326, 5
      %v329 = vor.u32 %v325, %v328
      %v330 = vrot.slane %v329, 4
      %v332 = vshll.u32 %v190, 16
      %v334 = vrot.slane %v332, 5
      %v335 = vsel %vm249, %v330, %v334
      %v336 = vshrl.u32 %v190, 16
      %v338 = vrot.slane %v336, 4
      %v339 = vor.u32 %v338, %v334
      %v340 = vrot.slane %v339, 4
      %v342 = vshll.u32 %v234, 16
      %v344 = vrot.slane %v342, 5
      %v345 = vsel %vm249, %v340, %v344
      %v347 = vshrl.u32 %v191, 16
      %v349 = vrot.slane %v347, 4
      %v350 = vshll.u32 %v191, 16
      %v352 = vrot.slane %v350, 5
      %v353 = vor.u32 %v349, %v352
      %v354 = vrot.slane %v353, 4
      %v356 = vshll.u32 %v192, 16
      %v358 = vrot.slane %v356, 5
      %v359 = vsel %vm249, %v354, %v358
      %v360 = vshrl.u32 %v192, 16
      %v362 = vrot.slane %v360, 4
      %v363 = vor.u32 %v362, %v358
      %v364 = vrot.slane %v363, 4
      %v366 = vshll.u32 %v235, 16
      %v368 = vrot.slane %v366, 5
      %v369 = vsel %vm249, %v364, %v368
      %v371 = vshrl.u32 %v193, 16
      %v373 = vrot.slane %v371, 4
      %v374 = vshll.u32 %v193, 16
      %v376 = vrot.slane %v374, 5
      %v377 = vor.u32 %v373, %v376
      %v378 = vrot.slane %v377, 4
      %v380 = vshll.u32 %v194, 16
      %v382 = vrot.slane %v380, 5
      %v383 = vsel %vm249, %v378, %v382
      %v384 = vshrl.u32 %v194, 16
      %v386 = vrot.slane %v384, 4
      %v387 = vor.u32 %v386, %v382
      %v388 = vrot.slane %v387, 4
      %v390 = vshll.u32 %v236, 16
      %v392 = vrot.slane %v390, 5
      %v393 = vsel %vm249, %v388, %v392
      %v395 = vshrl.u32 %v195, 16
      %v397 = vrot.slane %v395, 4
      %v398 = vshll.u32 %v195, 16
      %v400 = vrot.slane %v398, 5
      %v401 = vor.u32 %v397, %v400
      %v402 = vrot.slane %v401, 4
      %v404 = vshll.u32 %v196, 16
      %v406 = vrot.slane %v404, 5
      %v407 = vsel %vm249, %v402, %v406
      %v408 = vshrl.u32 %v196, 16
      %v410 = vrot.slane %v408, 4
      %v411 = vor.u32 %v410, %v406
      %v412 = vrot.slane %v411, 4
      %v414 = vshll.u32 %v237, 16
      %v416 = vrot.slane %v414, 5
      %v417 = vsel %vm249, %v412, %v416
      %v419 = vshrl.u32 %v197, 16
      %v421 = vrot.slane %v419, 4
      %v422 = vshll.u32 %v197, 16
      %v424 = vrot.slane %v422, 5
      %v425 = vor.u32 %v421, %v424
      %v426 = vrot.slane %v425, 4
      %v428 = vshll.u32 %v198, 16
      %v430 = vrot.slane %v428, 5
      %v431 = vsel %vm249, %v426, %v430
      %v432 = vshrl.u32 %v198, 16
      %v434 = vrot.slane %v432, 4
      %v435 = vor.u32 %v434, %v430
      %v436 = vrot.slane %v435, 4
      %v438 = vshll.u32 %v238, 16
      %v440 = vrot.slane %v438, 5
      %v441 = vsel %vm249, %v436, %v440
      %v443 = vshrl.u32 %v199, 16
      %v445 = vrot.slane %v443, 4
      %v446 = vshll.u32 %v199, 16
      %v448 = vrot.slane %v446, 5
      %v449 = vor.u32 %v445, %v448
      %v450 = vrot.slane %v449, 4
      %v452 = vshll.u32 %v200, 16
      %v454 = vrot.slane %v452, 5
      %v455 = vsel %vm249, %v450, %v454
      %v456 = vshrl.u32 %v200, 16
      %v458 = vrot.slane %v456, 4
      %v459 = vor.u32 %v458, %v454
      %v460 = vrot.slane %v459, 4
      %v462 = vshll.u32 %v239, 16
      %v464 = vrot.slane %v462, 5
      %v465 = vsel %vm249, %v460, %v464
      %v467 = vshrl.u32 %v201, 16
      %v469 = vrot.slane %v467, 4
      %v470 = vshll.u32 %v201, 16
      %v472 = vrot.slane %v470, 5
      %v473 = vor.u32 %v469, %v472
      %v474 = vrot.slane %v473, 4
      %v476 = vshll.u32 %v202, 16
      %v478 = vrot.slane %v476, 5
      %v479 = vsel %vm249, %v474, %v478
      %v480 = vshrl.u32 %v202, 16
      %v482 = vrot.slane %v480, 4
      %v483 = vor.u32 %v482, %v478
      %v484 = vrot.slane %v483, 4
      %v486 = vshll.u32 %v240, 16
      %v488 = vrot.slane %v486, 5
      %v489 = vsel %vm249, %v484, %v488
      %v491 = vshrl.u32 %v203, 16
      %v493 = vrot.slane %v491, 4
      %v494 = vshll.u32 %v203, 16
      %v496 = vrot.slane %v494, 5
      %v497 = vor.u32 %v493, %v496
      %v498 = vrot.slane %v497, 4
      %v500 = vshll.u32 %v204, 16
      %v502 = vrot.slane %v500, 5
      %v503 = vsel %vm249, %v498, %v502
      %v504 = vshrl.u32 %v204, 16
      %v506 = vrot.slane %v504, 4
      %v507 = vor.u32 %v506, %v502
      %v508 = vrot.slane %v507, 4
      %v510 = vshll.u32 %v241, 16
      %v512 = vrot.slane %v510, 5
      %v513 = vsel %vm249, %v508, %v512
      %v515 = vshrl.u32 %v205, 16
      %v517 = vrot.slane %v515, 4
      %v518 = vshll.u32 %v205, 16
      %v520 = vrot.slane %v518, 5
      %v521 = vor.u32 %v517, %v520
      %v522 = vrot.slane %v521, 4
      %v524 = vshll.u32 %v206, 16
      %v526 = vrot.slane %v524, 5
      %v527 = vsel %vm249, %v522, %v526
      %v528 = vshrl.u32 %v206, 16
      %v530 = vrot.slane %v528, 4
      %v531 = vor.u32 %v530, %v526
      %v532 = vrot.slane %v531, 4
      %v534 = vshll.u32 %v242, 16
      %v536 = vrot.slane %v534, 5
      %v537 = vsel %vm249, %v532, %v536
      %v539 = vshrl.u32 %v207, 16
      %v541 = vrot.slane %v539, 4
      %v542 = vshll.u32 %v207, 16
      %v544 = vrot.slane %v542, 5
      %v545 = vor.u32 %v541, %v544
      %v546 = vrot.slane %v545, 4
      %v548 = vshll.u32 %v208, 16
      %v550 = vrot.slane %v548, 5
      %v551 = vsel %vm249, %v546, %v550
      %v552 = vshrl.u32 %v208, 16
      %v554 = vrot.slane %v552, 4
      %v555 = vor.u32 %v554, %v550
      %v556 = vrot.slane %v555, 4
      %v558 = vshll.u32 %v243, 16
      %v560 = vrot.slane %v558, 5
      %v561 = vsel %vm249, %v556, %v560
      %v563 = vshrl.u32 %v209, 16
      %v565 = vrot.slane %v563, 4
      %v566 = vshll.u32 %v209, 16
      %v568 = vrot.slane %v566, 5
      %v569 = vor.u32 %v565, %v568
      %v570 = vrot.slane %v569, 4
      %v572 = vshll.u32 %v210, 16
      %v574 = vrot.slane %v572, 5
      %v575 = vsel %vm249, %v570, %v574
      %v576 = vshrl.u32 %v210, 16
      %v578 = vrot.slane %v576, 4
      %v579 = vor.u32 %v578, %v574
      %v580 = vrot.slane %v579, 4
      %v582 = vshll.u32 %v244, 16
      %v584 = vrot.slane %v582, 5
      %v585 = vsel %vm249, %v580, %v584
      %v587 = vshrl.u32 %v211, 16
      %v589 = vrot.slane %v587, 4
      %v590 = vshll.u32 %v211, 16
      %v592 = vrot.slane %v590, 5
      %v593 = vor.u32 %v589, %v592
      %v594 = vrot.slane %v593, 4
      %v596 = vshll.u32 %v212, 16
      %v598 = vrot.slane %v596, 5
      %v599 = vsel %vm249, %v594, %v598
      %v600 = vshrl.u32 %v212, 16
      %v602 = vrot.slane %v600, 4
      %v603 = vor.u32 %v602, %v598
      %v604 = vrot.slane %v603, 4
      %v606 = vshll.u32 %v245, 16
      %v608 = vrot.slane %v606, 5
      %v609 = vsel %vm249, %v604, %v608
      %v611 = vshrl.u32 %v213, 16
      %v613 = vrot.slane %v611, 4
      %v614 = vshll.u32 %v213, 16
      %v616 = vrot.slane %v614, 5
      %v617 = vor.u32 %v613, %v616
      %v618 = vrot.slane %v617, 4
      %v620 = vshll.u32 %v214, 16
      %v622 = vrot.slane %v620, 5
      %v623 = vsel %vm249, %v618, %v622
      %v624 = vshrl.u32 %v214, 16
      %v626 = vrot.slane %v624, 4
      %v627 = vor.u32 %v626, %v622
      %v628 = vrot.slane %v627, 4
      %v630 = vshll.u32 %v246, 16
      %v632 = vrot.slane %v630, 5
      %v633 = vsel %vm249, %v628, %v632
      %v634 = vld [vmem:[%s1 + $0x40] sm:$0xf]
      %v635 = vld [vmem:[%s1 + $0x44] sm:$0xf]
      %v636 = vld [vmem:[%s1 + $0x48] sm:$0xf]
      %v637 = vld [vmem:[%s1 + $0x4c] sm:$0xf]
      %v638 = vld [vmem:[%s1 + $0x50] sm:$0xf]
      %v639 = vld [vmem:[%s1 + $0x54] sm:$0xf]
      %v640 = vld [vmem:[%s1 + $0x58] sm:$0xf]
      %v641 = vld [vmem:[%s1 + $0x5c] sm:$0xf]
      %v642 = vld [vmem:[%s1 + $0x60] sm:$0xf]
      %v643 = vld [vmem:[%s1 + $0x64] sm:$0xf]
      %v644 = vld [vmem:[%s1 + $0x68] sm:$0xf]
      %v645 = vld [vmem:[%s1 + $0x6c] sm:$0xf]
      %v646 = vld [vmem:[%s1 + $0x70] sm:$0xf]
      %v647 = vld [vmem:[%s1 + $0x74] sm:$0xf]
      %v648 = vld [vmem:[%s1 + $0x78] sm:$0xf]
      %v649 = vld [vmem:[%s1 + $0x7c] sm:$0xf]
      %v650 = vunpack.c.l.b16 %v263
      %v651 = vunpack.c.l.b16 %v273
      %v652 = vunpack.c.l.b16 %v287
      %v653 = vunpack.c.l.b16 %v297
      %v654 = vunpack.c.l.b16 %v311
      %v655 = vunpack.c.l.b16 %v321
      %v656 = vunpack.c.l.b16 %v335
      %v657 = vunpack.c.l.b16 %v345
      %v658 = vunpack.c.l.b16 %v359
      %v659 = vunpack.c.l.b16 %v369
      %v660 = vunpack.c.l.b16 %v383
      %v661 = vunpack.c.l.b16 %v393
      %v662 = vunpack.c.l.b16 %v407
      %v663 = vunpack.c.l.b16 %v417
      %v664 = vunpack.c.l.b16 %v431
      %v665 = vunpack.c.l.b16 %v441
      %v666 = vunpack.c.l.b16 %v455
      %v667 = vunpack.c.l.b16 %v465
      %v668 = vunpack.c.l.b16 %v479
      %v669 = vunpack.c.l.b16 %v489
      %v670 = vunpack.c.l.b16 %v503
      %v671 = vunpack.c.l.b16 %v513
      %v672 = vunpack.c.l.b16 %v527
      %v673 = vunpack.c.l.b16 %v537
      %v674 = vunpack.c.l.b16 %v551
      %v675 = vunpack.c.l.b16 %v561
      %v676 = vunpack.c.l.b16 %v575
      %v677 = vunpack.c.l.b16 %v585
      %v678 = vunpack.c.l.b16 %v599
      %v679 = vunpack.c.l.b16 %v609
      %v680 = vunpack.c.l.b16 %v623
      %v681 = vunpack.c.l.b16 %v633
      %v682 = vpack.c.b16 %v651, %v650
      %v683 = vpack.c.b16 %v653, %v652
      %v684 = vpack.c.b16 %v655, %v654
      %v685 = vpack.c.b16 %v657, %v656
      %v686 = vpack.c.b16 %v659, %v658
      %v687 = vpack.c.b16 %v661, %v660
      %v688 = vpack.c.b16 %v663, %v662
      %v689 = vpack.c.b16 %v665, %v664
      %v690 = vpack.c.b16 %v667, %v666
      %v691 = vpack.c.b16 %v669, %v668
      %v692 = vpack.c.b16 %v671, %v670
      %v693 = vpack.c.b16 %v673, %v672
      %v694 = vpack.c.b16 %v675, %v674
      %v695 = vpack.c.b16 %v677, %v676
      %v696 = vpack.c.b16 %v679, %v678
      %v697 = vpack.c.b16 %v681, %v680
      %v730 = vunpack.c.l.b16 %v634
      %v731 = vunpack.c.l.b16 %v635
      %v732 = vunpack.c.l.b16 %v636
      %v733 = vunpack.c.l.b16 %v637
      %v734 = vunpack.c.l.b16 %v638
      %v735 = vunpack.c.l.b16 %v639
      %v736 = vunpack.c.l.b16 %v640
      %v737 = vunpack.c.l.b16 %v641
      %v738 = vunpack.c.l.b16 %v642
      %v739 = vunpack.c.l.b16 %v643
      %v740 = vunpack.c.l.b16 %v644
      %v741 = vunpack.c.l.b16 %v645
      %v742 = vunpack.c.l.b16 %v646
      %v743 = vunpack.c.l.b16 %v647
      %v744 = vunpack.c.l.b16 %v648
      %v745 = vunpack.c.l.b16 %v649
      %v746 = vpack.c.b16 %v731, %v730
      %v747 = vpack.c.b16 %v733, %v732
      %v748 = vpack.c.b16 %v735, %v734
      %v749 = vpack.c.b16 %v737, %v736
      %v750 = vpack.c.b16 %v739, %v738
      %v751 = vpack.c.b16 %v741, %v740
      %v752 = vpack.c.b16 %v743, %v742
      %v753 = vpack.c.b16 %v745, %v744
      %762 = vmatpush.bf16.msra.mxu0 %v753
      %763 = vmatpush.bf16.msra.mxu0 %v752
      %764 = vmatpush.bf16.msra.mxu0 %v751
      %765 = vmatpush.bf16.msra.mxu0 %v750
      %766 = vmatpush.bf16.msra.mxu0 %v749
      %767 = vmatpush.bf16.msra.mxu0 %v748
      %768 = vmatpush.bf16.msra.mxu0 %v747
      %769 = vmatpush.bf16.msra.mxu0 %v746
      %770 = vmatmul.bf16.gmra.mxu0 %v682
      %v771 = vpop.f32.mrf.mxu0
      %v772 = vadd.f32 0.0, %v771
      %v773 = vpop.f32.mrf.mxu0
      %v774 = vadd.f32 0.0, %v773
      %775 = vmatmul.bf16.gmra.mxu0 %v683
      %v776 = vpop.f32.mrf.mxu0
      %v777 = vadd.f32 0.0, %v776
      %v778 = vpop.f32.mrf.mxu0
      %v779 = vadd.f32 0.0, %v778
      %780 = vmatmul.bf16.gmra.mxu0 %v684
      %v781 = vpop.f32.mrf.mxu0
      %v782 = vadd.f32 0.0, %v781
      %v783 = vpop.f32.mrf.mxu0
      %v784 = vadd.f32 0.0, %v783
      %785 = vmatmul.bf16.gmra.mxu0 %v685
      %v786 = vpop.f32.mrf.mxu0
      %v787 = vadd.f32 0.0, %v786
      %v788 = vpop.f32.mrf.mxu0
      %v789 = vadd.f32 0.0, %v788
      %790 = vmatmul.bf16.gmra.mxu0 %v686
      %v791 = vpop.f32.mrf.mxu0
      %v792 = vadd.f32 0.0, %v791
      %v793 = vpop.f32.mrf.mxu0
      %v794 = vadd.f32 0.0, %v793
      %795 = vmatmul.bf16.gmra.mxu0 %v687
      %v796 = vpop.f32.mrf.mxu0
      %v797 = vadd.f32 0.0, %v796
      %v798 = vpop.f32.mrf.mxu0
      %v799 = vadd.f32 0.0, %v798
      %800 = vmatmul.bf16.gmra.mxu0 %v688
      %v801 = vpop.f32.mrf.mxu0
      %v802 = vadd.f32 0.0, %v801
      %v803 = vpop.f32.mrf.mxu0
      %v804 = vadd.f32 0.0, %v803
      %805 = vmatmul.bf16.gmra.mxu0 %v689
      %v806 = vpop.f32.mrf.mxu0
      %v807 = vadd.f32 0.0, %v806
      %v808 = vpop.f32.mrf.mxu0
      %v809 = vadd.f32 0.0, %v808
      %810 = vmatmul.bf16.gmra.mxu0 %v690
      %v811 = vpop.f32.mrf.mxu0
      %v812 = vadd.f32 0.0, %v811
      %v813 = vpop.f32.mrf.mxu0
      %v814 = vadd.f32 0.0, %v813
      %815 = vmatmul.bf16.gmra.mxu0 %v691
      %v816 = vpop.f32.mrf.mxu0
      %v817 = vadd.f32 0.0, %v816
      %v818 = vpop.f32.mrf.mxu0
      %v819 = vadd.f32 0.0, %v818
      %820 = vmatmul.bf16.gmra.mxu0 %v692
      %v821 = vpop.f32.mrf.mxu0
      %v822 = vadd.f32 0.0, %v821
      %v823 = vpop.f32.mrf.mxu0
      %v824 = vadd.f32 0.0, %v823
      %825 = vmatmul.bf16.gmra.mxu0 %v693
      %v826 = vpop.f32.mrf.mxu0
      %v827 = vadd.f32 0.0, %v826
      %v828 = vpop.f32.mrf.mxu0
      %v829 = vadd.f32 0.0, %v828
      %830 = vmatmul.bf16.gmra.mxu0 %v694
      %v831 = vpop.f32.mrf.mxu0
      %v832 = vadd.f32 0.0, %v831
      %v833 = vpop.f32.mrf.mxu0
      %v834 = vadd.f32 0.0, %v833
      %835 = vmatmul.bf16.gmra.mxu0 %v695
      %v836 = vpop.f32.mrf.mxu0
      %v837 = vadd.f32 0.0, %v836
      %v838 = vpop.f32.mrf.mxu0
      %v839 = vadd.f32 0.0, %v838
      %840 = vmatmul.bf16.gmra.mxu0 %v696
      %v841 = vpop.f32.mrf.mxu0
      %v842 = vadd.f32 0.0, %v841
      %v843 = vpop.f32.mrf.mxu0
      %v844 = vadd.f32 0.0, %v843
      %845 = vmatmul.bf16.gmra.mxu0 %v697
      %v846 = vpop.f32.mrf.mxu0
      %v847 = vadd.f32 0.0, %v846
      %v848 = vpop.f32.mrf.mxu0
      %v849 = vadd.f32 0.0, %v848
      %850 = vdwg.mxu0
      %v883 = vunpack.c.l.b16 %v183
      %v884 = vunpack.c.l.b16 %v184
      %v885 = vunpack.c.l.b16 %v185
      %v886 = vunpack.c.l.b16 %v186
      %v887 = vunpack.c.l.b16 %v187
      %v888 = vunpack.c.l.b16 %v188
      %v889 = vunpack.c.l.b16 %v189
      %v890 = vunpack.c.l.b16 %v190
      %v891 = vunpack.c.l.b16 %v191
      %v892 = vunpack.c.l.b16 %v192
      %v893 = vunpack.c.l.b16 %v193
      %v894 = vunpack.c.l.b16 %v194
      %v895 = vunpack.c.l.b16 %v195
      %v896 = vunpack.c.l.b16 %v196
      %v897 = vunpack.c.l.b16 %v197
      %v898 = vunpack.c.l.b16 %v198
      %v899 = vunpack.c.l.b16 %v199
      %v900 = vunpack.c.l.b16 %v200
      %v901 = vunpack.c.l.b16 %v201
      %v902 = vunpack.c.l.b16 %v202
      %v903 = vunpack.c.l.b16 %v203
      %v904 = vunpack.c.l.b16 %v204
      %v905 = vunpack.c.l.b16 %v205
      %v906 = vunpack.c.l.b16 %v206
      %v907 = vunpack.c.l.b16 %v207
      %v908 = vunpack.c.l.b16 %v208
      %v909 = vunpack.c.l.b16 %v209
      %v910 = vunpack.c.l.b16 %v210
      %v911 = vunpack.c.l.b16 %v211
      %v912 = vunpack.c.l.b16 %v212
      %v913 = vunpack.c.l.b16 %v213
      %v914 = vunpack.c.l.b16 %v214
      %v915 = vpack.c.b16 %v884, %v883
      %v916 = vpack.c.b16 %v886, %v885
      %v917 = vpack.c.b16 %v888, %v887
      %v918 = vpack.c.b16 %v890, %v889
      %v919 = vpack.c.b16 %v892, %v891
      %v920 = vpack.c.b16 %v894, %v893
      %v921 = vpack.c.b16 %v896, %v895
      %v922 = vpack.c.b16 %v898, %v897
      %v923 = vpack.c.b16 %v900, %v899
      %v924 = vpack.c.b16 %v902, %v901
      %v925 = vpack.c.b16 %v904, %v903
      %v926 = vpack.c.b16 %v906, %v905
      %v927 = vpack.c.b16 %v908, %v907
      %v928 = vpack.c.b16 %v910, %v909
      %v929 = vpack.c.b16 %v912, %v911
      %v930 = vpack.c.b16 %v914, %v913
      %v963 = vunpack.c.l.b16 %v215
      %v964 = vunpack.c.l.b16 %v216
      %v965 = vunpack.c.l.b16 %v217
      %v966 = vunpack.c.l.b16 %v218
      %v967 = vunpack.c.l.b16 %v219
      %v968 = vunpack.c.l.b16 %v220
      %v969 = vunpack.c.l.b16 %v221
      %v970 = vunpack.c.l.b16 %v222
      %v971 = vunpack.c.l.b16 %v223
      %v972 = vunpack.c.l.b16 %v224
      %v973 = vunpack.c.l.b16 %v225
      %v974 = vunpack.c.l.b16 %v226
      %v975 = vunpack.c.l.b16 %v227
      %v976 = vunpack.c.l.b16 %v228
      %v977 = vunpack.c.l.b16 %v229
      %v978 = vunpack.c.l.b16 %v230
      %v979 = vpack.c.b16 %v964, %v963
      %v980 = vpack.c.b16 %v966, %v965
      %v981 = vpack.c.b16 %v968, %v967
      %v982 = vpack.c.b16 %v970, %v969
      %v983 = vpack.c.b16 %v972, %v971
      %v984 = vpack.c.b16 %v974, %v973
      %v985 = vpack.c.b16 %v976, %v975
      %v986 = vpack.c.b16 %v978, %v977
      %995 = vmatpush.bf16.msra.mxu0 %v986
      %996 = vmatpush.bf16.msra.mxu0 %v985
      %997 = vmatpush.bf16.msra.mxu0 %v984
      %998 = vmatpush.bf16.msra.mxu0 %v983
      %999 = vmatpush.bf16.msra.mxu0 %v982
      %1000 = vmatpush.bf16.msra.mxu0 %v981
      %1001 = vmatpush.bf16.msra.mxu0 %v980
      %1002 = vmatpush.bf16.msra.mxu0 %v979
      %1003 = vmatmul.bf16.gmra.mxu0 %v915
      %v1004 = vpop.f32.mrf.mxu0
      %v1005 = vadd.f32 %v772, %v1004
      %v1006 = vpop.f32.mrf.mxu0
      %v1007 = vadd.f32 %v774, %v1006
      %1008 = vmatmul.bf16.gmra.mxu0 %v916
      %v1009 = vpop.f32.mrf.mxu0
      %v1010 = vadd.f32 %v777, %v1009
      %v1011 = vpop.f32.mrf.mxu0
      %v1012 = vadd.f32 %v779, %v1011
      %1013 = vmatmul.bf16.gmra.mxu0 %v917
      %v1014 = vpop.f32.mrf.mxu0
      %v1015 = vadd.f32 %v782, %v1014
      %v1016 = vpop.f32.mrf.mxu0
      %v1017 = vadd.f32 %v784, %v1016
      %1018 = vmatmul.bf16.gmra.mxu0 %v918
      %v1019 = vpop.f32.mrf.mxu0
      %v1020 = vadd.f32 %v787, %v1019
      %v1021 = vpop.f32.mrf.mxu0
      %v1022 = vadd.f32 %v789, %v1021
      %1023 = vmatmul.bf16.gmra.mxu0 %v919
      %v1024 = vpop.f32.mrf.mxu0
      %v1025 = vadd.f32 %v792, %v1024
      %v1026 = vpop.f32.mrf.mxu0
      %v1027 = vadd.f32 %v794, %v1026
      %1028 = vmatmul.bf16.gmra.mxu0 %v920
      %v1029 = vpop.f32.mrf.mxu0
      %v1030 = vadd.f32 %v797, %v1029
      %v1031 = vpop.f32.mrf.mxu0
      %v1032 = vadd.f32 %v799, %v1031
      %1033 = vmatmul.bf16.gmra.mxu0 %v921
      %v1034 = vpop.f32.mrf.mxu0
      %v1035 = vadd.f32 %v802, %v1034
      %v1036 = vpop.f32.mrf.mxu0
      %v1037 = vadd.f32 %v804, %v1036
      %1038 = vmatmul.bf16.gmra.mxu0 %v922
      %v1039 = vpop.f32.mrf.mxu0
      %v1040 = vadd.f32 %v807, %v1039
      %v1041 = vpop.f32.mrf.mxu0
      %v1042 = vadd.f32 %v809, %v1041
      %1043 = vmatmul.bf16.gmra.mxu0 %v923
      %v1044 = vpop.f32.mrf.mxu0
      %v1045 = vadd.f32 %v812, %v1044
      %v1046 = vpop.f32.mrf.mxu0
      %v1047 = vadd.f32 %v814, %v1046
      %1048 = vmatmul.bf16.gmra.mxu0 %v924
      %v1049 = vpop.f32.mrf.mxu0
      %v1050 = vadd.f32 %v817, %v1049
      %v1051 = vpop.f32.mrf.mxu0
      %v1052 = vadd.f32 %v819, %v1051
      %1053 = vmatmul.bf16.gmra.mxu0 %v925
      %v1054 = vpop.f32.mrf.mxu0
      %v1055 = vadd.f32 %v822, %v1054
      %v1056 = vpop.f32.mrf.mxu0
      %v1057 = vadd.f32 %v824, %v1056
      %1058 = vmatmul.bf16.gmra.mxu0 %v926
      %v1059 = vpop.f32.mrf.mxu0
      %v1060 = vadd.f32 %v827, %v1059
      %v1061 = vpop.f32.mrf.mxu0
      %v1062 = vadd.f32 %v829, %v1061
      %1063 = vmatmul.bf16.gmra.mxu0 %v927
      %v1064 = vpop.f32.mrf.mxu0
      %v1065 = vadd.f32 %v832, %v1064
      %v1066 = vpop.f32.mrf.mxu0
      %v1067 = vadd.f32 %v834, %v1066
      %1068 = vmatmul.bf16.gmra.mxu0 %v928
      %v1069 = vpop.f32.mrf.mxu0
      %v1070 = vadd.f32 %v837, %v1069
      %v1071 = vpop.f32.mrf.mxu0
      %v1072 = vadd.f32 %v839, %v1071
      %1073 = vmatmul.bf16.gmra.mxu0 %v929
      %v1074 = vpop.f32.mrf.mxu0
      %v1075 = vadd.f32 %v842, %v1074
      %v1076 = vpop.f32.mrf.mxu0
      %v1077 = vadd.f32 %v844, %v1076
      %1078 = vmatmul.bf16.gmra.mxu0 %v930
      %v1079 = vpop.f32.mrf.mxu0
      %v1080 = vadd.f32 %v847, %v1079
      %v1081 = vpop.f32.mrf.mxu0
      %v1082 = vadd.f32 %v849, %v1081
      %1083 = vdwg.mxu0
      %v1084 = vld [vmem:[%s172] sm:$0xe]
      %v1085 = vld [vmem:[%s172 + $0xc] sm:$0xe]
      %v1086 = vld [vmem:[%s172 + $0x18] sm:$0xe]
      %v1087 = vld [vmem:[%s172 + $0x24] sm:$0xe]
      %v1088 = vld [vmem:[%s172 + $0x30] sm:$0xe]
      %v1089 = vld [vmem:[%s172 + $0x3c] sm:$0xe]
      %v1090 = vld [vmem:[%s172 + $0x48] sm:$0xe]
      %v1091 = vld [vmem:[%s172 + $0x54] sm:$0xe]
      %v1092 = vld [vmem:[%s172 + $0x60] sm:$0xe]
      %v1093 = vld [vmem:[%s172 + $0x6c] sm:$0xe]
      %v1094 = vld [vmem:[%s172 + $0x78] sm:$0xe]
      %v1095 = vld [vmem:[%s172 + $0x84] sm:$0xe]
      %v1096 = vld [vmem:[%s172 + $0x90] sm:$0xe]
      %v1097 = vld [vmem:[%s172 + $0x9c] sm:$0xe]
      %v1098 = vld [vmem:[%s172 + $0xa8] sm:$0xe]
      %v1099 = vld [vmem:[%s172 + $0xb4] sm:$0xe]
      %vm1132 = vcmask 1042432
      %vm1133 = vcmask 1046532
      %vm1134 = vmor %vm1132, %vm1133
      %v1135 = vrot.slane %v1084, 5
      %v1136 = vrot.slane %v1135, 4
      %v1137 = vrot.slane %v184, 5
      %v1138 = vsel %vm1134, %v1136, %v1137
      %v1139 = vrot.slane %v1137, 4
      %v1140 = vrot.slane %v231, 5
      %v1141 = vsel %vm1134, %v1139, %v1140
      %v1142 = vrot.slane %v1085, 5
      %v1143 = vrot.slane %v1142, 4
      %v1144 = vrot.slane %v186, 5
      %v1145 = vsel %vm1134, %v1143, %v1144
      %v1146 = vrot.slane %v1144, 4
      %v1147 = vrot.slane %v232, 5
      %v1148 = vsel %vm1134, %v1146, %v1147
      %v1149 = vrot.slane %v1086, 5
      %v1150 = vrot.slane %v1149, 4
      %v1151 = vrot.slane %v188, 5
      %v1152 = vsel %vm1134, %v1150, %v1151
      %v1153 = vrot.slane %v1151, 4
      %v1154 = vrot.slane %v233, 5
      %v1155 = vsel %vm1134, %v1153, %v1154
      %v1156 = vrot.slane %v1087, 5
      %v1157 = vrot.slane %v1156, 4
      %v1158 = vrot.slane %v190, 5
      %v1159 = vsel %vm1134, %v1157, %v1158
      %v1160 = vrot.slane %v1158, 4
      %v1161 = vrot.slane %v234, 5
      %v1162 = vsel %vm1134, %v1160, %v1161
      %v1163 = vrot.slane %v1088, 5
      %v1164 = vrot.slane %v1163, 4
      %v1165 = vrot.slane %v192, 5
      %v1166 = vsel %vm1134, %v1164, %v1165
      %v1167 = vrot.slane %v1165, 4
      %v1168 = vrot.slane %v235, 5
      %v1169 = vsel %vm1134, %v1167, %v1168
      %v1170 = vrot.slane %v1089, 5
      %v1171 = vrot.slane %v1170, 4
      %v1172 = vrot.slane %v194, 5
      %v1173 = vsel %vm1134, %v1171, %v1172
      %v1174 = vrot.slane %v1172, 4
      %v1175 = vrot.slane %v236, 5
      %v1176 = vsel %vm1134, %v1174, %v1175
      %v1177 = vrot.slane %v1090, 5
      %v1178 = vrot.slane %v1177, 4
      %v1179 = vrot.slane %v196, 5
      %v1180 = vsel %vm1134, %v1178, %v1179
      %v1181 = vrot.slane %v1179, 4
      %v1182 = vrot.slane %v237, 5
      %v1183 = vsel %vm1134, %v1181, %v1182
      %v1184 = vrot.slane %v1091, 5
      %v1185 = vrot.slane %v1184, 4
      %v1186 = vrot.slane %v198, 5
      %v1187 = vsel %vm1134, %v1185, %v1186
      %v1188 = vrot.slane %v1186, 4
      %v1189 = vrot.slane %v238, 5
      %v1190 = vsel %vm1134, %v1188, %v1189
      %v1191 = vrot.slane %v1092, 5
      %v1192 = vrot.slane %v1191, 4
      %v1193 = vrot.slane %v200, 5
      %v1194 = vsel %vm1134, %v1192, %v1193
      %v1195 = vrot.slane %v1193, 4
      %v1196 = vrot.slane %v239, 5
      %v1197 = vsel %vm1134, %v1195, %v1196
      %v1198 = vrot.slane %v1093, 5
      %v1199 = vrot.slane %v1198, 4
      %v1200 = vrot.slane %v202, 5
      %v1201 = vsel %vm1134, %v1199, %v1200
      %v1202 = vrot.slane %v1200, 4
      %v1203 = vrot.slane %v240, 5
      %v1204 = vsel %vm1134, %v1202, %v1203
      %v1205 = vrot.slane %v1094, 5
      %v1206 = vrot.slane %v1205, 4
      %v1207 = vrot.slane %v204, 5
      %v1208 = vsel %vm1134, %v1206, %v1207
      %v1209 = vrot.slane %v1207, 4
      %v1210 = vrot.slane %v241, 5
      %v1211 = vsel %vm1134, %v1209, %v1210
      %v1212 = vrot.slane %v1095, 5
      %v1213 = vrot.slane %v1212, 4
      %v1214 = vrot.slane %v206, 5
      %v1215 = vsel %vm1134, %v1213, %v1214
      %v1216 = vrot.slane %v1214, 4
      %v1217 = vrot.slane %v242, 5
      %v1218 = vsel %vm1134, %v1216, %v1217
      %v1219 = vrot.slane %v1096, 5
      %v1220 = vrot.slane %v1219, 4
      %v1221 = vrot.slane %v208, 5
      %v1222 = vsel %vm1134, %v1220, %v1221
      %v1223 = vrot.slane %v1221, 4
      %v1224 = vrot.slane %v243, 5
      %v1225 = vsel %vm1134, %v1223, %v1224
      %v1226 = vrot.slane %v1097, 5
      %v1227 = vrot.slane %v1226, 4
      %v1228 = vrot.slane %v210, 5
      %v1229 = vsel %vm1134, %v1227, %v1228
      %v1230 = vrot.slane %v1228, 4
      %v1231 = vrot.slane %v244, 5
      %v1232 = vsel %vm1134, %v1230, %v1231
      %v1233 = vrot.slane %v1098, 5
      %v1234 = vrot.slane %v1233, 4
      %v1235 = vrot.slane %v212, 5
      %v1236 = vsel %vm1134, %v1234, %v1235
      %v1237 = vrot.slane %v1235, 4
      %v1238 = vrot.slane %v245, 5
      %v1239 = vsel %vm1134, %v1237, %v1238
      %v1240 = vrot.slane %v1099, 5
      %v1241 = vrot.slane %v1240, 4
      %v1242 = vrot.slane %v214, 5
      %v1243 = vsel %vm1134, %v1241, %v1242
      %v1244 = vrot.slane %v1242, 4
      %v1245 = vrot.slane %v246, 5
      %v1246 = vsel %vm1134, %v1244, %v1245
      %v1247 = vld [vmem:[%s1 + $0x80] sm:$0xf]
      %v1248 = vld [vmem:[%s1 + $0x84] sm:$0xf]
      %v1249 = vld [vmem:[%s1 + $0x88] sm:$0xf]
      %v1250 = vld [vmem:[%s1 + $0x8c] sm:$0xf]
      %v1251 = vld [vmem:[%s1 + $0x90] sm:$0xf]
      %v1252 = vld [vmem:[%s1 + $0x94] sm:$0xf]
      %v1253 = vld [vmem:[%s1 + $0x98] sm:$0xf]
      %v1254 = vld [vmem:[%s1 + $0x9c] sm:$0xf]
      %v1255 = vld [vmem:[%s1 + $0xa0] sm:$0xf]
      %v1256 = vld [vmem:[%s1 + $0xa4] sm:$0xf]
      %v1257 = vld [vmem:[%s1 + $0xa8] sm:$0xf]
      %v1258 = vld [vmem:[%s1 + $0xac] sm:$0xf]
      %v1259 = vld [vmem:[%s1 + $0xb0] sm:$0xf]
      %v1260 = vld [vmem:[%s1 + $0xb4] sm:$0xf]
      %v1261 = vld [vmem:[%s1 + $0xb8] sm:$0xf]
      %v1262 = vld [vmem:[%s1 + $0xbc] sm:$0xf]
      %v1263 = vunpack.c.l.b16 %v1138
      %v1264 = vunpack.c.l.b16 %v1141
      %v1265 = vunpack.c.l.b16 %v1145
      %v1266 = vunpack.c.l.b16 %v1148
      %v1267 = vunpack.c.l.b16 %v1152
      %v1268 = vunpack.c.l.b16 %v1155
      %v1269 = vunpack.c.l.b16 %v1159
      %v1270 = vunpack.c.l.b16 %v1162
      %v1271 = vunpack.c.l.b16 %v1166
      %v1272 = vunpack.c.l.b16 %v1169
      %v1273 = vunpack.c.l.b16 %v1173
      %v1274 = vunpack.c.l.b16 %v1176
      %v1275 = vunpack.c.l.b16 %v1180
      %v1276 = vunpack.c.l.b16 %v1183
      %v1277 = vunpack.c.l.b16 %v1187
      %v1278 = vunpack.c.l.b16 %v1190
      %v1279 = vunpack.c.l.b16 %v1194
      %v1280 = vunpack.c.l.b16 %v1197
      %v1281 = vunpack.c.l.b16 %v1201
      %v1282 = vunpack.c.l.b16 %v1204
      %v1283 = vunpack.c.l.b16 %v1208
      %v1284 = vunpack.c.l.b16 %v1211
      %v1285 = vunpack.c.l.b16 %v1215
      %v1286 = vunpack.c.l.b16 %v1218
      %v1287 = vunpack.c.l.b16 %v1222
      %v1288 = vunpack.c.l.b16 %v1225
      %v1289 = vunpack.c.l.b16 %v1229
      %v1290 = vunpack.c.l.b16 %v1232
      %v1291 = vunpack.c.l.b16 %v1236
      %v1292 = vunpack.c.l.b16 %v1239
      %v1293 = vunpack.c.l.b16 %v1243
      %v1294 = vunpack.c.l.b16 %v1246
      %v1295 = vpack.c.b16 %v1264, %v1263
      %v1296 = vpack.c.b16 %v1266, %v1265
      %v1297 = vpack.c.b16 %v1268, %v1267
      %v1298 = vpack.c.b16 %v1270, %v1269
      %v1299 = vpack.c.b16 %v1272, %v1271
      %v1300 = vpack.c.b16 %v1274, %v1273
      %v1301 = vpack.c.b16 %v1276, %v1275
      %v1302 = vpack.c.b16 %v1278, %v1277
      %v1303 = vpack.c.b16 %v1280, %v1279
      %v1304 = vpack.c.b16 %v1282, %v1281
      %v1305 = vpack.c.b16 %v1284, %v1283
      %v1306 = vpack.c.b16 %v1286, %v1285
      %v1307 = vpack.c.b16 %v1288, %v1287
      %v1308 = vpack.c.b16 %v1290, %v1289
      %v1309 = vpack.c.b16 %v1292, %v1291
      %v1310 = vpack.c.b16 %v1294, %v1293
      %v1343 = vunpack.c.l.b16 %v1247
      %v1344 = vunpack.c.l.b16 %v1248
      %v1345 = vunpack.c.l.b16 %v1249
      %v1346 = vunpack.c.l.b16 %v1250
      %v1347 = vunpack.c.l.b16 %v1251
      %v1348 = vunpack.c.l.b16 %v1252
      %v1349 = vunpack.c.l.b16 %v1253
      %v1350 = vunpack.c.l.b16 %v1254
      %v1351 = vunpack.c.l.b16 %v1255
      %v1352 = vunpack.c.l.b16 %v1256
      %v1353 = vunpack.c.l.b16 %v1257
      %v1354 = vunpack.c.l.b16 %v1258
      %v1355 = vunpack.c.l.b16 %v1259
      %v1356 = vunpack.c.l.b16 %v1260
      %v1357 = vunpack.c.l.b16 %v1261
      %v1358 = vunpack.c.l.b16 %v1262
      %v1359 = vpack.c.b16 %v1344, %v1343
      %v1360 = vpack.c.b16 %v1346, %v1345
      %v1361 = vpack.c.b16 %v1348, %v1347
      %v1362 = vpack.c.b16 %v1350, %v1349
      %v1363 = vpack.c.b16 %v1352, %v1351
      %v1364 = vpack.c.b16 %v1354, %v1353
      %v1365 = vpack.c.b16 %v1356, %v1355
      %v1366 = vpack.c.b16 %v1358, %v1357
      %1375 = vmatpush.bf16.msra.mxu0 %v1366
      %1376 = vmatpush.bf16.msra.mxu0 %v1365
      %1377 = vmatpush.bf16.msra.mxu0 %v1364
      %1378 = vmatpush.bf16.msra.mxu0 %v1363
      %1379 = vmatpush.bf16.msra.mxu0 %v1362
      %1380 = vmatpush.bf16.msra.mxu0 %v1361
      %1381 = vmatpush.bf16.msra.mxu0 %v1360
      %1382 = vmatpush.bf16.msra.mxu0 %v1359
      %1383 = vmatmul.bf16.gmra.mxu0 %v1295
      %v1384 = vpop.f32.mrf.mxu0
      %v1385 = vadd.f32 0.0, %v1384
      %v1386 = vpop.f32.mrf.mxu0
      %v1387 = vadd.f32 0.0, %v1386
      %1388 = vmatmul.bf16.gmra.mxu0 %v1296
      %v1389 = vpop.f32.mrf.mxu0
      %v1390 = vadd.f32 0.0, %v1389
      %v1391 = vpop.f32.mrf.mxu0
      %v1392 = vadd.f32 0.0, %v1391
      %1393 = vmatmul.bf16.gmra.mxu0 %v1297
      %v1394 = vpop.f32.mrf.mxu0
      %v1395 = vadd.f32 0.0, %v1394
      %v1396 = vpop.f32.mrf.mxu0
      %v1397 = vadd.f32 0.0, %v1396
      %1398 = vmatmul.bf16.gmra.mxu0 %v1298
      %v1399 = vpop.f32.mrf.mxu0
      %v1400 = vadd.f32 0.0, %v1399
      %v1401 = vpop.f32.mrf.mxu0
      %v1402 = vadd.f32 0.0, %v1401
      %1403 = vmatmul.bf16.gmra.mxu0 %v1299
      %v1404 = vpop.f32.mrf.mxu0
      %v1405 = vadd.f32 0.0, %v1404
      %v1406 = vpop.f32.mrf.mxu0
      %v1407 = vadd.f32 0.0, %v1406
      %1408 = vmatmul.bf16.gmra.mxu0 %v1300
      %v1409 = vpop.f32.mrf.mxu0
      %v1410 = vadd.f32 0.0, %v1409
      %v1411 = vpop.f32.mrf.mxu0
      %v1412 = vadd.f32 0.0, %v1411
      %1413 = vmatmul.bf16.gmra.mxu0 %v1301
      %v1414 = vpop.f32.mrf.mxu0
      %v1415 = vadd.f32 0.0, %v1414
      %v1416 = vpop.f32.mrf.mxu0
      %v1417 = vadd.f32 0.0, %v1416
      %1418 = vmatmul.bf16.gmra.mxu0 %v1302
      %v1419 = vpop.f32.mrf.mxu0
      %v1420 = vadd.f32 0.0, %v1419
      %v1421 = vpop.f32.mrf.mxu0
      %v1422 = vadd.f32 0.0, %v1421
      %1423 = vmatmul.bf16.gmra.mxu0 %v1303
      %v1424 = vpop.f32.mrf.mxu0
      %v1425 = vadd.f32 0.0, %v1424
      %v1426 = vpop.f32.mrf.mxu0
      %v1427 = vadd.f32 0.0, %v1426
      %1428 = vmatmul.bf16.gmra.mxu0 %v1304
      %v1429 = vpop.f32.mrf.mxu0
      %v1430 = vadd.f32 0.0, %v1429
      %v1431 = vpop.f32.mrf.mxu0
      %v1432 = vadd.f32 0.0, %v1431
      %1433 = vmatmul.bf16.gmra.mxu0 %v1305
      %v1434 = vpop.f32.mrf.mxu0
      %v1435 = vadd.f32 0.0, %v1434
      %v1436 = vpop.f32.mrf.mxu0
      %v1437 = vadd.f32 0.0, %v1436
      %1438 = vmatmul.bf16.gmra.mxu0 %v1306
      %v1439 = vpop.f32.mrf.mxu0
      %v1440 = vadd.f32 0.0, %v1439
      %v1441 = vpop.f32.mrf.mxu0
      %v1442 = vadd.f32 0.0, %v1441
      %1443 = vmatmul.bf16.gmra.mxu0 %v1307
      %v1444 = vpop.f32.mrf.mxu0
      %v1445 = vadd.f32 0.0, %v1444
      %v1446 = vpop.f32.mrf.mxu0
      %v1447 = vadd.f32 0.0, %v1446
      %1448 = vmatmul.bf16.gmra.mxu0 %v1308
      %v1449 = vpop.f32.mrf.mxu0
      %v1450 = vadd.f32 0.0, %v1449
      %v1451 = vpop.f32.mrf.mxu0
      %v1452 = vadd.f32 0.0, %v1451
      %1453 = vmatmul.bf16.gmra.mxu0 %v1309
      %v1454 = vpop.f32.mrf.mxu0
      %v1455 = vadd.f32 0.0, %v1454
      %v1456 = vpop.f32.mrf.mxu0
      %v1457 = vadd.f32 0.0, %v1456
      %1458 = vmatmul.bf16.gmra.mxu0 %v1310
      %v1459 = vpop.f32.mrf.mxu0
      %v1460 = vadd.f32 0.0, %v1459
      %v1461 = vpop.f32.mrf.mxu0
      %v1462 = vadd.f32 0.0, %v1461
      %1463 = vdwg.mxu0
      %v1464 = vadd.f32 %v1005, %v1385
      %v1465 = vadd.f32 %v1007, %v1387
      %v1466 = vadd.f32 %v1010, %v1390
      %v1467 = vadd.f32 %v1012, %v1392
      %v1468 = vadd.f32 %v1015, %v1395
      %v1469 = vadd.f32 %v1017, %v1397
      %v1470 = vadd.f32 %v1020, %v1400
      %v1471 = vadd.f32 %v1022, %v1402
      %v1472 = vadd.f32 %v1025, %v1405
      %v1473 = vadd.f32 %v1027, %v1407
      %v1474 = vadd.f32 %v1030, %v1410
      %v1475 = vadd.f32 %v1032, %v1412
      %v1476 = vadd.f32 %v1035, %v1415
      %v1477 = vadd.f32 %v1037, %v1417
      %v1478 = vadd.f32 %v1040, %v1420
      %v1479 = vadd.f32 %v1042, %v1422
      %v1480 = vadd.f32 %v1045, %v1425
      %v1481 = vadd.f32 %v1047, %v1427
      %v1482 = vadd.f32 %v1050, %v1430
      %v1483 = vadd.f32 %v1052, %v1432
      %v1484 = vadd.f32 %v1055, %v1435
      %v1485 = vadd.f32 %v1057, %v1437
      %v1486 = vadd.f32 %v1060, %v1440
      %v1487 = vadd.f32 %v1062, %v1442
      %v1488 = vadd.f32 %v1065, %v1445
      %v1489 = vadd.f32 %v1067, %v1447
      %v1490 = vadd.f32 %v1070, %v1450
      %v1491 = vadd.f32 %v1072, %v1452
      %v1492 = vadd.f32 %v1075, %v1455
      %v1493 = vadd.f32 %v1077, %v1457
      %v1494 = vadd.f32 %v1080, %v1460
      %v1495 = vadd.f32 %v1082, %v1462
      %s1496 = scalar_lea.vmem %s172, 12
      %v1497 = vld [vmem:[%s1496] sm:$0xf]
      %v1498 = vld [vmem:[%s1496 + $0x4] sm:$0xf]
      %v1499 = vld [vmem:[%s1496 + $0xc] sm:$0xf]
      %v1500 = vld [vmem:[%s1496 + $0x10] sm:$0xf]
      %v1501 = vld [vmem:[%s1496 + $0x18] sm:$0xf]
      %v1502 = vld [vmem:[%s1496 + $0x1c] sm:$0xf]
      %v1503 = vld [vmem:[%s1496 + $0x24] sm:$0xf]
      %v1504 = vld [vmem:[%s1496 + $0x28] sm:$0xf]
      %v1505 = vld [vmem:[%s1496 + $0x30] sm:$0xf]
      %v1506 = vld [vmem:[%s1496 + $0x34] sm:$0xf]
      %v1507 = vld [vmem:[%s1496 + $0x3c] sm:$0xf]
      %v1508 = vld [vmem:[%s1496 + $0x40] sm:$0xf]
      %v1509 = vld [vmem:[%s1496 + $0x48] sm:$0xf]
      %v1510 = vld [vmem:[%s1496 + $0x4c] sm:$0xf]
      %v1511 = vld [vmem:[%s1496 + $0x54] sm:$0xf]
      %v1512 = vld [vmem:[%s1496 + $0x58] sm:$0xf]
      %v1513 = vld [vmem:[%s1496 + $0x60] sm:$0xf]
      %v1514 = vld [vmem:[%s1496 + $0x64] sm:$0xf]
      %v1515 = vld [vmem:[%s1496 + $0x6c] sm:$0xf]
      %v1516 = vld [vmem:[%s1496 + $0x70] sm:$0xf]
      %v1517 = vld [vmem:[%s1496 + $0x78] sm:$0xf]
      %v1518 = vld [vmem:[%s1496 + $0x7c] sm:$0xf]
      %v1519 = vld [vmem:[%s1496 + $0x84] sm:$0xf]
      %v1520 = vld [vmem:[%s1496 + $0x88] sm:$0xf]
      %v1521 = vld [vmem:[%s1496 + $0x90] sm:$0xf]
      %v1522 = vld [vmem:[%s1496 + $0x94] sm:$0xf]
      %v1523 = vld [vmem:[%s1496 + $0x9c] sm:$0xf]
      %v1524 = vld [vmem:[%s1496 + $0xa0] sm:$0xf]
      %v1525 = vld [vmem:[%s1496 + $0xa8] sm:$0xf]
      %v1526 = vld [vmem:[%s1496 + $0xac] sm:$0xf]
      %v1527 = vld [vmem:[%s1496 + $0xb4] sm:$0xf]
      %v1528 = vld [vmem:[%s1496 + $0xb8] sm:$0xf]
      %v1529 = vld [vmem:[%s1 + $0xc0] sm:$0xf]
      %v1530 = vld [vmem:[%s1 + $0xc4] sm:$0xf]
      %v1531 = vld [vmem:[%s1 + $0xc8] sm:$0xf]
      %v1532 = vld [vmem:[%s1 + $0xcc] sm:$0xf]
      %v1533 = vld [vmem:[%s1 + $0xd0] sm:$0xf]
      %v1534 = vld [vmem:[%s1 + $0xd4] sm:$0xf]
      %v1535 = vld [vmem:[%s1 + $0xd8] sm:$0xf]
      %v1536 = vld [vmem:[%s1 + $0xdc] sm:$0xf]
      %v1537 = vld [vmem:[%s1 + $0xe0] sm:$0xf]
      %v1538 = vld [vmem:[%s1 + $0xe4] sm:$0xf]
      %v1539 = vld [vmem:[%s1 + $0xe8] sm:$0xf]
      %v1540 = vld [vmem:[%s1 + $0xec] sm:$0xf]
      %v1541 = vld [vmem:[%s1 + $0xf0] sm:$0xf]
      %v1542 = vld [vmem:[%s1 + $0xf4] sm:$0xf]
      %v1543 = vld [vmem:[%s1 + $0xf8] sm:$0xf]
      %v1544 = vld [vmem:[%s1 + $0xfc] sm:$0xf]
      %v1577 = vunpack.c.l.b16 %v1497
      %v1578 = vunpack.c.l.b16 %v1498
      %v1579 = vunpack.c.l.b16 %v1499
      %v1580 = vunpack.c.l.b16 %v1500
      %v1581 = vunpack.c.l.b16 %v1501
      %v1582 = vunpack.c.l.b16 %v1502
      %v1583 = vunpack.c.l.b16 %v1503
      %v1584 = vunpack.c.l.b16 %v1504
      %v1585 = vunpack.c.l.b16 %v1505
      %v1586 = vunpack.c.l.b16 %v1506
      %v1587 = vunpack.c.l.b16 %v1507
      %v1588 = vunpack.c.l.b16 %v1508
      %v1589 = vunpack.c.l.b16 %v1509
      %v1590 = vunpack.c.l.b16 %v1510
      %v1591 = vunpack.c.l.b16 %v1511
      %v1592 = vunpack.c.l.b16 %v1512
      %v1593 = vunpack.c.l.b16 %v1513
      %v1594 = vunpack.c.l.b16 %v1514
      %v1595 = vunpack.c.l.b16 %v1515
      %v1596 = vunpack.c.l.b16 %v1516
      %v1597 = vunpack.c.l.b16 %v1517
      %v1598 = vunpack.c.l.b16 %v1518
      %v1599 = vunpack.c.l.b16 %v1519
      %v1600 = vunpack.c.l.b16 %v1520
      %v1601 = vunpack.c.l.b16 %v1521
      %v1602 = vunpack.c.l.b16 %v1522
      %v1603 = vunpack.c.l.b16 %v1523
      %v1604 = vunpack.c.l.b16 %v1524
      %v1605 = vunpack.c.l.b16 %v1525
      %v1606 = vunpack.c.l.b16 %v1526
      %v1607 = vunpack.c.l.b16 %v1527
      %v1608 = vunpack.c.l.b16 %v1528
      %v1609 = vpack.c.b16 %v1578, %v1577
      %v1610 = vpack.c.b16 %v1580, %v1579
      %v1611 = vpack.c.b16 %v1582, %v1581
      %v1612 = vpack.c.b16 %v1584, %v1583
      %v1613 = vpack.c.b16 %v1586, %v1585
      %v1614 = vpack.c.b16 %v1588, %v1587
      %v1615 = vpack.c.b16 %v1590, %v1589
      %v1616 = vpack.c.b16 %v1592, %v1591
      %v1617 = vpack.c.b16 %v1594, %v1593
      %v1618 = vpack.c.b16 %v1596, %v1595
      %v1619 = vpack.c.b16 %v1598, %v1597
      %v1620 = vpack.c.b16 %v1600, %v1599
      %v1621 = vpack.c.b16 %v1602, %v1601
      %v1622 = vpack.c.b16 %v1604, %v1603
      %v1623 = vpack.c.b16 %v1606, %v1605
      %v1624 = vpack.c.b16 %v1608, %v1607
      %v1657 = vunpack.c.l.b16 %v1529
      %v1658 = vunpack.c.l.b16 %v1530
      %v1659 = vunpack.c.l.b16 %v1531
      %v1660 = vunpack.c.l.b16 %v1532
      %v1661 = vunpack.c.l.b16 %v1533
      %v1662 = vunpack.c.l.b16 %v1534
      %v1663 = vunpack.c.l.b16 %v1535
      %v1664 = vunpack.c.l.b16 %v1536
      %v1665 = vunpack.c.l.b16 %v1537
      %v1666 = vunpack.c.l.b16 %v1538
      %v1667 = vunpack.c.l.b16 %v1539
      %v1668 = vunpack.c.l.b16 %v1540
      %v1669 = vunpack.c.l.b16 %v1541
      %v1670 = vunpack.c.l.b16 %v1542
      %v1671 = vunpack.c.l.b16 %v1543
      %v1672 = vunpack.c.l.b16 %v1544
      %v1673 = vpack.c.b16 %v1658, %v1657
      %v1674 = vpack.c.b16 %v1660, %v1659
      %v1675 = vpack.c.b16 %v1662, %v1661
      %v1676 = vpack.c.b16 %v1664, %v1663
      %v1677 = vpack.c.b16 %v1666, %v1665
      %v1678 = vpack.c.b16 %v1668, %v1667
      %v1679 = vpack.c.b16 %v1670, %v1669
      %v1680 = vpack.c.b16 %v1672, %v1671
      %1689 = vmatpush.bf16.msra.mxu0 %v1680
      %1690 = vmatpush.bf16.msra.mxu0 %v1679
      %1691 = vmatpush.bf16.msra.mxu0 %v1678
      %1692 = vmatpush.bf16.msra.mxu0 %v1677
      %1693 = vmatpush.bf16.msra.mxu0 %v1676
      %1694 = vmatpush.bf16.msra.mxu0 %v1675
      %1695 = vmatpush.bf16.msra.mxu0 %v1674
      %1696 = vmatpush.bf16.msra.mxu0 %v1673
      %1697 = vmatmul.bf16.gmra.mxu0 %v1609
      %v1698 = vpop.f32.mrf.mxu0
      %v1699 = vadd.f32 0.0, %v1698
      %v1700 = vpop.f32.mrf.mxu0
      %v1701 = vadd.f32 0.0, %v1700
      %1702 = vmatmul.bf16.gmra.mxu0 %v1610
      %v1703 = vpop.f32.mrf.mxu0
      %v1704 = vadd.f32 0.0, %v1703
      %v1705 = vpop.f32.mrf.mxu0
      %v1706 = vadd.f32 0.0, %v1705
      %1707 = vmatmul.bf16.gmra.mxu0 %v1611
      %v1708 = vpop.f32.mrf.mxu0
      %v1709 = vadd.f32 0.0, %v1708
      %v1710 = vpop.f32.mrf.mxu0
      %v1711 = vadd.f32 0.0, %v1710
      %1712 = vmatmul.bf16.gmra.mxu0 %v1612
      %v1713 = vpop.f32.mrf.mxu0
      %v1714 = vadd.f32 0.0, %v1713
      %v1715 = vpop.f32.mrf.mxu0
      %v1716 = vadd.f32 0.0, %v1715
      %1717 = vmatmul.bf16.gmra.mxu0 %v1613
      %v1718 = vpop.f32.mrf.mxu0
      %v1719 = vadd.f32 0.0, %v1718
      %v1720 = vpop.f32.mrf.mxu0
      %v1721 = vadd.f32 0.0, %v1720
      %1722 = vmatmul.bf16.gmra.mxu0 %v1614
      %v1723 = vpop.f32.mrf.mxu0
      %v1724 = vadd.f32 0.0, %v1723
      %v1725 = vpop.f32.mrf.mxu0
      %v1726 = vadd.f32 0.0, %v1725
      %1727 = vmatmul.bf16.gmra.mxu0 %v1615
      %v1728 = vpop.f32.mrf.mxu0
      %v1729 = vadd.f32 0.0, %v1728
      %v1730 = vpop.f32.mrf.mxu0
      %v1731 = vadd.f32 0.0, %v1730
      %1732 = vmatmul.bf16.gmra.mxu0 %v1616
      %v1733 = vpop.f32.mrf.mxu0
      %v1734 = vadd.f32 0.0, %v1733
      %v1735 = vpop.f32.mrf.mxu0
      %v1736 = vadd.f32 0.0, %v1735
      %1737 = vmatmul.bf16.gmra.mxu0 %v1617
      %v1738 = vpop.f32.mrf.mxu0
      %v1739 = vadd.f32 0.0, %v1738
      %v1740 = vpop.f32.mrf.mxu0
      %v1741 = vadd.f32 0.0, %v1740
      %1742 = vmatmul.bf16.gmra.mxu0 %v1618
      %v1743 = vpop.f32.mrf.mxu0
      %v1744 = vadd.f32 0.0, %v1743
      %v1745 = vpop.f32.mrf.mxu0
      %v1746 = vadd.f32 0.0, %v1745
      %1747 = vmatmul.bf16.gmra.mxu0 %v1619
      %v1748 = vpop.f32.mrf.mxu0
      %v1749 = vadd.f32 0.0, %v1748
      %v1750 = vpop.f32.mrf.mxu0
      %v1751 = vadd.f32 0.0, %v1750
      %1752 = vmatmul.bf16.gmra.mxu0 %v1620
      %v1753 = vpop.f32.mrf.mxu0
      %v1754 = vadd.f32 0.0, %v1753
      %v1755 = vpop.f32.mrf.mxu0
      %v1756 = vadd.f32 0.0, %v1755
      %1757 = vmatmul.bf16.gmra.mxu0 %v1621
      %v1758 = vpop.f32.mrf.mxu0
      %v1759 = vadd.f32 0.0, %v1758
      %v1760 = vpop.f32.mrf.mxu0
      %v1761 = vadd.f32 0.0, %v1760
      %1762 = vmatmul.bf16.gmra.mxu0 %v1622
      %v1763 = vpop.f32.mrf.mxu0
      %v1764 = vadd.f32 0.0, %v1763
      %v1765 = vpop.f32.mrf.mxu0
      %v1766 = vadd.f32 0.0, %v1765
      %1767 = vmatmul.bf16.gmra.mxu0 %v1623
      %v1768 = vpop.f32.mrf.mxu0
      %v1769 = vadd.f32 0.0, %v1768
      %v1770 = vpop.f32.mrf.mxu0
      %v1771 = vadd.f32 0.0, %v1770
      %1772 = vmatmul.bf16.gmra.mxu0 %v1624
      %v1773 = vpop.f32.mrf.mxu0
      %v1774 = vadd.f32 0.0, %v1773
      %v1775 = vpop.f32.mrf.mxu0
      %v1776 = vadd.f32 0.0, %v1775
      %1777 = vdwg.mxu0
      %v1778 = vadd.f32 %v1464, %v1699
      %v1779 = vadd.f32 %v1465, %v1701
      %v1780 = vadd.f32 %v1466, %v1704
      %v1781 = vadd.f32 %v1467, %v1706
      %v1782 = vadd.f32 %v1468, %v1709
      %v1783 = vadd.f32 %v1469, %v1711
      %v1784 = vadd.f32 %v1470, %v1714
      %v1785 = vadd.f32 %v1471, %v1716
      %v1786 = vadd.f32 %v1472, %v1719
      %v1787 = vadd.f32 %v1473, %v1721
      %v1788 = vadd.f32 %v1474, %v1724
      %v1789 = vadd.f32 %v1475, %v1726
      %v1790 = vadd.f32 %v1476, %v1729
      %v1791 = vadd.f32 %v1477, %v1731
      %v1792 = vadd.f32 %v1478, %v1734
      %v1793 = vadd.f32 %v1479, %v1736
      %v1794 = vadd.f32 %v1480, %v1739
      %v1795 = vadd.f32 %v1481, %v1741
      %v1796 = vadd.f32 %v1482, %v1744
      %v1797 = vadd.f32 %v1483, %v1746
      %v1798 = vadd.f32 %v1484, %v1749
      %v1799 = vadd.f32 %v1485, %v1751
      %v1800 = vadd.f32 %v1486, %v1754
      %v1801 = vadd.f32 %v1487, %v1756
      %v1802 = vadd.f32 %v1488, %v1759
      %v1803 = vadd.f32 %v1489, %v1761
      %v1804 = vadd.f32 %v1490, %v1764
      %v1805 = vadd.f32 %v1491, %v1766
      %v1806 = vadd.f32 %v1492, %v1769
      %v1807 = vadd.f32 %v1493, %v1771
      %v1808 = vadd.f32 %v1494, %v1774
      %v1809 = vadd.f32 %v1495, %v1776
      %v1810 = vld [vmem:[%s1496] sm:$0xf]
      %v1811 = vld [vmem:[%s1496 + $0x4] sm:$0xf]
      %v1812 = vld [vmem:[%s1496 + $0x8] sm:$0x1]
      %v1813 = vld [vmem:[%s1496 + $0xc] sm:$0xf]
      %v1814 = vld [vmem:[%s1496 + $0x10] sm:$0xf]
      %v1815 = vld [vmem:[%s1496 + $0x14] sm:$0x1]
      %v1816 = vld [vmem:[%s1496 + $0x18] sm:$0xf]
      %v1817 = vld [vmem:[%s1496 + $0x1c] sm:$0xf]
      %v1818 = vld [vmem:[%s1496 + $0x20] sm:$0x1]
      %v1819 = vld [vmem:[%s1496 + $0x24] sm:$0xf]
      %v1820 = vld [vmem:[%s1496 + $0x28] sm:$0xf]
      %v1821 = vld [vmem:[%s1496 + $0x2c] sm:$0x1]
      %v1822 = vld [vmem:[%s1496 + $0x30] sm:$0xf]
      %v1823 = vld [vmem:[%s1496 + $0x34] sm:$0xf]
      %v1824 = vld [vmem:[%s1496 + $0x38] sm:$0x1]
      %v1825 = vld [vmem:[%s1496 + $0x3c] sm:$0xf]
      %v1826 = vld [vmem:[%s1496 + $0x40] sm:$0xf]
      %v1827 = vld [vmem:[%s1496 + $0x44] sm:$0x1]
      %v1828 = vld [vmem:[%s1496 + $0x48] sm:$0xf]
      %v1829 = vld [vmem:[%s1496 + $0x4c] sm:$0xf]
      %v1830 = vld [vmem:[%s1496 + $0x50] sm:$0x1]
      %v1831 = vld [vmem:[%s1496 + $0x54] sm:$0xf]
      %v1832 = vld [vmem:[%s1496 + $0x58] sm:$0xf]
      %v1833 = vld [vmem:[%s1496 + $0x5c] sm:$0x1]
      %v1834 = vld [vmem:[%s1496 + $0x60] sm:$0xf]
      %v1835 = vld [vmem:[%s1496 + $0x64] sm:$0xf]
      %v1836 = vld [vmem:[%s1496 + $0x68] sm:$0x1]
      %v1837 = vld [vmem:[%s1496 + $0x6c] sm:$0xf]
      %v1838 = vld [vmem:[%s1496 + $0x70] sm:$0xf]
      %v1839 = vld [vmem:[%s1496 + $0x74] sm:$0x1]
      %v1840 = vld [vmem:[%s1496 + $0x78] sm:$0xf]
      %v1841 = vld [vmem:[%s1496 + $0x7c] sm:$0xf]
      %v1842 = vld [vmem:[%s1496 + $0x80] sm:$0x1]
      %v1843 = vld [vmem:[%s1496 + $0x84] sm:$0xf]
      %v1844 = vld [vmem:[%s1496 + $0x88] sm:$0xf]
      %v1845 = vld [vmem:[%s1496 + $0x8c] sm:$0x1]
      %v1846 = vld [vmem:[%s1496 + $0x90] sm:$0xf]
      %v1847 = vld [vmem:[%s1496 + $0x94] sm:$0xf]
      %v1848 = vld [vmem:[%s1496 + $0x98] sm:$0x1]
      %v1849 = vld [vmem:[%s1496 + $0x9c] sm:$0xf]
      %v1850 = vld [vmem:[%s1496 + $0xa0] sm:$0xf]
      %v1851 = vld [vmem:[%s1496 + $0xa4] sm:$0x1]
      %v1852 = vld [vmem:[%s1496 + $0xa8] sm:$0xf]
      %v1853 = vld [vmem:[%s1496 + $0xac] sm:$0xf]
      %v1854 = vld [vmem:[%s1496 + $0xb0] sm:$0x1]
      %v1855 = vld [vmem:[%s1496 + $0xb4] sm:$0xf]
      %v1856 = vld [vmem:[%s1496 + $0xb8] sm:$0xf]
      %v1857 = vld [vmem:[%s1496 + $0xbc] sm:$0x1]
      %v1859 = vshrl.u32 %v1810, 16
      %v1861 = vrot.slane %v1859, 4
      %v1862 = vshll.u32 %v1810, 16
      %v1864 = vrot.slane %v1862, 5
      %v1865 = vor.u32 %v1861, %v1864
      %v1866 = vrot.slane %v1865, 4
      %v1868 = vshll.u32 %v1811, 16
      %v1870 = vrot.slane %v1868, 5
      %v1871 = vsel %vm249, %v1866, %v1870
      %v1872 = vshrl.u32 %v1811, 16
      %v1874 = vrot.slane %v1872, 4
      %v1875 = vor.u32 %v1874, %v1870
      %v1876 = vrot.slane %v1875, 4
      %v1878 = vshll.u32 %v1812, 16
      %v1880 = vrot.slane %v1878, 5
      %v1881 = vsel %vm249, %v1876, %v1880
      %v1883 = vshrl.u32 %v1813, 16
      %v1885 = vrot.slane %v1883, 4
      %v1886 = vshll.u32 %v1813, 16
      %v1888 = vrot.slane %v1886, 5
      %v1889 = vor.u32 %v1885, %v1888
      %v1890 = vrot.slane %v1889, 4
      %v1892 = vshll.u32 %v1814, 16
      %v1894 = vrot.slane %v1892, 5
      %v1895 = vsel %vm249, %v1890, %v1894
      %v1896 = vshrl.u32 %v1814, 16
      %v1898 = vrot.slane %v1896, 4
      %v1899 = vor.u32 %v1898, %v1894
      %v1900 = vrot.slane %v1899, 4
      %v1902 = vshll.u32 %v1815, 16
      %v1904 = vrot.slane %v1902, 5
      %v1905 = vsel %vm249, %v1900, %v1904
      %v1907 = vshrl.u32 %v1816, 16
      %v1909 = vrot.slane %v1907, 4
      %v1910 = vshll.u32 %v1816, 16
      %v1912 = vrot.slane %v1910, 5
      %v1913 = vor.u32 %v1909, %v1912
      %v1914 = vrot.slane %v1913, 4
      %v1916 = vshll.u32 %v1817, 16
      %v1918 = vrot.slane %v1916, 5
      %v1919 = vsel %vm249, %v1914, %v1918
      %v1920 = vshrl.u32 %v1817, 16
      %v1922 = vrot.slane %v1920, 4
      %v1923 = vor.u32 %v1922, %v1918
      %v1924 = vrot.slane %v1923, 4
      %v1926 = vshll.u32 %v1818, 16
      %v1928 = vrot.slane %v1926, 5
      %v1929 = vsel %vm249, %v1924, %v1928
      %v1931 = vshrl.u32 %v1819, 16
      %v1933 = vrot.slane %v1931, 4
      %v1934 = vshll.u32 %v1819, 16
      %v1936 = vrot.slane %v1934, 5
      %v1937 = vor.u32 %v1933, %v1936
      %v1938 = vrot.slane %v1937, 4
      %v1940 = vshll.u32 %v1820, 16
      %v1942 = vrot.slane %v1940, 5
      %v1943 = vsel %vm249, %v1938, %v1942
      %v1944 = vshrl.u32 %v1820, 16
      %v1946 = vrot.slane %v1944, 4
      %v1947 = vor.u32 %v1946, %v1942
      %v1948 = vrot.slane %v1947, 4
      %v1950 = vshll.u32 %v1821, 16
      %v1952 = vrot.slane %v1950, 5
      %v1953 = vsel %vm249, %v1948, %v1952
      %v1955 = vshrl.u32 %v1822, 16
      %v1957 = vrot.slane %v1955, 4
      %v1958 = vshll.u32 %v1822, 16
      %v1960 = vrot.slane %v1958, 5
      %v1961 = vor.u32 %v1957, %v1960
      %v1962 = vrot.slane %v1961, 4
      %v1964 = vshll.u32 %v1823, 16
      %v1966 = vrot.slane %v1964, 5
      %v1967 = vsel %vm249, %v1962, %v1966
      %v1968 = vshrl.u32 %v1823, 16
      %v1970 = vrot.slane %v1968, 4
      %v1971 = vor.u32 %v1970, %v1966
      %v1972 = vrot.slane %v1971, 4
      %v1974 = vshll.u32 %v1824, 16
      %v1976 = vrot.slane %v1974, 5
      %v1977 = vsel %vm249, %v1972, %v1976
      %v1979 = vshrl.u32 %v1825, 16
      %v1981 = vrot.slane %v1979, 4
      %v1982 = vshll.u32 %v1825, 16
      %v1984 = vrot.slane %v1982, 5
      %v1985 = vor.u32 %v1981, %v1984
      %v1986 = vrot.slane %v1985, 4
      %v1988 = vshll.u32 %v1826, 16
      %v1990 = vrot.slane %v1988, 5
      %v1991 = vsel %vm249, %v1986, %v1990
      %v1992 = vshrl.u32 %v1826, 16
      %v1994 = vrot.slane %v1992, 4
      %v1995 = vor.u32 %v1994, %v1990
      %v1996 = vrot.slane %v1995, 4
      %v1998 = vshll.u32 %v1827, 16
      %v2000 = vrot.slane %v1998, 5
      %v2001 = vsel %vm249, %v1996, %v2000
      %v2003 = vshrl.u32 %v1828, 16
      %v2005 = vrot.slane %v2003, 4
      %v2006 = vshll.u32 %v1828, 16
      %v2008 = vrot.slane %v2006, 5
      %v2009 = vor.u32 %v2005, %v2008
      %v2010 = vrot.slane %v2009, 4
      %v2012 = vshll.u32 %v1829, 16
      %v2014 = vrot.slane %v2012, 5
      %v2015 = vsel %vm249, %v2010, %v2014
      %v2016 = vshrl.u32 %v1829, 16
      %v2018 = vrot.slane %v2016, 4
      %v2019 = vor.u32 %v2018, %v2014
      %v2020 = vrot.slane %v2019, 4
      %v2022 = vshll.u32 %v1830, 16
      %v2024 = vrot.slane %v2022, 5
      %v2025 = vsel %vm249, %v2020, %v2024
      %v2027 = vshrl.u32 %v1831, 16
      %v2029 = vrot.slane %v2027, 4
      %v2030 = vshll.u32 %v1831, 16
      %v2032 = vrot.slane %v2030, 5
      %v2033 = vor.u32 %v2029, %v2032
      %v2034 = vrot.slane %v2033, 4
      %v2036 = vshll.u32 %v1832, 16
      %v2038 = vrot.slane %v2036, 5
      %v2039 = vsel %vm249, %v2034, %v2038
      %v2040 = vshrl.u32 %v1832, 16
      %v2042 = vrot.slane %v2040, 4
      %v2043 = vor.u32 %v2042, %v2038
      %v2044 = vrot.slane %v2043, 4
      %v2046 = vshll.u32 %v1833, 16
      %v2048 = vrot.slane %v2046, 5
      %v2049 = vsel %vm249, %v2044, %v2048
      %v2051 = vshrl.u32 %v1834, 16
      %v2053 = vrot.slane %v2051, 4
      %v2054 = vshll.u32 %v1834, 16
      %v2056 = vrot.slane %v2054, 5
      %v2057 = vor.u32 %v2053, %v2056
      %v2058 = vrot.slane %v2057, 4
      %v2060 = vshll.u32 %v1835, 16
      %v2062 = vrot.slane %v2060, 5
      %v2063 = vsel %vm249, %v2058, %v2062
      %v2064 = vshrl.u32 %v1835, 16
      %v2066 = vrot.slane %v2064, 4
      %v2067 = vor.u32 %v2066, %v2062
      %v2068 = vrot.slane %v2067, 4
      %v2070 = vshll.u32 %v1836, 16
      %v2072 = vrot.slane %v2070, 5
      %v2073 = vsel %vm249, %v2068, %v2072
      %v2075 = vshrl.u32 %v1837, 16
      %v2077 = vrot.slane %v2075, 4
      %v2078 = vshll.u32 %v1837, 16
      %v2080 = vrot.slane %v2078, 5
      %v2081 = vor.u32 %v2077, %v2080
      %v2082 = vrot.slane %v2081, 4
      %v2084 = vshll.u32 %v1838, 16
      %v2086 = vrot.slane %v2084, 5
      %v2087 = vsel %vm249, %v2082, %v2086
      %v2088 = vshrl.u32 %v1838, 16
      %v2090 = vrot.slane %v2088, 4
      %v2091 = vor.u32 %v2090, %v2086
      %v2092 = vrot.slane %v2091, 4
      %v2094 = vshll.u32 %v1839, 16
      %v2096 = vrot.slane %v2094, 5
      %v2097 = vsel %vm249, %v2092, %v2096
      %v2099 = vshrl.u32 %v1840, 16
      %v2101 = vrot.slane %v2099, 4
      %v2102 = vshll.u32 %v1840, 16
      %v2104 = vrot.slane %v2102, 5
      %v2105 = vor.u32 %v2101, %v2104
      %v2106 = vrot.slane %v2105, 4
      %v2108 = vshll.u32 %v1841, 16
      %v2110 = vrot.slane %v2108, 5
      %v2111 = vsel %vm249, %v2106, %v2110
      %v2112 = vshrl.u32 %v1841, 16
      %v2114 = vrot.slane %v2112, 4
      %v2115 = vor.u32 %v2114, %v2110
      %v2116 = vrot.slane %v2115, 4
      %v2118 = vshll.u32 %v1842, 16
      %v2120 = vrot.slane %v2118, 5
      %v2121 = vsel %vm249, %v2116, %v2120
      %v2123 = vshrl.u32 %v1843, 16
      %v2125 = vrot.slane %v2123, 4
      %v2126 = vshll.u32 %v1843, 16
      %v2128 = vrot.slane %v2126, 5
      %v2129 = vor.u32 %v2125, %v2128
      %v2130 = vrot.slane %v2129, 4
      %v2132 = vshll.u32 %v1844, 16
      %v2134 = vrot.slane %v2132, 5
      %v2135 = vsel %vm249, %v2130, %v2134
      %v2136 = vshrl.u32 %v1844, 16
      %v2138 = vrot.slane %v2136, 4
      %v2139 = vor.u32 %v2138, %v2134
      %v2140 = vrot.slane %v2139, 4
      %v2142 = vshll.u32 %v1845, 16
      %v2144 = vrot.slane %v2142, 5
      %v2145 = vsel %vm249, %v2140, %v2144
      %v2147 = vshrl.u32 %v1846, 16
      %v2149 = vrot.slane %v2147, 4
      %v2150 = vshll.u32 %v1846, 16
      %v2152 = vrot.slane %v2150, 5
      %v2153 = vor.u32 %v2149, %v2152
      %v2154 = vrot.slane %v2153, 4
      %v2156 = vshll.u32 %v1847, 16
      %v2158 = vrot.slane %v2156, 5
      %v2159 = vsel %vm249, %v2154, %v2158
      %v2160 = vshrl.u32 %v1847, 16
      %v2162 = vrot.slane %v2160, 4
      %v2163 = vor.u32 %v2162, %v2158
      %v2164 = vrot.slane %v2163, 4
      %v2166 = vshll.u32 %v1848, 16
      %v2168 = vrot.slane %v2166, 5
      %v2169 = vsel %vm249, %v2164, %v2168
      %v2171 = vshrl.u32 %v1849, 16
      %v2173 = vrot.slane %v2171, 4
      %v2174 = vshll.u32 %v1849, 16
      %v2176 = vrot.slane %v2174, 5
      %v2177 = vor.u32 %v2173, %v2176
      %v2178 = vrot.slane %v2177, 4
      %v2180 = vshll.u32 %v1850, 16
      %v2182 = vrot.slane %v2180, 5
      %v2183 = vsel %vm249, %v2178, %v2182
      %v2184 = vshrl.u32 %v1850, 16
      %v2186 = vrot.slane %v2184, 4
      %v2187 = vor.u32 %v2186, %v2182
      %v2188 = vrot.slane %v2187, 4
      %v2190 = vshll.u32 %v1851, 16
      %v2192 = vrot.slane %v2190, 5
      %v2193 = vsel %vm249, %v2188, %v2192
      %v2195 = vshrl.u32 %v1852, 16
      %v2197 = vrot.slane %v2195, 4
      %v2198 = vshll.u32 %v1852, 16
      %v2200 = vrot.slane %v2198, 5
      %v2201 = vor.u32 %v2197, %v2200
      %v2202 = vrot.slane %v2201, 4
      %v2204 = vshll.u32 %v1853, 16
      %v2206 = vrot.slane %v2204, 5
      %v2207 = vsel %vm249, %v2202, %v2206
      %v2208 = vshrl.u32 %v1853, 16
      %v2210 = vrot.slane %v2208, 4
      %v2211 = vor.u32 %v2210, %v2206
      %v2212 = vrot.slane %v2211, 4
      %v2214 = vshll.u32 %v1854, 16
      %v2216 = vrot.slane %v2214, 5
      %v2217 = vsel %vm249, %v2212, %v2216
      %v2219 = vshrl.u32 %v1855, 16
      %v2221 = vrot.slane %v2219, 4
      %v2222 = vshll.u32 %v1855, 16
      %v2224 = vrot.slane %v2222, 5
      %v2225 = vor.u32 %v2221, %v2224
      %v2226 = vrot.slane %v2225, 4
      %v2228 = vshll.u32 %v1856, 16
      %v2230 = vrot.slane %v2228, 5
      %v2231 = vsel %vm249, %v2226, %v2230
      %v2232 = vshrl.u32 %v1856, 16
      %v2234 = vrot.slane %v2232, 4
      %v2235 = vor.u32 %v2234, %v2230
      %v2236 = vrot.slane %v2235, 4
      %v2238 = vshll.u32 %v1857, 16
      %v2240 = vrot.slane %v2238, 5
      %v2241 = vsel %vm249, %v2236, %v2240
      %v2242 = vld [vmem:[%s1 + $0x100] sm:$0xf]
      %v2243 = vld [vmem:[%s1 + $0x104] sm:$0xf]
      %v2244 = vld [vmem:[%s1 + $0x108] sm:$0xf]
      %v2245 = vld [vmem:[%s1 + $0x10c] sm:$0xf]
      %v2246 = vld [vmem:[%s1 + $0x110] sm:$0xf]
      %v2247 = vld [vmem:[%s1 + $0x114] sm:$0xf]
      %v2248 = vld [vmem:[%s1 + $0x118] sm:$0xf]
      %v2249 = vld [vmem:[%s1 + $0x11c] sm:$0xf]
      %v2250 = vld [vmem:[%s1 + $0x120] sm:$0xf]
      %v2251 = vld [vmem:[%s1 + $0x124] sm:$0xf]
      %v2252 = vld [vmem:[%s1 + $0x128] sm:$0xf]
      %v2253 = vld [vmem:[%s1 + $0x12c] sm:$0xf]
      %v2254 = vld [vmem:[%s1 + $0x130] sm:$0xf]
      %v2255 = vld [vmem:[%s1 + $0x134] sm:$0xf]
      %v2256 = vld [vmem:[%s1 + $0x138] sm:$0xf]
      %v2257 = vld [vmem:[%s1 + $0x13c] sm:$0xf]
      %v2258 = vunpack.c.l.b16 %v1871
      %v2259 = vunpack.c.l.b16 %v1881
      %v2260 = vunpack.c.l.b16 %v1895
      %v2261 = vunpack.c.l.b16 %v1905
      %v2262 = vunpack.c.l.b16 %v1919
      %v2263 = vunpack.c.l.b16 %v1929
      %v2264 = vunpack.c.l.b16 %v1943
      %v2265 = vunpack.c.l.b16 %v1953
      %v2266 = vunpack.c.l.b16 %v1967
      %v2267 = vunpack.c.l.b16 %v1977
      %v2268 = vunpack.c.l.b16 %v1991
      %v2269 = vunpack.c.l.b16 %v2001
      %v2270 = vunpack.c.l.b16 %v2015
      %v2271 = vunpack.c.l.b16 %v2025
      %v2272 = vunpack.c.l.b16 %v2039
      %v2273 = vunpack.c.l.b16 %v2049
      %v2274 = vunpack.c.l.b16 %v2063
      %v2275 = vunpack.c.l.b16 %v2073
      %v2276 = vunpack.c.l.b16 %v2087
      %v2277 = vunpack.c.l.b16 %v2097
      %v2278 = vunpack.c.l.b16 %v2111
      %v2279 = vunpack.c.l.b16 %v2121
      %v2280 = vunpack.c.l.b16 %v2135
      %v2281 = vunpack.c.l.b16 %v2145
      %v2282 = vunpack.c.l.b16 %v2159
      %v2283 = vunpack.c.l.b16 %v2169
      %v2284 = vunpack.c.l.b16 %v2183
      %v2285 = vunpack.c.l.b16 %v2193
      %v2286 = vunpack.c.l.b16 %v2207
      %v2287 = vunpack.c.l.b16 %v2217
      %v2288 = vunpack.c.l.b16 %v2231
      %v2289 = vunpack.c.l.b16 %v2241
      %v2290 = vpack.c.b16 %v2259, %v2258
      %v2291 = vpack.c.b16 %v2261, %v2260
      %v2292 = vpack.c.b16 %v2263, %v2262
      %v2293 = vpack.c.b16 %v2265, %v2264
      %v2294 = vpack.c.b16 %v2267, %v2266
      %v2295 = vpack.c.b16 %v2269, %v2268
      %v2296 = vpack.c.b16 %v2271, %v2270
      %v2297 = vpack.c.b16 %v2273, %v2272
      %v2298 = vpack.c.b16 %v2275, %v2274
      %v2299 = vpack.c.b16 %v2277, %v2276
      %v2300 = vpack.c.b16 %v2279, %v2278
      %v2301 = vpack.c.b16 %v2281, %v2280
      %v2302 = vpack.c.b16 %v2283, %v2282
      %v2303 = vpack.c.b16 %v2285, %v2284
      %v2304 = vpack.c.b16 %v2287, %v2286
      %v2305 = vpack.c.b16 %v2289, %v2288
      %v2338 = vunpack.c.l.b16 %v2242
      %v2339 = vunpack.c.l.b16 %v2243
      %v2340 = vunpack.c.l.b16 %v2244
      %v2341 = vunpack.c.l.b16 %v2245
      %v2342 = vunpack.c.l.b16 %v2246
      %v2343 = vunpack.c.l.b16 %v2247
      %v2344 = vunpack.c.l.b16 %v2248
      %v2345 = vunpack.c.l.b16 %v2249
      %v2346 = vunpack.c.l.b16 %v2250
      %v2347 = vunpack.c.l.b16 %v2251
      %v2348 = vunpack.c.l.b16 %v2252
      %v2349 = vunpack.c.l.b16 %v2253
      %v2350 = vunpack.c.l.b16 %v2254
      %v2351 = vunpack.c.l.b16 %v2255
      %v2352 = vunpack.c.l.b16 %v2256
      %v2353 = vunpack.c.l.b16 %v2257
      %v2354 = vpack.c.b16 %v2339, %v2338
      %v2355 = vpack.c.b16 %v2341, %v2340
      %v2356 = vpack.c.b16 %v2343, %v2342
      %v2357 = vpack.c.b16 %v2345, %v2344
      %v2358 = vpack.c.b16 %v2347, %v2346
      %v2359 = vpack.c.b16 %v2349, %v2348
      %v2360 = vpack.c.b16 %v2351, %v2350
      %v2361 = vpack.c.b16 %v2353, %v2352
      %2370 = vmatpush.bf16.msra.mxu0 %v2361
      %2371 = vmatpush.bf16.msra.mxu0 %v2360
      %2372 = vmatpush.bf16.msra.mxu0 %v2359
      %2373 = vmatpush.bf16.msra.mxu0 %v2358
      %2374 = vmatpush.bf16.msra.mxu0 %v2357
      %2375 = vmatpush.bf16.msra.mxu0 %v2356
      %2376 = vmatpush.bf16.msra.mxu0 %v2355
      %2377 = vmatpush.bf16.msra.mxu0 %v2354
      %2378 = vmatmul.bf16.gmra.mxu0 %v2290
      %v2379 = vpop.f32.mrf.mxu0
      %v2380 = vadd.f32 0.0, %v2379
      %v2381 = vpop.f32.mrf.mxu0
      %v2382 = vadd.f32 0.0, %v2381
      %2383 = vmatmul.bf16.gmra.mxu0 %v2291
      %v2384 = vpop.f32.mrf.mxu0
      %v2385 = vadd.f32 0.0, %v2384
      %v2386 = vpop.f32.mrf.mxu0
      %v2387 = vadd.f32 0.0, %v2386
      %2388 = vmatmul.bf16.gmra.mxu0 %v2292
      %v2389 = vpop.f32.mrf.mxu0
      %v2390 = vadd.f32 0.0, %v2389
      %v2391 = vpop.f32.mrf.mxu0
      %v2392 = vadd.f32 0.0, %v2391
      %2393 = vmatmul.bf16.gmra.mxu0 %v2293
      %v2394 = vpop.f32.mrf.mxu0
      %v2395 = vadd.f32 0.0, %v2394
      %v2396 = vpop.f32.mrf.mxu0
      %v2397 = vadd.f32 0.0, %v2396
      %2398 = vmatmul.bf16.gmra.mxu0 %v2294
      %v2399 = vpop.f32.mrf.mxu0
      %v2400 = vadd.f32 0.0, %v2399
      %v2401 = vpop.f32.mrf.mxu0
      %v2402 = vadd.f32 0.0, %v2401
      %2403 = vmatmul.bf16.gmra.mxu0 %v2295
      %v2404 = vpop.f32.mrf.mxu0
      %v2405 = vadd.f32 0.0, %v2404
      %v2406 = vpop.f32.mrf.mxu0
      %v2407 = vadd.f32 0.0, %v2406
      %2408 = vmatmul.bf16.gmra.mxu0 %v2296
      %v2409 = vpop.f32.mrf.mxu0
      %v2410 = vadd.f32 0.0, %v2409
      %v2411 = vpop.f32.mrf.mxu0
      %v2412 = vadd.f32 0.0, %v2411
      %2413 = vmatmul.bf16.gmra.mxu0 %v2297
      %v2414 = vpop.f32.mrf.mxu0
      %v2415 = vadd.f32 0.0, %v2414
      %v2416 = vpop.f32.mrf.mxu0
      %v2417 = vadd.f32 0.0, %v2416
      %2418 = vmatmul.bf16.gmra.mxu0 %v2298
      %v2419 = vpop.f32.mrf.mxu0
      %v2420 = vadd.f32 0.0, %v2419
      %v2421 = vpop.f32.mrf.mxu0
      %v2422 = vadd.f32 0.0, %v2421
      %2423 = vmatmul.bf16.gmra.mxu0 %v2299
      %v2424 = vpop.f32.mrf.mxu0
      %v2425 = vadd.f32 0.0, %v2424
      %v2426 = vpop.f32.mrf.mxu0
      %v2427 = vadd.f32 0.0, %v2426
      %2428 = vmatmul.bf16.gmra.mxu0 %v2300
      %v2429 = vpop.f32.mrf.mxu0
      %v2430 = vadd.f32 0.0, %v2429
      %v2431 = vpop.f32.mrf.mxu0
      %v2432 = vadd.f32 0.0, %v2431
      %2433 = vmatmul.bf16.gmra.mxu0 %v2301
      %v2434 = vpop.f32.mrf.mxu0
      %v2435 = vadd.f32 0.0, %v2434
      %v2436 = vpop.f32.mrf.mxu0
      %v2437 = vadd.f32 0.0, %v2436
      %2438 = vmatmul.bf16.gmra.mxu0 %v2302
      %v2439 = vpop.f32.mrf.mxu0
      %v2440 = vadd.f32 0.0, %v2439
      %v2441 = vpop.f32.mrf.mxu0
      %v2442 = vadd.f32 0.0, %v2441
      %2443 = vmatmul.bf16.gmra.mxu0 %v2303
      %v2444 = vpop.f32.mrf.mxu0
      %v2445 = vadd.f32 0.0, %v2444
      %v2446 = vpop.f32.mrf.mxu0
      %v2447 = vadd.f32 0.0, %v2446
      %2448 = vmatmul.bf16.gmra.mxu0 %v2304
      %v2449 = vpop.f32.mrf.mxu0
      %v2450 = vadd.f32 0.0, %v2449
      %v2451 = vpop.f32.mrf.mxu0
      %v2452 = vadd.f32 0.0, %v2451
      %2453 = vmatmul.bf16.gmra.mxu0 %v2305
      %v2454 = vpop.f32.mrf.mxu0
      %v2455 = vadd.f32 0.0, %v2454
      %v2456 = vpop.f32.mrf.mxu0
      %v2457 = vadd.f32 0.0, %v2456
      %2458 = vdwg.mxu0
      %v2459 = vadd.f32 %v1778, %v2380
      %v2460 = vadd.f32 %v1779, %v2382
      %v2461 = vadd.f32 %v1780, %v2385
      %v2462 = vadd.f32 %v1781, %v2387
      %v2463 = vadd.f32 %v1782, %v2390
      %v2464 = vadd.f32 %v1783, %v2392
      %v2465 = vadd.f32 %v1784, %v2395
      %v2466 = vadd.f32 %v1785, %v2397
      %v2467 = vadd.f32 %v1786, %v2400
      %v2468 = vadd.f32 %v1787, %v2402
      %v2469 = vadd.f32 %v1788, %v2405
      %v2470 = vadd.f32 %v1789, %v2407
      %v2471 = vadd.f32 %v1790, %v2410
      %v2472 = vadd.f32 %v1791, %v2412
      %v2473 = vadd.f32 %v1792, %v2415
      %v2474 = vadd.f32 %v1793, %v2417
      %v2475 = vadd.f32 %v1794, %v2420
      %v2476 = vadd.f32 %v1795, %v2422
      %v2477 = vadd.f32 %v1796, %v2425
      %v2478 = vadd.f32 %v1797, %v2427
      %v2479 = vadd.f32 %v1798, %v2430
      %v2480 = vadd.f32 %v1799, %v2432
      %v2481 = vadd.f32 %v1800, %v2435
      %v2482 = vadd.f32 %v1801, %v2437
      %v2483 = vadd.f32 %v1802, %v2440
      %v2484 = vadd.f32 %v1803, %v2442
      %v2485 = vadd.f32 %v1804, %v2445
      %v2486 = vadd.f32 %v1805, %v2447
      %v2487 = vadd.f32 %v1806, %v2450
      %v2488 = vadd.f32 %v1807, %v2452
      %v2489 = vadd.f32 %v1808, %v2455
      %v2490 = vadd.f32 %v1809, %v2457
      %v2491 = vld [vmem:[%s1496] sm:$0xe]
      %v2492 = vld [vmem:[%s1496 + $0xc] sm:$0xe]
      %v2493 = vld [vmem:[%s1496 + $0x18] sm:$0xe]
      %v2494 = vld [vmem:[%s1496 + $0x24] sm:$0xe]
      %v2495 = vld [vmem:[%s1496 + $0x30] sm:$0xe]
      %v2496 = vld [vmem:[%s1496 + $0x3c] sm:$0xe]
      %v2497 = vld [vmem:[%s1496 + $0x48] sm:$0xe]
      %v2498 = vld [vmem:[%s1496 + $0x54] sm:$0xe]
      %v2499 = vld [vmem:[%s1496 + $0x60] sm:$0xe]
      %v2500 = vld [vmem:[%s1496 + $0x6c] sm:$0xe]
      %v2501 = vld [vmem:[%s1496 + $0x78] sm:$0xe]
      %v2502 = vld [vmem:[%s1496 + $0x84] sm:$0xe]
      %v2503 = vld [vmem:[%s1496 + $0x90] sm:$0xe]
      %v2504 = vld [vmem:[%s1496 + $0x9c] sm:$0xe]
      %v2505 = vld [vmem:[%s1496 + $0xa8] sm:$0xe]
      %v2506 = vld [vmem:[%s1496 + $0xb4] sm:$0xe]
      %v2555 = vrot.slane %v2491, 5
      %v2556 = vrot.slane %v2555, 4
      %v2557 = vrot.slane %v1811, 5
      %v2558 = vsel %vm1134, %v2556, %v2557
      %v2559 = vrot.slane %v2557, 4
      %v2560 = vrot.slane %v1812, 5
      %v2561 = vsel %vm1134, %v2559, %v2560
      %v2562 = vrot.slane %v2492, 5
      %v2563 = vrot.slane %v2562, 4
      %v2564 = vrot.slane %v1814, 5
      %v2565 = vsel %vm1134, %v2563, %v2564
      %v2566 = vrot.slane %v2564, 4
      %v2567 = vrot.slane %v1815, 5
      %v2568 = vsel %vm1134, %v2566, %v2567
      %v2569 = vrot.slane %v2493, 5
      %v2570 = vrot.slane %v2569, 4
      %v2571 = vrot.slane %v1817, 5
      %v2572 = vsel %vm1134, %v2570, %v2571
      %v2573 = vrot.slane %v2571, 4
      %v2574 = vrot.slane %v1818, 5
      %v2575 = vsel %vm1134, %v2573, %v2574
      %v2576 = vrot.slane %v2494, 5
      %v2577 = vrot.slane %v2576, 4
      %v2578 = vrot.slane %v1820, 5
      %v2579 = vsel %vm1134, %v2577, %v2578
      %v2580 = vrot.slane %v2578, 4
      %v2581 = vrot.slane %v1821, 5
      %v2582 = vsel %vm1134, %v2580, %v2581
      %v2583 = vrot.slane %v2495, 5
      %v2584 = vrot.slane %v2583, 4
      %v2585 = vrot.slane %v1823, 5
      %v2586 = vsel %vm1134, %v2584, %v2585
      %v2587 = vrot.slane %v2585, 4
      %v2588 = vrot.slane %v1824, 5
      %v2589 = vsel %vm1134, %v2587, %v2588
      %v2590 = vrot.slane %v2496, 5
      %v2591 = vrot.slane %v2590, 4
      %v2592 = vrot.slane %v1826, 5
      %v2593 = vsel %vm1134, %v2591, %v2592
      %v2594 = vrot.slane %v2592, 4
      %v2595 = vrot.slane %v1827, 5
      %v2596 = vsel %vm1134, %v2594, %v2595
      %v2597 = vrot.slane %v2497, 5
      %v2598 = vrot.slane %v2597, 4
      %v2599 = vrot.slane %v1829, 5
      %v2600 = vsel %vm1134, %v2598, %v2599
      %v2601 = vrot.slane %v2599, 4
      %v2602 = vrot.slane %v1830, 5
      %v2603 = vsel %vm1134, %v2601, %v2602
      %v2604 = vrot.slane %v2498, 5
      %v2605 = vrot.slane %v2604, 4
      %v2606 = vrot.slane %v1832, 5
      %v2607 = vsel %vm1134, %v2605, %v2606
      %v2608 = vrot.slane %v2606, 4
      %v2609 = vrot.slane %v1833, 5
      %v2610 = vsel %vm1134, %v2608, %v2609
      %v2611 = vrot.slane %v2499, 5
      %v2612 = vrot.slane %v2611, 4
      %v2613 = vrot.slane %v1835, 5
      %v2614 = vsel %vm1134, %v2612, %v2613
      %v2615 = vrot.slane %v2613, 4
      %v2616 = vrot.slane %v1836, 5
      %v2617 = vsel %vm1134, %v2615, %v2616
      %v2618 = vrot.slane %v2500, 5
      %v2619 = vrot.slane %v2618, 4
      %v2620 = vrot.slane %v1838, 5
      %v2621 = vsel %vm1134, %v2619, %v2620
      %v2622 = vrot.slane %v2620, 4
      %v2623 = vrot.slane %v1839, 5
      %v2624 = vsel %vm1134, %v2622, %v2623
      %v2625 = vrot.slane %v2501, 5
      %v2626 = vrot.slane %v2625, 4
      %v2627 = vrot.slane %v1841, 5
      %v2628 = vsel %vm1134, %v2626, %v2627
      %v2629 = vrot.slane %v2627, 4
      %v2630 = vrot.slane %v1842, 5
      %v2631 = vsel %vm1134, %v2629, %v2630
      %v2632 = vrot.slane %v2502, 5
      %v2633 = vrot.slane %v2632, 4
      %v2634 = vrot.slane %v1844, 5
      %v2635 = vsel %vm1134, %v2633, %v2634
      %v2636 = vrot.slane %v2634, 4
      %v2637 = vrot.slane %v1845, 5
      %v2638 = vsel %vm1134, %v2636, %v2637
      %v2639 = vrot.slane %v2503, 5
      %v2640 = vrot.slane %v2639, 4
      %v2641 = vrot.slane %v1847, 5
      %v2642 = vsel %vm1134, %v2640, %v2641
      %v2643 = vrot.slane %v2641, 4
      %v2644 = vrot.slane %v1848, 5
      %v2645 = vsel %vm1134, %v2643, %v2644
      %v2646 = vrot.slane %v2504, 5
      %v2647 = vrot.slane %v2646, 4
      %v2648 = vrot.slane %v1850, 5
      %v2649 = vsel %vm1134, %v2647, %v2648
      %v2650 = vrot.slane %v2648, 4
      %v2651 = vrot.slane %v1851, 5
      %v2652 = vsel %vm1134, %v2650, %v2651
      %v2653 = vrot.slane %v2505, 5
      %v2654 = vrot.slane %v2653, 4
      %v2655 = vrot.slane %v1853, 5
      %v2656 = vsel %vm1134, %v2654, %v2655
      %v2657 = vrot.slane %v2655, 4
      %v2658 = vrot.slane %v1854, 5
      %v2659 = vsel %vm1134, %v2657, %v2658
      %v2660 = vrot.slane %v2506, 5
      %v2661 = vrot.slane %v2660, 4
      %v2662 = vrot.slane %v1856, 5
      %v2663 = vsel %vm1134, %v2661, %v2662
      %v2664 = vrot.slane %v2662, 4
      %v2665 = vrot.slane %v1857, 5
      %v2666 = vsel %vm1134, %v2664, %v2665
      %v2667 = vld [vmem:[%s1 + $0x140] sm:$0xf]
      %v2668 = vld [vmem:[%s1 + $0x144] sm:$0xf]
      %v2669 = vld [vmem:[%s1 + $0x148] sm:$0xf]
      %v2670 = vld [vmem:[%s1 + $0x14c] sm:$0xf]
      %v2671 = vld [vmem:[%s1 + $0x150] sm:$0xf]
      %v2672 = vld [vmem:[%s1 + $0x154] sm:$0xf]
      %v2673 = vld [vmem:[%s1 + $0x158] sm:$0xf]
      %v2674 = vld [vmem:[%s1 + $0x15c] sm:$0xf]
      %v2675 = vld [vmem:[%s1 + $0x160] sm:$0xf]
      %v2676 = vld [vmem:[%s1 + $0x164] sm:$0xf]
      %v2677 = vld [vmem:[%s1 + $0x168] sm:$0xf]
      %v2678 = vld [vmem:[%s1 + $0x16c] sm:$0xf]
      %v2679 = vld [vmem:[%s1 + $0x170] sm:$0xf]
      %v2680 = vld [vmem:[%s1 + $0x174] sm:$0xf]
      %v2681 = vld [vmem:[%s1 + $0x178] sm:$0xf]
      %v2682 = vld [vmem:[%s1 + $0x17c] sm:$0xf]
      %v2683 = vunpack.c.l.b16 %v2558
      %v2684 = vunpack.c.l.b16 %v2561
      %v2685 = vunpack.c.l.b16 %v2565
      %v2686 = vunpack.c.l.b16 %v2568
      %v2687 = vunpack.c.l.b16 %v2572
      %v2688 = vunpack.c.l.b16 %v2575
      %v2689 = vunpack.c.l.b16 %v2579
      %v2690 = vunpack.c.l.b16 %v2582
      %v2691 = vunpack.c.l.b16 %v2586
      %v2692 = vunpack.c.l.b16 %v2589
      %v2693 = vunpack.c.l.b16 %v2593
      %v2694 = vunpack.c.l.b16 %v2596
      %v2695 = vunpack.c.l.b16 %v2600
      %v2696 = vunpack.c.l.b16 %v2603
      %v2697 = vunpack.c.l.b16 %v2607
      %v2698 = vunpack.c.l.b16 %v2610
      %v2699 = vunpack.c.l.b16 %v2614
      %v2700 = vunpack.c.l.b16 %v2617
      %v2701 = vunpack.c.l.b16 %v2621
      %v2702 = vunpack.c.l.b16 %v2624
      %v2703 = vunpack.c.l.b16 %v2628
      %v2704 = vunpack.c.l.b16 %v2631
      %v2705 = vunpack.c.l.b16 %v2635
      %v2706 = vunpack.c.l.b16 %v2638
      %v2707 = vunpack.c.l.b16 %v2642
      %v2708 = vunpack.c.l.b16 %v2645
      %v2709 = vunpack.c.l.b16 %v2649
      %v2710 = vunpack.c.l.b16 %v2652
      %v2711 = vunpack.c.l.b16 %v2656
      %v2712 = vunpack.c.l.b16 %v2659
      %v2713 = vunpack.c.l.b16 %v2663
      %v2714 = vunpack.c.l.b16 %v2666
      %v2715 = vpack.c.b16 %v2684, %v2683
      %v2716 = vpack.c.b16 %v2686, %v2685
      %v2717 = vpack.c.b16 %v2688, %v2687
      %v2718 = vpack.c.b16 %v2690, %v2689
      %v2719 = vpack.c.b16 %v2692, %v2691
      %v2720 = vpack.c.b16 %v2694, %v2693
      %v2721 = vpack.c.b16 %v2696, %v2695
      %v2722 = vpack.c.b16 %v2698, %v2697
      %v2723 = vpack.c.b16 %v2700, %v2699
      %v2724 = vpack.c.b16 %v2702, %v2701
      %v2725 = vpack.c.b16 %v2704, %v2703
      %v2726 = vpack.c.b16 %v2706, %v2705
      %v2727 = vpack.c.b16 %v2708, %v2707
      %v2728 = vpack.c.b16 %v2710, %v2709
      %v2729 = vpack.c.b16 %v2712, %v2711
      %v2730 = vpack.c.b16 %v2714, %v2713
      %v2763 = vunpack.c.l.b16 %v2667
      %v2764 = vunpack.c.l.b16 %v2668
      %v2765 = vunpack.c.l.b16 %v2669
      %v2766 = vunpack.c.l.b16 %v2670
      %v2767 = vunpack.c.l.b16 %v2671
      %v2768 = vunpack.c.l.b16 %v2672
      %v2769 = vunpack.c.l.b16 %v2673
      %v2770 = vunpack.c.l.b16 %v2674
      %v2771 = vunpack.c.l.b16 %v2675
      %v2772 = vunpack.c.l.b16 %v2676
      %v2773 = vunpack.c.l.b16 %v2677
      %v2774 = vunpack.c.l.b16 %v2678
      %v2775 = vunpack.c.l.b16 %v2679
      %v2776 = vunpack.c.l.b16 %v2680
      %v2777 = vunpack.c.l.b16 %v2681
      %v2778 = vunpack.c.l.b16 %v2682
      %v2779 = vpack.c.b16 %v2764, %v2763
      %v2780 = vpack.c.b16 %v2766, %v2765
      %v2781 = vpack.c.b16 %v2768, %v2767
      %v2782 = vpack.c.b16 %v2770, %v2769
      %v2783 = vpack.c.b16 %v2772, %v2771
      %v2784 = vpack.c.b16 %v2774, %v2773
      %v2785 = vpack.c.b16 %v2776, %v2775
      %v2786 = vpack.c.b16 %v2778, %v2777
      %2795 = vmatpush.bf16.msra.mxu0 %v2786
      %2796 = vmatpush.bf16.msra.mxu0 %v2785
      %2797 = vmatpush.bf16.msra.mxu0 %v2784
      %2798 = vmatpush.bf16.msra.mxu0 %v2783
      %2799 = vmatpush.bf16.msra.mxu0 %v2782
      %2800 = vmatpush.bf16.msra.mxu0 %v2781
      %2801 = vmatpush.bf16.msra.mxu0 %v2780
      %2802 = vmatpush.bf16.msra.mxu0 %v2779
      %2803 = vmatmul.bf16.gmra.mxu0 %v2715
      %v2804 = vpop.f32.mrf.mxu0
      %v2805 = vadd.f32 0.0, %v2804
      %v2806 = vpop.f32.mrf.mxu0
      %v2807 = vadd.f32 0.0, %v2806
      %2808 = vmatmul.bf16.gmra.mxu0 %v2716
      %v2809 = vpop.f32.mrf.mxu0
      %v2810 = vadd.f32 0.0, %v2809
      %v2811 = vpop.f32.mrf.mxu0
      %v2812 = vadd.f32 0.0, %v2811
      %2813 = vmatmul.bf16.gmra.mxu0 %v2717
      %v2814 = vpop.f32.mrf.mxu0
      %v2815 = vadd.f32 0.0, %v2814
      %v2816 = vpop.f32.mrf.mxu0
      %v2817 = vadd.f32 0.0, %v2816
      %2818 = vmatmul.bf16.gmra.mxu0 %v2718
      %v2819 = vpop.f32.mrf.mxu0
      %v2820 = vadd.f32 0.0, %v2819
      %v2821 = vpop.f32.mrf.mxu0
      %v2822 = vadd.f32 0.0, %v2821
      %2823 = vmatmul.bf16.gmra.mxu0 %v2719
      %v2824 = vpop.f32.mrf.mxu0
      %v2825 = vadd.f32 0.0, %v2824
      %v2826 = vpop.f32.mrf.mxu0
      %v2827 = vadd.f32 0.0, %v2826
      %2828 = vmatmul.bf16.gmra.mxu0 %v2720
      %v2829 = vpop.f32.mrf.mxu0
      %v2830 = vadd.f32 0.0, %v2829
      %v2831 = vpop.f32.mrf.mxu0
      %v2832 = vadd.f32 0.0, %v2831
      %2833 = vmatmul.bf16.gmra.mxu0 %v2721
      %v2834 = vpop.f32.mrf.mxu0
      %v2835 = vadd.f32 0.0, %v2834
      %v2836 = vpop.f32.mrf.mxu0
      %v2837 = vadd.f32 0.0, %v2836
      %2838 = vmatmul.bf16.gmra.mxu0 %v2722
      %v2839 = vpop.f32.mrf.mxu0
      %v2840 = vadd.f32 0.0, %v2839
      %v2841 = vpop.f32.mrf.mxu0
      %v2842 = vadd.f32 0.0, %v2841
      %2843 = vmatmul.bf16.gmra.mxu0 %v2723
      %v2844 = vpop.f32.mrf.mxu0
      %v2845 = vadd.f32 0.0, %v2844
      %v2846 = vpop.f32.mrf.mxu0
      %v2847 = vadd.f32 0.0, %v2846
      %2848 = vmatmul.bf16.gmra.mxu0 %v2724
      %v2849 = vpop.f32.mrf.mxu0
      %v2850 = vadd.f32 0.0, %v2849
      %v2851 = vpop.f32.mrf.mxu0
      %v2852 = vadd.f32 0.0, %v2851
      %2853 = vmatmul.bf16.gmra.mxu0 %v2725
      %v2854 = vpop.f32.mrf.mxu0
      %v2855 = vadd.f32 0.0, %v2854
      %v2856 = vpop.f32.mrf.mxu0
      %v2857 = vadd.f32 0.0, %v2856
      %2858 = vmatmul.bf16.gmra.mxu0 %v2726
      %v2859 = vpop.f32.mrf.mxu0
      %v2860 = vadd.f32 0.0, %v2859
      %v2861 = vpop.f32.mrf.mxu0
      %v2862 = vadd.f32 0.0, %v2861
      %2863 = vmatmul.bf16.gmra.mxu0 %v2727
      %v2864 = vpop.f32.mrf.mxu0
      %v2865 = vadd.f32 0.0, %v2864
      %v2866 = vpop.f32.mrf.mxu0
      %v2867 = vadd.f32 0.0, %v2866
      %2868 = vmatmul.bf16.gmra.mxu0 %v2728
      %v2869 = vpop.f32.mrf.mxu0
      %v2870 = vadd.f32 0.0, %v2869
      %v2871 = vpop.f32.mrf.mxu0
      %v2872 = vadd.f32 0.0, %v2871
      %2873 = vmatmul.bf16.gmra.mxu0 %v2729
      %v2874 = vpop.f32.mrf.mxu0
      %v2875 = vadd.f32 0.0, %v2874
      %v2876 = vpop.f32.mrf.mxu0
      %v2877 = vadd.f32 0.0, %v2876
      %2878 = vmatmul.bf16.gmra.mxu0 %v2730
      %v2879 = vpop.f32.mrf.mxu0
      %v2880 = vadd.f32 0.0, %v2879
      %v2881 = vpop.f32.mrf.mxu0
      %v2882 = vadd.f32 0.0, %v2881
      %2883 = vdwg.mxu0
      %v2884 = vadd.f32 %v2459, %v2805
      %v2885 = vadd.f32 %v2460, %v2807
      %v2886 = vadd.f32 %v2461, %v2810
      %v2887 = vadd.f32 %v2462, %v2812
      %v2888 = vadd.f32 %v2463, %v2815
      %v2889 = vadd.f32 %v2464, %v2817
      %v2890 = vadd.f32 %v2465, %v2820
      %v2891 = vadd.f32 %v2466, %v2822
      %v2892 = vadd.f32 %v2467, %v2825
      %v2893 = vadd.f32 %v2468, %v2827
      %v2894 = vadd.f32 %v2469, %v2830
      %v2895 = vadd.f32 %v2470, %v2832
      %v2896 = vadd.f32 %v2471, %v2835
      %v2897 = vadd.f32 %v2472, %v2837
      %v2898 = vadd.f32 %v2473, %v2840
      %v2899 = vadd.f32 %v2474, %v2842
      %v2900 = vadd.f32 %v2475, %v2845
      %v2901 = vadd.f32 %v2476, %v2847
      %v2902 = vadd.f32 %v2477, %v2850
      %v2903 = vadd.f32 %v2478, %v2852
      %v2904 = vadd.f32 %v2479, %v2855
      %v2905 = vadd.f32 %v2480, %v2857
      %v2906 = vadd.f32 %v2481, %v2860
      %v2907 = vadd.f32 %v2482, %v2862
      %v2908 = vadd.f32 %v2483, %v2865
      %v2909 = vadd.f32 %v2484, %v2867
      %v2910 = vadd.f32 %v2485, %v2870
      %v2911 = vadd.f32 %v2486, %v2872
      %v2912 = vadd.f32 %v2487, %v2875
      %v2913 = vadd.f32 %v2488, %v2877
      %v2914 = vadd.f32 %v2489, %v2880
      %v2915 = vadd.f32 %v2490, %v2882
      %s2916 = scalar_lea.vmem %s172, 24
      %v2917 = vld [vmem:[%s2916] sm:$0xf]
      %v2918 = vld [vmem:[%s2916 + $0x4] sm:$0xf]
      %v2919 = vld [vmem:[%s2916 + $0xc] sm:$0xf]
      %v2920 = vld [vmem:[%s2916 + $0x10] sm:$0xf]
      %v2921 = vld [vmem:[%s2916 + $0x18] sm:$0xf]
      %v2922 = vld [vmem:[%s2916 + $0x1c] sm:$0xf]
      %v2923 = vld [vmem:[%s2916 + $0x24] sm:$0xf]
      %v2924 = vld [vmem:[%s2916 + $0x28] sm:$0xf]
      %v2925 = vld [vmem:[%s2916 + $0x30] sm:$0xf]
      %v2926 = vld [vmem:[%s2916 + $0x34] sm:$0xf]
      %v2927 = vld [vmem:[%s2916 + $0x3c] sm:$0xf]
      %v2928 = vld [vmem:[%s2916 + $0x40] sm:$0xf]
      %v2929 = vld [vmem:[%s2916 + $0x48] sm:$0xf]
      %v2930 = vld [vmem:[%s2916 + $0x4c] sm:$0xf]
      %v2931 = vld [vmem:[%s2916 + $0x54] sm:$0xf]
      %v2932 = vld [vmem:[%s2916 + $0x58] sm:$0xf]
      %v2933 = vld [vmem:[%s2916 + $0x60] sm:$0xf]
      %v2934 = vld [vmem:[%s2916 + $0x64] sm:$0xf]
      %v2935 = vld [vmem:[%s2916 + $0x6c] sm:$0xf]
      %v2936 = vld [vmem:[%s2916 + $0x70] sm:$0xf]
      %v2937 = vld [vmem:[%s2916 + $0x78] sm:$0xf]
      %v2938 = vld [vmem:[%s2916 + $0x7c] sm:$0xf]
      %v2939 = vld [vmem:[%s2916 + $0x84] sm:$0xf]
      %v2940 = vld [vmem:[%s2916 + $0x88] sm:$0xf]
      %v2941 = vld [vmem:[%s2916 + $0x90] sm:$0xf]
      %v2942 = vld [vmem:[%s2916 + $0x94] sm:$0xf]
      %v2943 = vld [vmem:[%s2916 + $0x9c] sm:$0xf]
      %v2944 = vld [vmem:[%s2916 + $0xa0] sm:$0xf]
      %v2945 = vld [vmem:[%s2916 + $0xa8] sm:$0xf]
      %v2946 = vld [vmem:[%s2916 + $0xac] sm:$0xf]
      %v2947 = vld [vmem:[%s2916 + $0xb4] sm:$0xf]
      %v2948 = vld [vmem:[%s2916 + $0xb8] sm:$0xf]
      %v2949 = vld [vmem:[%s1 + $0x180] sm:$0xf]
      %v2950 = vld [vmem:[%s1 + $0x184] sm:$0xf]
      %v2951 = vld [vmem:[%s1 + $0x188] sm:$0xf]
      %v2952 = vld [vmem:[%s1 + $0x18c] sm:$0xf]
      %v2953 = vld [vmem:[%s1 + $0x190] sm:$0xf]
      %v2954 = vld [vmem:[%s1 + $0x194] sm:$0xf]
      %v2955 = vld [vmem:[%s1 + $0x198] sm:$0xf]
      %v2956 = vld [vmem:[%s1 + $0x19c] sm:$0xf]
      %v2957 = vld [vmem:[%s1 + $0x1a0] sm:$0xf]
      %v2958 = vld [vmem:[%s1 + $0x1a4] sm:$0xf]
      %v2959 = vld [vmem:[%s1 + $0x1a8] sm:$0xf]
      %v2960 = vld [vmem:[%s1 + $0x1ac] sm:$0xf]
      %v2961 = vld [vmem:[%s1 + $0x1b0] sm:$0xf]
      %v2962 = vld [vmem:[%s1 + $0x1b4] sm:$0xf]
      %v2963 = vld [vmem:[%s1 + $0x1b8] sm:$0xf]
      %v2964 = vld [vmem:[%s1 + $0x1bc] sm:$0xf]
      %v2997 = vunpack.c.l.b16 %v2917
      %v2998 = vunpack.c.l.b16 %v2918
      %v2999 = vunpack.c.l.b16 %v2919
      %v3000 = vunpack.c.l.b16 %v2920
      %v3001 = vunpack.c.l.b16 %v2921
      %v3002 = vunpack.c.l.b16 %v2922
      %v3003 = vunpack.c.l.b16 %v2923
      %v3004 = vunpack.c.l.b16 %v2924
      %v3005 = vunpack.c.l.b16 %v2925
      %v3006 = vunpack.c.l.b16 %v2926
      %v3007 = vunpack.c.l.b16 %v2927
      %v3008 = vunpack.c.l.b16 %v2928
      %v3009 = vunpack.c.l.b16 %v2929
      %v3010 = vunpack.c.l.b16 %v2930
      %v3011 = vunpack.c.l.b16 %v2931
      %v3012 = vunpack.c.l.b16 %v2932
      %v3013 = vunpack.c.l.b16 %v2933
      %v3014 = vunpack.c.l.b16 %v2934
      %v3015 = vunpack.c.l.b16 %v2935
      %v3016 = vunpack.c.l.b16 %v2936
      %v3017 = vunpack.c.l.b16 %v2937
      %v3018 = vunpack.c.l.b16 %v2938
      %v3019 = vunpack.c.l.b16 %v2939
      %v3020 = vunpack.c.l.b16 %v2940
      %v3021 = vunpack.c.l.b16 %v2941
      %v3022 = vunpack.c.l.b16 %v2942
      %v3023 = vunpack.c.l.b16 %v2943
      %v3024 = vunpack.c.l.b16 %v2944
      %v3025 = vunpack.c.l.b16 %v2945
      %v3026 = vunpack.c.l.b16 %v2946
      %v3027 = vunpack.c.l.b16 %v2947
      %v3028 = vunpack.c.l.b16 %v2948
      %v3029 = vpack.c.b16 %v2998, %v2997
      %v3030 = vpack.c.b16 %v3000, %v2999
      %v3031 = vpack.c.b16 %v3002, %v3001
      %v3032 = vpack.c.b16 %v3004, %v3003
      %v3033 = vpack.c.b16 %v3006, %v3005
      %v3034 = vpack.c.b16 %v3008, %v3007
      %v3035 = vpack.c.b16 %v3010, %v3009
      %v3036 = vpack.c.b16 %v3012, %v3011
      %v3037 = vpack.c.b16 %v3014, %v3013
      %v3038 = vpack.c.b16 %v3016, %v3015
      %v3039 = vpack.c.b16 %v3018, %v3017
      %v3040 = vpack.c.b16 %v3020, %v3019
      %v3041 = vpack.c.b16 %v3022, %v3021
      %v3042 = vpack.c.b16 %v3024, %v3023
      %v3043 = vpack.c.b16 %v3026, %v3025
      %v3044 = vpack.c.b16 %v3028, %v3027
      %v3077 = vunpack.c.l.b16 %v2949
      %v3078 = vunpack.c.l.b16 %v2950
      %v3079 = vunpack.c.l.b16 %v2951
      %v3080 = vunpack.c.l.b16 %v2952
      %v3081 = vunpack.c.l.b16 %v2953
      %v3082 = vunpack.c.l.b16 %v2954
      %v3083 = vunpack.c.l.b16 %v2955
      %v3084 = vunpack.c.l.b16 %v2956
      %v3085 = vunpack.c.l.b16 %v2957
      %v3086 = vunpack.c.l.b16 %v2958
      %v3087 = vunpack.c.l.b16 %v2959
      %v3088 = vunpack.c.l.b16 %v2960
      %v3089 = vunpack.c.l.b16 %v2961
      %v3090 = vunpack.c.l.b16 %v2962
      %v3091 = vunpack.c.l.b16 %v2963
      %v3092 = vunpack.c.l.b16 %v2964
      %v3093 = vpack.c.b16 %v3078, %v3077
      %v3094 = vpack.c.b16 %v3080, %v3079
      %v3095 = vpack.c.b16 %v3082, %v3081
      %v3096 = vpack.c.b16 %v3084, %v3083
      %v3097 = vpack.c.b16 %v3086, %v3085
      %v3098 = vpack.c.b16 %v3088, %v3087
      %v3099 = vpack.c.b16 %v3090, %v3089
      %v3100 = vpack.c.b16 %v3092, %v3091
      %3109 = vmatpush.bf16.msra.mxu0 %v3100
      %3110 = vmatpush.bf16.msra.mxu0 %v3099
      %3111 = vmatpush.bf16.msra.mxu0 %v3098
      %3112 = vmatpush.bf16.msra.mxu0 %v3097
      %3113 = vmatpush.bf16.msra.mxu0 %v3096
      %3114 = vmatpush.bf16.msra.mxu0 %v3095
      %3115 = vmatpush.bf16.msra.mxu0 %v3094
      %3116 = vmatpush.bf16.msra.mxu0 %v3093
      %3117 = vmatmul.bf16.gmra.mxu0 %v3029
      %v3118 = vpop.f32.mrf.mxu0
      %v3119 = vadd.f32 0.0, %v3118
      %v3120 = vpop.f32.mrf.mxu0
      %v3121 = vadd.f32 0.0, %v3120
      %3122 = vmatmul.bf16.gmra.mxu0 %v3030
      %v3123 = vpop.f32.mrf.mxu0
      %v3124 = vadd.f32 0.0, %v3123
      %v3125 = vpop.f32.mrf.mxu0
      %v3126 = vadd.f32 0.0, %v3125
      %3127 = vmatmul.bf16.gmra.mxu0 %v3031
      %v3128 = vpop.f32.mrf.mxu0
      %v3129 = vadd.f32 0.0, %v3128
      %v3130 = vpop.f32.mrf.mxu0
      %v3131 = vadd.f32 0.0, %v3130
      %3132 = vmatmul.bf16.gmra.mxu0 %v3032
      %v3133 = vpop.f32.mrf.mxu0
      %v3134 = vadd.f32 0.0, %v3133
      %v3135 = vpop.f32.mrf.mxu0
      %v3136 = vadd.f32 0.0, %v3135
      %3137 = vmatmul.bf16.gmra.mxu0 %v3033
      %v3138 = vpop.f32.mrf.mxu0
      %v3139 = vadd.f32 0.0, %v3138
      %v3140 = vpop.f32.mrf.mxu0
      %v3141 = vadd.f32 0.0, %v3140
      %3142 = vmatmul.bf16.gmra.mxu0 %v3034
      %v3143 = vpop.f32.mrf.mxu0
      %v3144 = vadd.f32 0.0, %v3143
      %v3145 = vpop.f32.mrf.mxu0
      %v3146 = vadd.f32 0.0, %v3145
      %3147 = vmatmul.bf16.gmra.mxu0 %v3035
      %v3148 = vpop.f32.mrf.mxu0
      %v3149 = vadd.f32 0.0, %v3148
      %v3150 = vpop.f32.mrf.mxu0
      %v3151 = vadd.f32 0.0, %v3150
      %3152 = vmatmul.bf16.gmra.mxu0 %v3036
      %v3153 = vpop.f32.mrf.mxu0
      %v3154 = vadd.f32 0.0, %v3153
      %v3155 = vpop.f32.mrf.mxu0
      %v3156 = vadd.f32 0.0, %v3155
      %3157 = vmatmul.bf16.gmra.mxu0 %v3037
      %v3158 = vpop.f32.mrf.mxu0
      %v3159 = vadd.f32 0.0, %v3158
      %v3160 = vpop.f32.mrf.mxu0
      %v3161 = vadd.f32 0.0, %v3160
      %3162 = vmatmul.bf16.gmra.mxu0 %v3038
      %v3163 = vpop.f32.mrf.mxu0
      %v3164 = vadd.f32 0.0, %v3163
      %v3165 = vpop.f32.mrf.mxu0
      %v3166 = vadd.f32 0.0, %v3165
      %3167 = vmatmul.bf16.gmra.mxu0 %v3039
      %v3168 = vpop.f32.mrf.mxu0
      %v3169 = vadd.f32 0.0, %v3168
      %v3170 = vpop.f32.mrf.mxu0
      %v3171 = vadd.f32 0.0, %v3170
      %3172 = vmatmul.bf16.gmra.mxu0 %v3040
      %v3173 = vpop.f32.mrf.mxu0
      %v3174 = vadd.f32 0.0, %v3173
      %v3175 = vpop.f32.mrf.mxu0
      %v3176 = vadd.f32 0.0, %v3175
      %3177 = vmatmul.bf16.gmra.mxu0 %v3041
      %v3178 = vpop.f32.mrf.mxu0
      %v3179 = vadd.f32 0.0, %v3178
      %v3180 = vpop.f32.mrf.mxu0
      %v3181 = vadd.f32 0.0, %v3180
      %3182 = vmatmul.bf16.gmra.mxu0 %v3042
      %v3183 = vpop.f32.mrf.mxu0
      %v3184 = vadd.f32 0.0, %v3183
      %v3185 = vpop.f32.mrf.mxu0
      %v3186 = vadd.f32 0.0, %v3185
      %3187 = vmatmul.bf16.gmra.mxu0 %v3043
      %v3188 = vpop.f32.mrf.mxu0
      %v3189 = vadd.f32 0.0, %v3188
      %v3190 = vpop.f32.mrf.mxu0
      %v3191 = vadd.f32 0.0, %v3190
      %3192 = vmatmul.bf16.gmra.mxu0 %v3044
      %v3193 = vpop.f32.mrf.mxu0
      %v3194 = vadd.f32 0.0, %v3193
      %v3195 = vpop.f32.mrf.mxu0
      %v3196 = vadd.f32 0.0, %v3195
      %3197 = vdwg.mxu0
      %v3198 = vadd.f32 %v2884, %v3119
      %v3199 = vadd.f32 %v2885, %v3121
      %v3200 = vadd.f32 %v2886, %v3124
      %v3201 = vadd.f32 %v2887, %v3126
      %v3202 = vadd.f32 %v2888, %v3129
      %v3203 = vadd.f32 %v2889, %v3131
      %v3204 = vadd.f32 %v2890, %v3134
      %v3205 = vadd.f32 %v2891, %v3136
      %v3206 = vadd.f32 %v2892, %v3139
      %v3207 = vadd.f32 %v2893, %v3141
      %v3208 = vadd.f32 %v2894, %v3144
      %v3209 = vadd.f32 %v2895, %v3146
      %v3210 = vadd.f32 %v2896, %v3149
      %v3211 = vadd.f32 %v2897, %v3151
      %v3212 = vadd.f32 %v2898, %v3154
      %v3213 = vadd.f32 %v2899, %v3156
      %v3214 = vadd.f32 %v2900, %v3159
      %v3215 = vadd.f32 %v2901, %v3161
      %v3216 = vadd.f32 %v2902, %v3164
      %v3217 = vadd.f32 %v2903, %v3166
      %v3218 = vadd.f32 %v2904, %v3169
      %v3219 = vadd.f32 %v2905, %v3171
      %v3220 = vadd.f32 %v2906, %v3174
      %v3221 = vadd.f32 %v2907, %v3176
      %v3222 = vadd.f32 %v2908, %v3179
      %v3223 = vadd.f32 %v2909, %v3181
      %v3224 = vadd.f32 %v2910, %v3184
      %v3225 = vadd.f32 %v2911, %v3186
      %v3226 = vadd.f32 %v2912, %v3189
      %v3227 = vadd.f32 %v2913, %v3191
      %v3228 = vadd.f32 %v2914, %v3194
      %v3229 = vadd.f32 %v2915, %v3196
      %v3230 = vld [vmem:[%s2916] sm:$0xf]
      %v3231 = vld [vmem:[%s2916 + $0x4] sm:$0xf]
      %v3232 = vld [vmem:[%s2916 + $0x8] sm:$0x1]
      %v3233 = vld [vmem:[%s2916 + $0xc] sm:$0xf]
      %v3234 = vld [vmem:[%s2916 + $0x10] sm:$0xf]
      %v3235 = vld [vmem:[%s2916 + $0x14] sm:$0x1]
      %v3236 = vld [vmem:[%s2916 + $0x18] sm:$0xf]
      %v3237 = vld [vmem:[%s2916 + $0x1c] sm:$0xf]
      %v3238 = vld [vmem:[%s2916 + $0x20] sm:$0x1]
      %v3239 = vld [vmem:[%s2916 + $0x24] sm:$0xf]
      %v3240 = vld [vmem:[%s2916 + $0x28] sm:$0xf]
      %v3241 = vld [vmem:[%s2916 + $0x2c] sm:$0x1]
      %v3242 = vld [vmem:[%s2916 + $0x30] sm:$0xf]
      %v3243 = vld [vmem:[%s2916 + $0x34] sm:$0xf]
      %v3244 = vld [vmem:[%s2916 + $0x38] sm:$0x1]
      %v3245 = vld [vmem:[%s2916 + $0x3c] sm:$0xf]
      %v3246 = vld [vmem:[%s2916 + $0x40] sm:$0xf]
      %v3247 = vld [vmem:[%s2916 + $0x44] sm:$0x1]
      %v3248 = vld [vmem:[%s2916 + $0x48] sm:$0xf]
      %v3249 = vld [vmem:[%s2916 + $0x4c] sm:$0xf]
      %v3250 = vld [vmem:[%s2916 + $0x50] sm:$0x1]
      %v3251 = vld [vmem:[%s2916 + $0x54] sm:$0xf]
      %v3252 = vld [vmem:[%s2916 + $0x58] sm:$0xf]
      %v3253 = vld [vmem:[%s2916 + $0x5c] sm:$0x1]
      %v3254 = vld [vmem:[%s2916 + $0x60] sm:$0xf]
      %v3255 = vld [vmem:[%s2916 + $0x64] sm:$0xf]
      %v3256 = vld [vmem:[%s2916 + $0x68] sm:$0x1]
      %v3257 = vld [vmem:[%s2916 + $0x6c] sm:$0xf]
      %v3258 = vld [vmem:[%s2916 + $0x70] sm:$0xf]
      %v3259 = vld [vmem:[%s2916 + $0x74] sm:$0x1]
      %v3260 = vld [vmem:[%s2916 + $0x78] sm:$0xf]
      %v3261 = vld [vmem:[%s2916 + $0x7c] sm:$0xf]
      %v3262 = vld [vmem:[%s2916 + $0x80] sm:$0x1]
      %v3263 = vld [vmem:[%s2916 + $0x84] sm:$0xf]
      %v3264 = vld [vmem:[%s2916 + $0x88] sm:$0xf]
      %v3265 = vld [vmem:[%s2916 + $0x8c] sm:$0x1]
      %v3266 = vld [vmem:[%s2916 + $0x90] sm:$0xf]
      %v3267 = vld [vmem:[%s2916 + $0x94] sm:$0xf]
      %v3268 = vld [vmem:[%s2916 + $0x98] sm:$0x1]
      %v3269 = vld [vmem:[%s2916 + $0x9c] sm:$0xf]
      %v3270 = vld [vmem:[%s2916 + $0xa0] sm:$0xf]
      %v3271 = vld [vmem:[%s2916 + $0xa4] sm:$0x1]
      %v3272 = vld [vmem:[%s2916 + $0xa8] sm:$0xf]
      %v3273 = vld [vmem:[%s2916 + $0xac] sm:$0xf]
      %v3274 = vld [vmem:[%s2916 + $0xb0] sm:$0x1]
      %v3275 = vld [vmem:[%s2916 + $0xb4] sm:$0xf]
      %v3276 = vld [vmem:[%s2916 + $0xb8] sm:$0xf]
      %v3277 = vld [vmem:[%s2916 + $0xbc] sm:$0x1]
      %v3279 = vshrl.u32 %v3230, 16
      %v3281 = vrot.slane %v3279, 4
      %v3282 = vshll.u32 %v3230, 16
      %v3284 = vrot.slane %v3282, 5
      %v3285 = vor.u32 %v3281, %v3284
      %v3286 = vrot.slane %v3285, 4
      %v3288 = vshll.u32 %v3231, 16
      %v3290 = vrot.slane %v3288, 5
      %v3291 = vsel %vm249, %v3286, %v3290
      %v3292 = vshrl.u32 %v3231, 16
      %v3294 = vrot.slane %v3292, 4
      %v3295 = vor.u32 %v3294, %v3290
      %v3296 = vrot.slane %v3295, 4
      %v3298 = vshll.u32 %v3232, 16
      %v3300 = vrot.slane %v3298, 5
      %v3301 = vsel %vm249, %v3296, %v3300
      %v3303 = vshrl.u32 %v3233, 16
      %v3305 = vrot.slane %v3303, 4
      %v3306 = vshll.u32 %v3233, 16
      %v3308 = vrot.slane %v3306, 5
      %v3309 = vor.u32 %v3305, %v3308
      %v3310 = vrot.slane %v3309, 4
      %v3312 = vshll.u32 %v3234, 16
      %v3314 = vrot.slane %v3312, 5
      %v3315 = vsel %vm249, %v3310, %v3314
      %v3316 = vshrl.u32 %v3234, 16
      %v3318 = vrot.slane %v3316, 4
      %v3319 = vor.u32 %v3318, %v3314
      %v3320 = vrot.slane %v3319, 4
      %v3322 = vshll.u32 %v3235, 16
      %v3324 = vrot.slane %v3322, 5
      %v3325 = vsel %vm249, %v3320, %v3324
      %v3327 = vshrl.u32 %v3236, 16
      %v3329 = vrot.slane %v3327, 4
      %v3330 = vshll.u32 %v3236, 16
      %v3332 = vrot.slane %v3330, 5
      %v3333 = vor.u32 %v3329, %v3332
      %v3334 = vrot.slane %v3333, 4
      %v3336 = vshll.u32 %v3237, 16
      %v3338 = vrot.slane %v3336, 5
      %v3339 = vsel %vm249, %v3334, %v3338
      %v3340 = vshrl.u32 %v3237, 16
      %v3342 = vrot.slane %v3340, 4
      %v3343 = vor.u32 %v3342, %v3338
      %v3344 = vrot.slane %v3343, 4
      %v3346 = vshll.u32 %v3238, 16
      %v3348 = vrot.slane %v3346, 5
      %v3349 = vsel %vm249, %v3344, %v3348
      %v3351 = vshrl.u32 %v3239, 16
      %v3353 = vrot.slane %v3351, 4
      %v3354 = vshll.u32 %v3239, 16
      %v3356 = vrot.slane %v3354, 5
      %v3357 = vor.u32 %v3353, %v3356
      %v3358 = vrot.slane %v3357, 4
      %v3360 = vshll.u32 %v3240, 16
      %v3362 = vrot.slane %v3360, 5
      %v3363 = vsel %vm249, %v3358, %v3362
      %v3364 = vshrl.u32 %v3240, 16
      %v3366 = vrot.slane %v3364, 4
      %v3367 = vor.u32 %v3366, %v3362
      %v3368 = vrot.slane %v3367, 4
      %v3370 = vshll.u32 %v3241, 16
      %v3372 = vrot.slane %v3370, 5
      %v3373 = vsel %vm249, %v3368, %v3372
      %v3375 = vshrl.u32 %v3242, 16
      %v3377 = vrot.slane %v3375, 4
      %v3378 = vshll.u32 %v3242, 16
      %v3380 = vrot.slane %v3378, 5
      %v3381 = vor.u32 %v3377, %v3380
      %v3382 = vrot.slane %v3381, 4
      %v3384 = vshll.u32 %v3243, 16
      %v3386 = vrot.slane %v3384, 5
      %v3387 = vsel %vm249, %v3382, %v3386
      %v3388 = vshrl.u32 %v3243, 16
      %v3390 = vrot.slane %v3388, 4
      %v3391 = vor.u32 %v3390, %v3386
      %v3392 = vrot.slane %v3391, 4
      %v3394 = vshll.u32 %v3244, 16
      %v3396 = vrot.slane %v3394, 5
      %v3397 = vsel %vm249, %v3392, %v3396
      %v3399 = vshrl.u32 %v3245, 16
      %v3401 = vrot.slane %v3399, 4
      %v3402 = vshll.u32 %v3245, 16
      %v3404 = vrot.slane %v3402, 5
      %v3405 = vor.u32 %v3401, %v3404
      %v3406 = vrot.slane %v3405, 4
      %v3408 = vshll.u32 %v3246, 16
      %v3410 = vrot.slane %v3408, 5
      %v3411 = vsel %vm249, %v3406, %v3410
      %v3412 = vshrl.u32 %v3246, 16
      %v3414 = vrot.slane %v3412, 4
      %v3415 = vor.u32 %v3414, %v3410
      %v3416 = vrot.slane %v3415, 4
      %v3418 = vshll.u32 %v3247, 16
      %v3420 = vrot.slane %v3418, 5
      %v3421 = vsel %vm249, %v3416, %v3420
      %v3423 = vshrl.u32 %v3248, 16
      %v3425 = vrot.slane %v3423, 4
      %v3426 = vshll.u32 %v3248, 16
      %v3428 = vrot.slane %v3426, 5
      %v3429 = vor.u32 %v3425, %v3428
      %v3430 = vrot.slane %v3429, 4
      %v3432 = vshll.u32 %v3249, 16
      %v3434 = vrot.slane %v3432, 5
      %v3435 = vsel %vm249, %v3430, %v3434
      %v3436 = vshrl.u32 %v3249, 16
      %v3438 = vrot.slane %v3436, 4
      %v3439 = vor.u32 %v3438, %v3434
      %v3440 = vrot.slane %v3439, 4
      %v3442 = vshll.u32 %v3250, 16
      %v3444 = vrot.slane %v3442, 5
      %v3445 = vsel %vm249, %v3440, %v3444
      %v3447 = vshrl.u32 %v3251, 16
      %v3449 = vrot.slane %v3447, 4
      %v3450 = vshll.u32 %v3251, 16
      %v3452 = vrot.slane %v3450, 5
      %v3453 = vor.u32 %v3449, %v3452
      %v3454 = vrot.slane %v3453, 4
      %v3456 = vshll.u32 %v3252, 16
      %v3458 = vrot.slane %v3456, 5
      %v3459 = vsel %vm249, %v3454, %v3458
      %v3460 = vshrl.u32 %v3252, 16
      %v3462 = vrot.slane %v3460, 4
      %v3463 = vor.u32 %v3462, %v3458
      %v3464 = vrot.slane %v3463, 4
      %v3466 = vshll.u32 %v3253, 16
      %v3468 = vrot.slane %v3466, 5
      %v3469 = vsel %vm249, %v3464, %v3468
      %v3471 = vshrl.u32 %v3254, 16
      %v3473 = vrot.slane %v3471, 4
      %v3474 = vshll.u32 %v3254, 16
      %v3476 = vrot.slane %v3474, 5
      %v3477 = vor.u32 %v3473, %v3476
      %v3478 = vrot.slane %v3477, 4
      %v3480 = vshll.u32 %v3255, 16
      %v3482 = vrot.slane %v3480, 5
      %v3483 = vsel %vm249, %v3478, %v3482
      %v3484 = vshrl.u32 %v3255, 16
      %v3486 = vrot.slane %v3484, 4
      %v3487 = vor.u32 %v3486, %v3482
      %v3488 = vrot.slane %v3487, 4
      %v3490 = vshll.u32 %v3256, 16
      %v3492 = vrot.slane %v3490, 5
      %v3493 = vsel %vm249, %v3488, %v3492
      %v3495 = vshrl.u32 %v3257, 16
      %v3497 = vrot.slane %v3495, 4
      %v3498 = vshll.u32 %v3257, 16
      %v3500 = vrot.slane %v3498, 5
      %v3501 = vor.u32 %v3497, %v3500
      %v3502 = vrot.slane %v3501, 4
      %v3504 = vshll.u32 %v3258, 16
      %v3506 = vrot.slane %v3504, 5
      %v3507 = vsel %vm249, %v3502, %v3506
      %v3508 = vshrl.u32 %v3258, 16
      %v3510 = vrot.slane %v3508, 4
      %v3511 = vor.u32 %v3510, %v3506
      %v3512 = vrot.slane %v3511, 4
      %v3514 = vshll.u32 %v3259, 16
      %v3516 = vrot.slane %v3514, 5
      %v3517 = vsel %vm249, %v3512, %v3516
      %v3519 = vshrl.u32 %v3260, 16
      %v3521 = vrot.slane %v3519, 4
      %v3522 = vshll.u32 %v3260, 16
      %v3524 = vrot.slane %v3522, 5
      %v3525 = vor.u32 %v3521, %v3524
      %v3526 = vrot.slane %v3525, 4
      %v3528 = vshll.u32 %v3261, 16
      %v3530 = vrot.slane %v3528, 5
      %v3531 = vsel %vm249, %v3526, %v3530
      %v3532 = vshrl.u32 %v3261, 16
      %v3534 = vrot.slane %v3532, 4
      %v3535 = vor.u32 %v3534, %v3530
      %v3536 = vrot.slane %v3535, 4
      %v3538 = vshll.u32 %v3262, 16
      %v3540 = vrot.slane %v3538, 5
      %v3541 = vsel %vm249, %v3536, %v3540
      %v3543 = vshrl.u32 %v3263, 16
      %v3545 = vrot.slane %v3543, 4
      %v3546 = vshll.u32 %v3263, 16
      %v3548 = vrot.slane %v3546, 5
      %v3549 = vor.u32 %v3545, %v3548
      %v3550 = vrot.slane %v3549, 4
      %v3552 = vshll.u32 %v3264, 16
      %v3554 = vrot.slane %v3552, 5
      %v3555 = vsel %vm249, %v3550, %v3554
      %v3556 = vshrl.u32 %v3264, 16
      %v3558 = vrot.slane %v3556, 4
      %v3559 = vor.u32 %v3558, %v3554
      %v3560 = vrot.slane %v3559, 4
      %v3562 = vshll.u32 %v3265, 16
      %v3564 = vrot.slane %v3562, 5
      %v3565 = vsel %vm249, %v3560, %v3564
      %v3567 = vshrl.u32 %v3266, 16
      %v3569 = vrot.slane %v3567, 4
      %v3570 = vshll.u32 %v3266, 16
      %v3572 = vrot.slane %v3570, 5
      %v3573 = vor.u32 %v3569, %v3572
      %v3574 = vrot.slane %v3573, 4
      %v3576 = vshll.u32 %v3267, 16
      %v3578 = vrot.slane %v3576, 5
      %v3579 = vsel %vm249, %v3574, %v3578
      %v3580 = vshrl.u32 %v3267, 16
      %v3582 = vrot.slane %v3580, 4
      %v3583 = vor.u32 %v3582, %v3578
      %v3584 = vrot.slane %v3583, 4
      %v3586 = vshll.u32 %v3268, 16
      %v3588 = vrot.slane %v3586, 5
      %v3589 = vsel %vm249, %v3584, %v3588
      %v3591 = vshrl.u32 %v3269, 16
      %v3593 = vrot.slane %v3591, 4
      %v3594 = vshll.u32 %v3269, 16
      %v3596 = vrot.slane %v3594, 5
      %v3597 = vor.u32 %v3593, %v3596
      %v3598 = vrot.slane %v3597, 4
      %v3600 = vshll.u32 %v3270, 16
      %v3602 = vrot.slane %v3600, 5
      %v3603 = vsel %vm249, %v3598, %v3602
      %v3604 = vshrl.u32 %v3270, 16
      %v3606 = vrot.slane %v3604, 4
      %v3607 = vor.u32 %v3606, %v3602
      %v3608 = vrot.slane %v3607, 4
      %v3610 = vshll.u32 %v3271, 16
      %v3612 = vrot.slane %v3610, 5
      %v3613 = vsel %vm249, %v3608, %v3612
      %v3615 = vshrl.u32 %v3272, 16
      %v3617 = vrot.slane %v3615, 4
      %v3618 = vshll.u32 %v3272, 16
      %v3620 = vrot.slane %v3618, 5
      %v3621 = vor.u32 %v3617, %v3620
      %v3622 = vrot.slane %v3621, 4
      %v3624 = vshll.u32 %v3273, 16
      %v3626 = vrot.slane %v3624, 5
      %v3627 = vsel %vm249, %v3622, %v3626
      %v3628 = vshrl.u32 %v3273, 16
      %v3630 = vrot.slane %v3628, 4
      %v3631 = vor.u32 %v3630, %v3626
      %v3632 = vrot.slane %v3631, 4
      %v3634 = vshll.u32 %v3274, 16
      %v3636 = vrot.slane %v3634, 5
      %v3637 = vsel %vm249, %v3632, %v3636
      %v3639 = vshrl.u32 %v3275, 16
      %v3641 = vrot.slane %v3639, 4
      %v3642 = vshll.u32 %v3275, 16
      %v3644 = vrot.slane %v3642, 5
      %v3645 = vor.u32 %v3641, %v3644
      %v3646 = vrot.slane %v3645, 4
      %v3648 = vshll.u32 %v3276, 16
      %v3650 = vrot.slane %v3648, 5
      %v3651 = vsel %vm249, %v3646, %v3650
      %v3652 = vshrl.u32 %v3276, 16
      %v3654 = vrot.slane %v3652, 4
      %v3655 = vor.u32 %v3654, %v3650
      %v3656 = vrot.slane %v3655, 4
      %v3658 = vshll.u32 %v3277, 16
      %v3660 = vrot.slane %v3658, 5
      %v3661 = vsel %vm249, %v3656, %v3660
      %v3662 = vld [vmem:[%s1 + $0x1c0] sm:$0xf]
      %v3663 = vld [vmem:[%s1 + $0x1c4] sm:$0xf]
      %v3664 = vld [vmem:[%s1 + $0x1c8] sm:$0xf]
      %v3665 = vld [vmem:[%s1 + $0x1cc] sm:$0xf]
      %v3666 = vld [vmem:[%s1 + $0x1d0] sm:$0xf]
      %v3667 = vld [vmem:[%s1 + $0x1d4] sm:$0xf]
      %v3668 = vld [vmem:[%s1 + $0x1d8] sm:$0xf]
      %v3669 = vld [vmem:[%s1 + $0x1dc] sm:$0xf]
      %v3670 = vld [vmem:[%s1 + $0x1e0] sm:$0xf]
      %v3671 = vld [vmem:[%s1 + $0x1e4] sm:$0xf]
      %v3672 = vld [vmem:[%s1 + $0x1e8] sm:$0xf]
      %v3673 = vld [vmem:[%s1 + $0x1ec] sm:$0xf]
      %v3674 = vld [vmem:[%s1 + $0x1f0] sm:$0xf]
      %v3675 = vld [vmem:[%s1 + $0x1f4] sm:$0xf]
      %v3676 = vld [vmem:[%s1 + $0x1f8] sm:$0xf]
      %v3677 = vld [vmem:[%s1 + $0x1fc] sm:$0xf]
      %v3678 = vunpack.c.l.b16 %v3291
      %v3679 = vunpack.c.l.b16 %v3301
      %v3680 = vunpack.c.l.b16 %v3315
      %v3681 = vunpack.c.l.b16 %v3325
      %v3682 = vunpack.c.l.b16 %v3339
      %v3683 = vunpack.c.l.b16 %v3349
      %v3684 = vunpack.c.l.b16 %v3363
      %v3685 = vunpack.c.l.b16 %v3373
      %v3686 = vunpack.c.l.b16 %v3387
      %v3687 = vunpack.c.l.b16 %v3397
      %v3688 = vunpack.c.l.b16 %v3411
      %v3689 = vunpack.c.l.b16 %v3421
      %v3690 = vunpack.c.l.b16 %v3435
      %v3691 = vunpack.c.l.b16 %v3445
      %v3692 = vunpack.c.l.b16 %v3459
      %v3693 = vunpack.c.l.b16 %v3469
      %v3694 = vunpack.c.l.b16 %v3483
      %v3695 = vunpack.c.l.b16 %v3493
      %v3696 = vunpack.c.l.b16 %v3507
      %v3697 = vunpack.c.l.b16 %v3517
      %v3698 = vunpack.c.l.b16 %v3531
      %v3699 = vunpack.c.l.b16 %v3541
      %v3700 = vunpack.c.l.b16 %v3555
      %v3701 = vunpack.c.l.b16 %v3565
      %v3702 = vunpack.c.l.b16 %v3579
      %v3703 = vunpack.c.l.b16 %v3589
      %v3704 = vunpack.c.l.b16 %v3603
      %v3705 = vunpack.c.l.b16 %v3613
      %v3706 = vunpack.c.l.b16 %v3627
      %v3707 = vunpack.c.l.b16 %v3637
      %v3708 = vunpack.c.l.b16 %v3651
      %v3709 = vunpack.c.l.b16 %v3661
      %v3710 = vpack.c.b16 %v3679, %v3678
      %v3711 = vpack.c.b16 %v3681, %v3680
      %v3712 = vpack.c.b16 %v3683, %v3682
      %v3713 = vpack.c.b16 %v3685, %v3684
      %v3714 = vpack.c.b16 %v3687, %v3686
      %v3715 = vpack.c.b16 %v3689, %v3688
      %v3716 = vpack.c.b16 %v3691, %v3690
      %v3717 = vpack.c.b16 %v3693, %v3692
      %v3718 = vpack.c.b16 %v3695, %v3694
      %v3719 = vpack.c.b16 %v3697, %v3696
      %v3720 = vpack.c.b16 %v3699, %v3698
      %v3721 = vpack.c.b16 %v3701, %v3700
      %v3722 = vpack.c.b16 %v3703, %v3702
      %v3723 = vpack.c.b16 %v3705, %v3704
      %v3724 = vpack.c.b16 %v3707, %v3706
      %v3725 = vpack.c.b16 %v3709, %v3708
      %v3758 = vunpack.c.l.b16 %v3662
      %v3759 = vunpack.c.l.b16 %v3663
      %v3760 = vunpack.c.l.b16 %v3664
      %v3761 = vunpack.c.l.b16 %v3665
      %v3762 = vunpack.c.l.b16 %v3666
      %v3763 = vunpack.c.l.b16 %v3667
      %v3764 = vunpack.c.l.b16 %v3668
      %v3765 = vunpack.c.l.b16 %v3669
      %v3766 = vunpack.c.l.b16 %v3670
      %v3767 = vunpack.c.l.b16 %v3671
      %v3768 = vunpack.c.l.b16 %v3672
      %v3769 = vunpack.c.l.b16 %v3673
      %v3770 = vunpack.c.l.b16 %v3674
      %v3771 = vunpack.c.l.b16 %v3675
      %v3772 = vunpack.c.l.b16 %v3676
      %v3773 = vunpack.c.l.b16 %v3677
      %v3774 = vpack.c.b16 %v3759, %v3758
      %v3775 = vpack.c.b16 %v3761, %v3760
      %v3776 = vpack.c.b16 %v3763, %v3762
      %v3777 = vpack.c.b16 %v3765, %v3764
      %v3778 = vpack.c.b16 %v3767, %v3766
      %v3779 = vpack.c.b16 %v3769, %v3768
      %v3780 = vpack.c.b16 %v3771, %v3770
      %v3781 = vpack.c.b16 %v3773, %v3772
      %3790 = vmatpush.bf16.msra.mxu0 %v3781
      %3791 = vmatpush.bf16.msra.mxu0 %v3780
      %3792 = vmatpush.bf16.msra.mxu0 %v3779
      %3793 = vmatpush.bf16.msra.mxu0 %v3778
      %3794 = vmatpush.bf16.msra.mxu0 %v3777
      %3795 = vmatpush.bf16.msra.mxu0 %v3776
      %3796 = vmatpush.bf16.msra.mxu0 %v3775
      %3797 = vmatpush.bf16.msra.mxu0 %v3774
      %3798 = vmatmul.bf16.gmra.mxu0 %v3710
      %v3799 = vpop.f32.mrf.mxu0
      %v3800 = vadd.f32 0.0, %v3799
      %v3801 = vpop.f32.mrf.mxu0
      %v3802 = vadd.f32 0.0, %v3801
      %3803 = vmatmul.bf16.gmra.mxu0 %v3711
      %v3804 = vpop.f32.mrf.mxu0
      %v3805 = vadd.f32 0.0, %v3804
      %v3806 = vpop.f32.mrf.mxu0
      %v3807 = vadd.f32 0.0, %v3806
      %3808 = vmatmul.bf16.gmra.mxu0 %v3712
      %v3809 = vpop.f32.mrf.mxu0
      %v3810 = vadd.f32 0.0, %v3809
      %v3811 = vpop.f32.mrf.mxu0
      %v3812 = vadd.f32 0.0, %v3811
      %3813 = vmatmul.bf16.gmra.mxu0 %v3713
      %v3814 = vpop.f32.mrf.mxu0
      %v3815 = vadd.f32 0.0, %v3814
      %v3816 = vpop.f32.mrf.mxu0
      %v3817 = vadd.f32 0.0, %v3816
      %3818 = vmatmul.bf16.gmra.mxu0 %v3714
      %v3819 = vpop.f32.mrf.mxu0
      %v3820 = vadd.f32 0.0, %v3819
      %v3821 = vpop.f32.mrf.mxu0
      %v3822 = vadd.f32 0.0, %v3821
      %3823 = vmatmul.bf16.gmra.mxu0 %v3715
      %v3824 = vpop.f32.mrf.mxu0
      %v3825 = vadd.f32 0.0, %v3824
      %v3826 = vpop.f32.mrf.mxu0
      %v3827 = vadd.f32 0.0, %v3826
      %3828 = vmatmul.bf16.gmra.mxu0 %v3716
      %v3829 = vpop.f32.mrf.mxu0
      %v3830 = vadd.f32 0.0, %v3829
      %v3831 = vpop.f32.mrf.mxu0
      %v3832 = vadd.f32 0.0, %v3831
      %3833 = vmatmul.bf16.gmra.mxu0 %v3717
      %v3834 = vpop.f32.mrf.mxu0
      %v3835 = vadd.f32 0.0, %v3834
      %v3836 = vpop.f32.mrf.mxu0
      %v3837 = vadd.f32 0.0, %v3836
      %3838 = vmatmul.bf16.gmra.mxu0 %v3718
      %v3839 = vpop.f32.mrf.mxu0
      %v3840 = vadd.f32 0.0, %v3839
      %v3841 = vpop.f32.mrf.mxu0
      %v3842 = vadd.f32 0.0, %v3841
      %3843 = vmatmul.bf16.gmra.mxu0 %v3719
      %v3844 = vpop.f32.mrf.mxu0
      %v3845 = vadd.f32 0.0, %v3844
      %v3846 = vpop.f32.mrf.mxu0
      %v3847 = vadd.f32 0.0, %v3846
      %3848 = vmatmul.bf16.gmra.mxu0 %v3720
      %v3849 = vpop.f32.mrf.mxu0
      %v3850 = vadd.f32 0.0, %v3849
      %v3851 = vpop.f32.mrf.mxu0
      %v3852 = vadd.f32 0.0, %v3851
      %3853 = vmatmul.bf16.gmra.mxu0 %v3721
      %v3854 = vpop.f32.mrf.mxu0
      %v3855 = vadd.f32 0.0, %v3854
      %v3856 = vpop.f32.mrf.mxu0
      %v3857 = vadd.f32 0.0, %v3856
      %3858 = vmatmul.bf16.gmra.mxu0 %v3722
      %v3859 = vpop.f32.mrf.mxu0
      %v3860 = vadd.f32 0.0, %v3859
      %v3861 = vpop.f32.mrf.mxu0
      %v3862 = vadd.f32 0.0, %v3861
      %3863 = vmatmul.bf16.gmra.mxu0 %v3723
      %v3864 = vpop.f32.mrf.mxu0
      %v3865 = vadd.f32 0.0, %v3864
      %v3866 = vpop.f32.mrf.mxu0
      %v3867 = vadd.f32 0.0, %v3866
      %3868 = vmatmul.bf16.gmra.mxu0 %v3724
      %v3869 = vpop.f32.mrf.mxu0
      %v3870 = vadd.f32 0.0, %v3869
      %v3871 = vpop.f32.mrf.mxu0
      %v3872 = vadd.f32 0.0, %v3871
      %3873 = vmatmul.bf16.gmra.mxu0 %v3725
      %v3874 = vpop.f32.mrf.mxu0
      %v3875 = vadd.f32 0.0, %v3874
      %v3876 = vpop.f32.mrf.mxu0
      %v3877 = vadd.f32 0.0, %v3876
      %3878 = vdwg.mxu0
      %v3879 = vadd.f32 %v3198, %v3800
      %v3880 = vadd.f32 %v3199, %v3802
      %v3881 = vadd.f32 %v3200, %v3805
      %v3882 = vadd.f32 %v3201, %v3807
      %v3883 = vadd.f32 %v3202, %v3810
      %v3884 = vadd.f32 %v3203, %v3812
      %v3885 = vadd.f32 %v3204, %v3815
      %v3886 = vadd.f32 %v3205, %v3817
      %v3887 = vadd.f32 %v3206, %v3820
      %v3888 = vadd.f32 %v3207, %v3822
      %v3889 = vadd.f32 %v3208, %v3825
      %v3890 = vadd.f32 %v3209, %v3827
      %v3891 = vadd.f32 %v3210, %v3830
      %v3892 = vadd.f32 %v3211, %v3832
      %v3893 = vadd.f32 %v3212, %v3835
      %v3894 = vadd.f32 %v3213, %v3837
      %v3895 = vadd.f32 %v3214, %v3840
      %v3896 = vadd.f32 %v3215, %v3842
      %v3897 = vadd.f32 %v3216, %v3845
      %v3898 = vadd.f32 %v3217, %v3847
      %v3899 = vadd.f32 %v3218, %v3850
      %v3900 = vadd.f32 %v3219, %v3852
      %v3901 = vadd.f32 %v3220, %v3855
      %v3902 = vadd.f32 %v3221, %v3857
      %v3903 = vadd.f32 %v3222, %v3860
      %v3904 = vadd.f32 %v3223, %v3862
      %v3905 = vadd.f32 %v3224, %v3865
      %v3906 = vadd.f32 %v3225, %v3867
      %v3907 = vadd.f32 %v3226, %v3870
      %v3908 = vadd.f32 %v3227, %v3872
      %v3909 = vadd.f32 %v3228, %v3875
      %v3910 = vadd.f32 %v3229, %v3877
      %v3911 = vld [vmem:[%s2916] sm:$0xe]
      %v3912 = vld [vmem:[%s2916 + $0xc] sm:$0xe]
      %v3913 = vld [vmem:[%s2916 + $0x18] sm:$0xe]
      %v3914 = vld [vmem:[%s2916 + $0x24] sm:$0xe]
      %v3915 = vld [vmem:[%s2916 + $0x30] sm:$0xe]
      %v3916 = vld [vmem:[%s2916 + $0x3c] sm:$0xe]
      %v3917 = vld [vmem:[%s2916 + $0x48] sm:$0xe]
      %v3918 = vld [vmem:[%s2916 + $0x54] sm:$0xe]
      %v3919 = vld [vmem:[%s2916 + $0x60] sm:$0xe]
      %v3920 = vld [vmem:[%s2916 + $0x6c] sm:$0xe]
      %v3921 = vld [vmem:[%s2916 + $0x78] sm:$0xe]
      %v3922 = vld [vmem:[%s2916 + $0x84] sm:$0xe]
      %v3923 = vld [vmem:[%s2916 + $0x90] sm:$0xe]
      %v3924 = vld [vmem:[%s2916 + $0x9c] sm:$0xe]
      %v3925 = vld [vmem:[%s2916 + $0xa8] sm:$0xe]
      %v3926 = vld [vmem:[%s2916 + $0xb4] sm:$0xe]
      %v3975 = vrot.slane %v3911, 5
      %v3976 = vrot.slane %v3975, 4
      %v3977 = vrot.slane %v3231, 5
      %v3978 = vsel %vm1134, %v3976, %v3977
      %v3979 = vrot.slane %v3977, 4
      %v3980 = vrot.slane %v3232, 5
      %v3981 = vsel %vm1134, %v3979, %v3980
      %v3982 = vrot.slane %v3912, 5
      %v3983 = vrot.slane %v3982, 4
      %v3984 = vrot.slane %v3234, 5
      %v3985 = vsel %vm1134, %v3983, %v3984
      %v3986 = vrot.slane %v3984, 4
      %v3987 = vrot.slane %v3235, 5
      %v3988 = vsel %vm1134, %v3986, %v3987
      %v3989 = vrot.slane %v3913, 5
      %v3990 = vrot.slane %v3989, 4
      %v3991 = vrot.slane %v3237, 5
      %v3992 = vsel %vm1134, %v3990, %v3991
      %v3993 = vrot.slane %v3991, 4
      %v3994 = vrot.slane %v3238, 5
      %v3995 = vsel %vm1134, %v3993, %v3994
      %v3996 = vrot.slane %v3914, 5
      %v3997 = vrot.slane %v3996, 4
      %v3998 = vrot.slane %v3240, 5
      %v3999 = vsel %vm1134, %v3997, %v3998
      %v4000 = vrot.slane %v3998, 4
      %v4001 = vrot.slane %v3241, 5
      %v4002 = vsel %vm1134, %v4000, %v4001
      %v4003 = vrot.slane %v3915, 5
      %v4004 = vrot.slane %v4003, 4
      %v4005 = vrot.slane %v3243, 5
      %v4006 = vsel %vm1134, %v4004, %v4005
      %v4007 = vrot.slane %v4005, 4
      %v4008 = vrot.slane %v3244, 5
      %v4009 = vsel %vm1134, %v4007, %v4008
      %v4010 = vrot.slane %v3916, 5
      %v4011 = vrot.slane %v4010, 4
      %v4012 = vrot.slane %v3246, 5
      %v4013 = vsel %vm1134, %v4011, %v4012
      %v4014 = vrot.slane %v4012, 4
      %v4015 = vrot.slane %v3247, 5
      %v4016 = vsel %vm1134, %v4014, %v4015
      %v4017 = vrot.slane %v3917, 5
      %v4018 = vrot.slane %v4017, 4
      %v4019 = vrot.slane %v3249, 5
      %v4020 = vsel %vm1134, %v4018, %v4019
      %v4021 = vrot.slane %v4019, 4
      %v4022 = vrot.slane %v3250, 5
      %v4023 = vsel %vm1134, %v4021, %v4022
      %v4024 = vrot.slane %v3918, 5
      %v4025 = vrot.slane %v4024, 4
      %v4026 = vrot.slane %v3252, 5
      %v4027 = vsel %vm1134, %v4025, %v4026
      %v4028 = vrot.slane %v4026, 4
      %v4029 = vrot.slane %v3253, 5
      %v4030 = vsel %vm1134, %v4028, %v4029
      %v4031 = vrot.slane %v3919, 5
      %v4032 = vrot.slane %v4031, 4
      %v4033 = vrot.slane %v3255, 5
      %v4034 = vsel %vm1134, %v4032, %v4033
      %v4035 = vrot.slane %v4033, 4
      %v4036 = vrot.slane %v3256, 5
      %v4037 = vsel %vm1134, %v4035, %v4036
      %v4038 = vrot.slane %v3920, 5
      %v4039 = vrot.slane %v4038, 4
      %v4040 = vrot.slane %v3258, 5
      %v4041 = vsel %vm1134, %v4039, %v4040
      %v4042 = vrot.slane %v4040, 4
      %v4043 = vrot.slane %v3259, 5
      %v4044 = vsel %vm1134, %v4042, %v4043
      %v4045 = vrot.slane %v3921, 5
      %v4046 = vrot.slane %v4045, 4
      %v4047 = vrot.slane %v3261, 5
      %v4048 = vsel %vm1134, %v4046, %v4047
      %v4049 = vrot.slane %v4047, 4
      %v4050 = vrot.slane %v3262, 5
      %v4051 = vsel %vm1134, %v4049, %v4050
      %v4052 = vrot.slane %v3922, 5
      %v4053 = vrot.slane %v4052, 4
      %v4054 = vrot.slane %v3264, 5
      %v4055 = vsel %vm1134, %v4053, %v4054
      %v4056 = vrot.slane %v4054, 4
      %v4057 = vrot.slane %v3265, 5
      %v4058 = vsel %vm1134, %v4056, %v4057
      %v4059 = vrot.slane %v3923, 5
      %v4060 = vrot.slane %v4059, 4
      %v4061 = vrot.slane %v3267, 5
      %v4062 = vsel %vm1134, %v4060, %v4061
      %v4063 = vrot.slane %v4061, 4
      %v4064 = vrot.slane %v3268, 5
      %v4065 = vsel %vm1134, %v4063, %v4064
      %v4066 = vrot.slane %v3924, 5
      %v4067 = vrot.slane %v4066, 4
      %v4068 = vrot.slane %v3270, 5
      %v4069 = vsel %vm1134, %v4067, %v4068
      %v4070 = vrot.slane %v4068, 4
      %v4071 = vrot.slane %v3271, 5
      %v4072 = vsel %vm1134, %v4070, %v4071
      %v4073 = vrot.slane %v3925, 5
      %v4074 = vrot.slane %v4073, 4
      %v4075 = vrot.slane %v3273, 5
      %v4076 = vsel %vm1134, %v4074, %v4075
      %v4077 = vrot.slane %v4075, 4
      %v4078 = vrot.slane %v3274, 5
      %v4079 = vsel %vm1134, %v4077, %v4078
      %v4080 = vrot.slane %v3926, 5
      %v4081 = vrot.slane %v4080, 4
      %v4082 = vrot.slane %v3276, 5
      %v4083 = vsel %vm1134, %v4081, %v4082
      %v4084 = vrot.slane %v4082, 4
      %v4085 = vrot.slane %v3277, 5
      %v4086 = vsel %vm1134, %v4084, %v4085
      %v4087 = vld [vmem:[%s1 + $0x200] sm:$0xf]
      %v4088 = vld [vmem:[%s1 + $0x204] sm:$0xf]
      %v4089 = vld [vmem:[%s1 + $0x208] sm:$0xf]
      %v4090 = vld [vmem:[%s1 + $0x20c] sm:$0xf]
      %v4091 = vld [vmem:[%s1 + $0x210] sm:$0xf]
      %v4092 = vld [vmem:[%s1 + $0x214] sm:$0xf]
      %v4093 = vld [vmem:[%s1 + $0x218] sm:$0xf]
      %v4094 = vld [vmem:[%s1 + $0x21c] sm:$0xf]
      %v4095 = vld [vmem:[%s1 + $0x220] sm:$0xf]
      %v4096 = vld [vmem:[%s1 + $0x224] sm:$0xf]
      %v4097 = vld [vmem:[%s1 + $0x228] sm:$0xf]
      %v4098 = vld [vmem:[%s1 + $0x22c] sm:$0xf]
      %v4099 = vld [vmem:[%s1 + $0x230] sm:$0xf]
      %v4100 = vld [vmem:[%s1 + $0x234] sm:$0xf]
      %v4101 = vld [vmem:[%s1 + $0x238] sm:$0xf]
      %v4102 = vld [vmem:[%s1 + $0x23c] sm:$0xf]
      %v4103 = vunpack.c.l.b16 %v3978
      %v4104 = vunpack.c.l.b16 %v3981
      %v4105 = vunpack.c.l.b16 %v3985
      %v4106 = vunpack.c.l.b16 %v3988
      %v4107 = vunpack.c.l.b16 %v3992
      %v4108 = vunpack.c.l.b16 %v3995
      %v4109 = vunpack.c.l.b16 %v3999
      %v4110 = vunpack.c.l.b16 %v4002
      %v4111 = vunpack.c.l.b16 %v4006
      %v4112 = vunpack.c.l.b16 %v4009
      %v4113 = vunpack.c.l.b16 %v4013
      %v4114 = vunpack.c.l.b16 %v4016
      %v4115 = vunpack.c.l.b16 %v4020
      %v4116 = vunpack.c.l.b16 %v4023
      %v4117 = vunpack.c.l.b16 %v4027
      %v4118 = vunpack.c.l.b16 %v4030
      %v4119 = vunpack.c.l.b16 %v4034
      %v4120 = vunpack.c.l.b16 %v4037
      %v4121 = vunpack.c.l.b16 %v4041
      %v4122 = vunpack.c.l.b16 %v4044
      %v4123 = vunpack.c.l.b16 %v4048
      %v4124 = vunpack.c.l.b16 %v4051
      %v4125 = vunpack.c.l.b16 %v4055
      %v4126 = vunpack.c.l.b16 %v4058
      %v4127 = vunpack.c.l.b16 %v4062
      %v4128 = vunpack.c.l.b16 %v4065
      %v4129 = vunpack.c.l.b16 %v4069
      %v4130 = vunpack.c.l.b16 %v4072
      %v4131 = vunpack.c.l.b16 %v4076
      %v4132 = vunpack.c.l.b16 %v4079
      %v4133 = vunpack.c.l.b16 %v4083
      %v4134 = vunpack.c.l.b16 %v4086
      %v4135 = vpack.c.b16 %v4104, %v4103
      %v4136 = vpack.c.b16 %v4106, %v4105
      %v4137 = vpack.c.b16 %v4108, %v4107
      %v4138 = vpack.c.b16 %v4110, %v4109
      %v4139 = vpack.c.b16 %v4112, %v4111
      %v4140 = vpack.c.b16 %v4114, %v4113
      %v4141 = vpack.c.b16 %v4116, %v4115
      %v4142 = vpack.c.b16 %v4118, %v4117
      %v4143 = vpack.c.b16 %v4120, %v4119
      %v4144 = vpack.c.b16 %v4122, %v4121
      %v4145 = vpack.c.b16 %v4124, %v4123
      %v4146 = vpack.c.b16 %v4126, %v4125
      %v4147 = vpack.c.b16 %v4128, %v4127
      %v4148 = vpack.c.b16 %v4130, %v4129
      %v4149 = vpack.c.b16 %v4132, %v4131
      %v4150 = vpack.c.b16 %v4134, %v4133
      %v4183 = vunpack.c.l.b16 %v4087
      %v4184 = vunpack.c.l.b16 %v4088
      %v4185 = vunpack.c.l.b16 %v4089
      %v4186 = vunpack.c.l.b16 %v4090
      %v4187 = vunpack.c.l.b16 %v4091
      %v4188 = vunpack.c.l.b16 %v4092
      %v4189 = vunpack.c.l.b16 %v4093
      %v4190 = vunpack.c.l.b16 %v4094
      %v4191 = vunpack.c.l.b16 %v4095
      %v4192 = vunpack.c.l.b16 %v4096
      %v4193 = vunpack.c.l.b16 %v4097
      %v4194 = vunpack.c.l.b16 %v4098
      %v4195 = vunpack.c.l.b16 %v4099
      %v4196 = vunpack.c.l.b16 %v4100
      %v4197 = vunpack.c.l.b16 %v4101
      %v4198 = vunpack.c.l.b16 %v4102
      %v4199 = vpack.c.b16 %v4184, %v4183
      %v4200 = vpack.c.b16 %v4186, %v4185
      %v4201 = vpack.c.b16 %v4188, %v4187
      %v4202 = vpack.c.b16 %v4190, %v4189
      %v4203 = vpack.c.b16 %v4192, %v4191
      %v4204 = vpack.c.b16 %v4194, %v4193
      %v4205 = vpack.c.b16 %v4196, %v4195
      %v4206 = vpack.c.b16 %v4198, %v4197
      %4215 = vmatpush.bf16.msra.mxu0 %v4206
      %4216 = vmatpush.bf16.msra.mxu0 %v4205
      %4217 = vmatpush.bf16.msra.mxu0 %v4204
      %4218 = vmatpush.bf16.msra.mxu0 %v4203
      %4219 = vmatpush.bf16.msra.mxu0 %v4202
      %4220 = vmatpush.bf16.msra.mxu0 %v4201
      %4221 = vmatpush.bf16.msra.mxu0 %v4200
      %4222 = vmatpush.bf16.msra.mxu0 %v4199
      %4223 = vmatmul.bf16.gmra.mxu0 %v4135
      %v4224 = vpop.f32.mrf.mxu0
      %v4225 = vadd.f32 0.0, %v4224
      %v4226 = vpop.f32.mrf.mxu0
      %v4227 = vadd.f32 0.0, %v4226
      %4228 = vmatmul.bf16.gmra.mxu0 %v4136
      %v4229 = vpop.f32.mrf.mxu0
      %v4230 = vadd.f32 0.0, %v4229
      %v4231 = vpop.f32.mrf.mxu0
      %v4232 = vadd.f32 0.0, %v4231
      %4233 = vmatmul.bf16.gmra.mxu0 %v4137
      %v4234 = vpop.f32.mrf.mxu0
      %v4235 = vadd.f32 0.0, %v4234
      %v4236 = vpop.f32.mrf.mxu0
      %v4237 = vadd.f32 0.0, %v4236
      %4238 = vmatmul.bf16.gmra.mxu0 %v4138
      %v4239 = vpop.f32.mrf.mxu0
      %v4240 = vadd.f32 0.0, %v4239
      %v4241 = vpop.f32.mrf.mxu0
      %v4242 = vadd.f32 0.0, %v4241
      %4243 = vmatmul.bf16.gmra.mxu0 %v4139
      %v4244 = vpop.f32.mrf.mxu0
      %v4245 = vadd.f32 0.0, %v4244
      %v4246 = vpop.f32.mrf.mxu0
      %v4247 = vadd.f32 0.0, %v4246
      %4248 = vmatmul.bf16.gmra.mxu0 %v4140
      %v4249 = vpop.f32.mrf.mxu0
      %v4250 = vadd.f32 0.0, %v4249
      %v4251 = vpop.f32.mrf.mxu0
      %v4252 = vadd.f32 0.0, %v4251
      %4253 = vmatmul.bf16.gmra.mxu0 %v4141
      %v4254 = vpop.f32.mrf.mxu0
      %v4255 = vadd.f32 0.0, %v4254
      %v4256 = vpop.f32.mrf.mxu0
      %v4257 = vadd.f32 0.0, %v4256
      %4258 = vmatmul.bf16.gmra.mxu0 %v4142
      %v4259 = vpop.f32.mrf.mxu0
      %v4260 = vadd.f32 0.0, %v4259
      %v4261 = vpop.f32.mrf.mxu0
      %v4262 = vadd.f32 0.0, %v4261
      %4263 = vmatmul.bf16.gmra.mxu0 %v4143
      %v4264 = vpop.f32.mrf.mxu0
      %v4265 = vadd.f32 0.0, %v4264
      %v4266 = vpop.f32.mrf.mxu0
      %v4267 = vadd.f32 0.0, %v4266
      %4268 = vmatmul.bf16.gmra.mxu0 %v4144
      %v4269 = vpop.f32.mrf.mxu0
      %v4270 = vadd.f32 0.0, %v4269
      %v4271 = vpop.f32.mrf.mxu0
      %v4272 = vadd.f32 0.0, %v4271
      %4273 = vmatmul.bf16.gmra.mxu0 %v4145
      %v4274 = vpop.f32.mrf.mxu0
      %v4275 = vadd.f32 0.0, %v4274
      %v4276 = vpop.f32.mrf.mxu0
      %v4277 = vadd.f32 0.0, %v4276
      %4278 = vmatmul.bf16.gmra.mxu0 %v4146
      %v4279 = vpop.f32.mrf.mxu0
      %v4280 = vadd.f32 0.0, %v4279
      %v4281 = vpop.f32.mrf.mxu0
      %v4282 = vadd.f32 0.0, %v4281
      %4283 = vmatmul.bf16.gmra.mxu0 %v4147
      %v4284 = vpop.f32.mrf.mxu0
      %v4285 = vadd.f32 0.0, %v4284
      %v4286 = vpop.f32.mrf.mxu0
      %v4287 = vadd.f32 0.0, %v4286
      %4288 = vmatmul.bf16.gmra.mxu0 %v4148
      %v4289 = vpop.f32.mrf.mxu0
      %v4290 = vadd.f32 0.0, %v4289
      %v4291 = vpop.f32.mrf.mxu0
      %v4292 = vadd.f32 0.0, %v4291
      %4293 = vmatmul.bf16.gmra.mxu0 %v4149
      %v4294 = vpop.f32.mrf.mxu0
      %v4295 = vadd.f32 0.0, %v4294
      %v4296 = vpop.f32.mrf.mxu0
      %v4297 = vadd.f32 0.0, %v4296
      %4298 = vmatmul.bf16.gmra.mxu0 %v4150
      %v4299 = vpop.f32.mrf.mxu0
      %v4300 = vadd.f32 0.0, %v4299
      %v4301 = vpop.f32.mrf.mxu0
      %v4302 = vadd.f32 0.0, %v4301
      %4303 = vdwg.mxu0
      %v4304 = vadd.f32 %v3879, %v4225
      %v4305 = vadd.f32 %v3880, %v4227
      %v4306 = vadd.f32 %v3881, %v4230
      %v4307 = vadd.f32 %v3882, %v4232
      %v4308 = vadd.f32 %v3883, %v4235
      %v4309 = vadd.f32 %v3884, %v4237
      %v4310 = vadd.f32 %v3885, %v4240
      %v4311 = vadd.f32 %v3886, %v4242
      %v4312 = vadd.f32 %v3887, %v4245
      %v4313 = vadd.f32 %v3888, %v4247
      %v4314 = vadd.f32 %v3889, %v4250
      %v4315 = vadd.f32 %v3890, %v4252
      %v4316 = vadd.f32 %v3891, %v4255
      %v4317 = vadd.f32 %v3892, %v4257
      %v4318 = vadd.f32 %v3893, %v4260
      %v4319 = vadd.f32 %v3894, %v4262
      %v4320 = vadd.f32 %v3895, %v4265
      %v4321 = vadd.f32 %v3896, %v4267
      %v4322 = vadd.f32 %v3897, %v4270
      %v4323 = vadd.f32 %v3898, %v4272
      %v4324 = vadd.f32 %v3899, %v4275
      %v4325 = vadd.f32 %v3900, %v4277
      %v4326 = vadd.f32 %v3901, %v4280
      %v4327 = vadd.f32 %v3902, %v4282
      %v4328 = vadd.f32 %v3903, %v4285
      %v4329 = vadd.f32 %v3904, %v4287
      %v4330 = vadd.f32 %v3905, %v4290
      %v4331 = vadd.f32 %v3906, %v4292
      %v4332 = vadd.f32 %v3907, %v4295
      %v4333 = vadd.f32 %v3908, %v4297
      %v4334 = vadd.f32 %v3909, %v4300
      %v4335 = vadd.f32 %v3910, %v4302
      %v4336 = vpack.c.bf16 %v4304, %v4304
      %v4337 = vpack.c.bf16 %v4305, %v4305
      %v4338 = vpack.c.bf16 %v4306, %v4306
      %v4339 = vpack.c.bf16 %v4307, %v4307
      %v4340 = vpack.c.bf16 %v4308, %v4308
      %v4341 = vpack.c.bf16 %v4309, %v4309
      %v4342 = vpack.c.bf16 %v4310, %v4310
      %v4343 = vpack.c.bf16 %v4311, %v4311
      %v4344 = vpack.c.bf16 %v4312, %v4312
      %v4345 = vpack.c.bf16 %v4313, %v4313
      %v4346 = vpack.c.bf16 %v4314, %v4314
      %v4347 = vpack.c.bf16 %v4315, %v4315
      %v4348 = vpack.c.bf16 %v4316, %v4316
      %v4349 = vpack.c.bf16 %v4317, %v4317
      %v4350 = vpack.c.bf16 %v4318, %v4318
      %v4351 = vpack.c.bf16 %v4319, %v4319
      %v4352 = vpack.c.bf16 %v4320, %v4320
      %v4353 = vpack.c.bf16 %v4321, %v4321
      %v4354 = vpack.c.bf16 %v4322, %v4322
      %v4355 = vpack.c.bf16 %v4323, %v4323
      %v4356 = vpack.c.bf16 %v4324, %v4324
      %v4357 = vpack.c.bf16 %v4325, %v4325
      %v4358 = vpack.c.bf16 %v4326, %v4326
      %v4359 = vpack.c.bf16 %v4327, %v4327
      %v4360 = vpack.c.bf16 %v4328, %v4328
      %v4361 = vpack.c.bf16 %v4329, %v4329
      %v4362 = vpack.c.bf16 %v4330, %v4330
      %v4363 = vpack.c.bf16 %v4331, %v4331
      %v4364 = vpack.c.bf16 %v4332, %v4332
      %v4365 = vpack.c.bf16 %v4333, %v4333
      %v4366 = vpack.c.bf16 %v4334, %v4334
      %v4367 = vpack.c.bf16 %v4335, %v4335
      %4368 = vst [vmem:[%s177] sm:$0xf] %v4336
      %4369 = vst [vmem:[%s177 + $0x4] sm:$0xf] %v4337
      %4370 = vst [vmem:[%s177 + $0x8] sm:$0xf] %v4338
      %4371 = vst [vmem:[%s177 + $0xc] sm:$0xf] %v4339
      %4372 = vst [vmem:[%s177 + $0x10] sm:$0xf] %v4340
      %4373 = vst [vmem:[%s177 + $0x14] sm:$0xf] %v4341
      %4374 = vst [vmem:[%s177 + $0x18] sm:$0xf] %v4342
      %4375 = vst [vmem:[%s177 + $0x1c] sm:$0xf] %v4343
      %4376 = vst [vmem:[%s177 + $0x20] sm:$0xf] %v4344
      %4377 = vst [vmem:[%s177 + $0x24] sm:$0xf] %v4345
      %4378 = vst [vmem:[%s177 + $0x28] sm:$0xf] %v4346
      %4379 = vst [vmem:[%s177 + $0x2c] sm:$0xf] %v4347
      %4380 = vst [vmem:[%s177 + $0x30] sm:$0xf] %v4348
      %4381 = vst [vmem:[%s177 + $0x34] sm:$0xf] %v4349
      %4382 = vst [vmem:[%s177 + $0x38] sm:$0xf] %v4350
      %4383 = vst [vmem:[%s177 + $0x3c] sm:$0xf] %v4351
      %4384 = vst [vmem:[%s177 + $0x40] sm:$0xf] %v4352
      %4385 = vst [vmem:[%s177 + $0x44] sm:$0xf] %v4353
      %4386 = vst [vmem:[%s177 + $0x48] sm:$0xf] %v4354
      %4387 = vst [vmem:[%s177 + $0x4c] sm:$0xf] %v4355
      %4388 = vst [vmem:[%s177 + $0x50] sm:$0xf] %v4356
      %4389 = vst [vmem:[%s177 + $0x54] sm:$0xf] %v4357
      %4390 = vst [vmem:[%s177 + $0x58] sm:$0xf] %v4358
      %4391 = vst [vmem:[%s177 + $0x5c] sm:$0xf] %v4359
      %4392 = vst [vmem:[%s177 + $0x60] sm:$0xf] %v4360
      %4393 = vst [vmem:[%s177 + $0x64] sm:$0xf] %v4361
      %4394 = vst [vmem:[%s177 + $0x68] sm:$0xf] %v4362
      %4395 = vst [vmem:[%s177 + $0x6c] sm:$0xf] %v4363
      %4396 = vst [vmem:[%s177 + $0x70] sm:$0xf] %v4364
      %4397 = vst [vmem:[%s177 + $0x74] sm:$0xf] %v4365
      %4398 = vst [vmem:[%s177 + $0x78] sm:$0xf] %v4366
      %4399 = vst [vmem:[%s177 + $0x7c] sm:$0xf] %v4367
      %v4400 = vadd.f32 %v4304, %v4305
      %v4401 = vadd.f32 %v4400, %v4306
      %v4402 = vadd.f32 %v4401, %v4307
      %v4403 = vadd.f32 %v4402, %v4308
      %v4404 = vadd.f32 %v4403, %v4309
      %v4405 = vadd.f32 %v4404, %v4310
      %v4406 = vadd.f32 %v4405, %v4311
      %v4407 = vadd.f32 %v4406, %v4312
      %v4408 = vadd.f32 %v4407, %v4313
      %v4409 = vadd.f32 %v4408, %v4314
      %v4410 = vadd.f32 %v4409, %v4315
      %v4411 = vadd.f32 %v4410, %v4316
      %v4412 = vadd.f32 %v4411, %v4317
      %v4413 = vadd.f32 %v4412, %v4318
      %v4414 = vadd.f32 %v4413, %v4319
      %v4415 = vadd.f32 %v4414, %v4320
      %v4416 = vadd.f32 %v4415, %v4321
      %v4417 = vadd.f32 %v4416, %v4322
      %v4418 = vadd.f32 %v4417, %v4323
      %v4419 = vadd.f32 %v4418, %v4324
      %v4420 = vadd.f32 %v4419, %v4325
      %v4421 = vadd.f32 %v4420, %v4326
      %v4422 = vadd.f32 %v4421, %v4327
      %v4423 = vadd.f32 %v4422, %v4328
      %v4424 = vadd.f32 %v4423, %v4329
      %v4425 = vadd.f32 %v4424, %v4330
      %v4426 = vadd.f32 %v4425, %v4331
      %v4427 = vadd.f32 %v4426, %v4332
      %v4428 = vadd.f32 %v4427, %v4333
      %v4429 = vadd.f32 %v4428, %v4334
      %v4430 = vadd.f32 %v4429, %v4335
      %v4431 = vrot.slane %v4430, 4
      %v4432 = vadd.f32 %v4430, %v4431
      %v4433 = vrot.slane %v4432, 2
      %v4434 = vadd.f32 %v4432, %v4433
      %v4435 = vrot.slane %v4434, 1
      %v4436 = vadd.f32 %v4434, %v4435
      %v4437 = vmul.f32 %v4304, %v4304
      %v4438 = vmul.f32 %v4305, %v4305
      %v4439 = vmul.f32 %v4306, %v4306
      %v4440 = vmul.f32 %v4307, %v4307
      %v4441 = vmul.f32 %v4308, %v4308
      %v4442 = vmul.f32 %v4309, %v4309
      %v4443 = vmul.f32 %v4310, %v4310
      %v4444 = vmul.f32 %v4311, %v4311
      %v4445 = vmul.f32 %v4312, %v4312
      %v4446 = vmul.f32 %v4313, %v4313
      %v4447 = vmul.f32 %v4314, %v4314
      %v4448 = vmul.f32 %v4315, %v4315
      %v4449 = vmul.f32 %v4316, %v4316
      %v4450 = vmul.f32 %v4317, %v4317
      %v4451 = vmul.f32 %v4318, %v4318
      %v4452 = vmul.f32 %v4319, %v4319
      %v4453 = vmul.f32 %v4320, %v4320
      %v4454 = vmul.f32 %v4321, %v4321
      %v4455 = vmul.f32 %v4322, %v4322
      %v4456 = vmul.f32 %v4323, %v4323
      %v4457 = vmul.f32 %v4324, %v4324
      %v4458 = vmul.f32 %v4325, %v4325
      %v4459 = vmul.f32 %v4326, %v4326
      %v4460 = vmul.f32 %v4327, %v4327
      %v4461 = vmul.f32 %v4328, %v4328
      %v4462 = vmul.f32 %v4329, %v4329
      %v4463 = vmul.f32 %v4330, %v4330
      %v4464 = vmul.f32 %v4331, %v4331
      %v4465 = vmul.f32 %v4332, %v4332
      %v4466 = vmul.f32 %v4333, %v4333
      %v4467 = vmul.f32 %v4334, %v4334
      %v4468 = vmul.f32 %v4335, %v4335
      %v4469 = vadd.f32 %v4437, %v4438
      %v4470 = vadd.f32 %v4469, %v4439
      %v4471 = vadd.f32 %v4470, %v4440
      %v4472 = vadd.f32 %v4471, %v4441
      %v4473 = vadd.f32 %v4472, %v4442
      %v4474 = vadd.f32 %v4473, %v4443
      %v4475 = vadd.f32 %v4474, %v4444
      %v4476 = vadd.f32 %v4475, %v4445
      %v4477 = vadd.f32 %v4476, %v4446
      %v4478 = vadd.f32 %v4477, %v4447
      %v4479 = vadd.f32 %v4478, %v4448
      %v4480 = vadd.f32 %v4479, %v4449
      %v4481 = vadd.f32 %v4480, %v4450
      %v4482 = vadd.f32 %v4481, %v4451
      %v4483 = vadd.f32 %v4482, %v4452
      %v4484 = vadd.f32 %v4483, %v4453
      %v4485 = vadd.f32 %v4484, %v4454
      %v4486 = vadd.f32 %v4485, %v4455
      %v4487 = vadd.f32 %v4486, %v4456
      %v4488 = vadd.f32 %v4487, %v4457
      %v4489 = vadd.f32 %v4488, %v4458
      %v4490 = vadd.f32 %v4489, %v4459
      %v4491 = vadd.f32 %v4490, %v4460
      %v4492 = vadd.f32 %v4491, %v4461
      %v4493 = vadd.f32 %v4492, %v4462
      %v4494 = vadd.f32 %v4493, %v4463
      %v4495 = vadd.f32 %v4494, %v4464
      %v4496 = vadd.f32 %v4495, %v4465
      %v4497 = vadd.f32 %v4496, %v4466
      %v4498 = vadd.f32 %v4497, %v4467
      %v4499 = vadd.f32 %v4498, %v4468
      %v4500 = vrot.slane %v4499, 4
      %v4501 = vadd.f32 %v4499, %v4500
      %v4502 = vrot.slane %v4501, 2
      %v4503 = vadd.f32 %v4501, %v4502
      %v4504 = vrot.slane %v4503, 1
      %v4505 = vadd.f32 %v4503, %v4504
      %v4506 = vlaneseq
      %v4507 = vshrl.u32 %v4506, 7
      %vm4508 = vcmp.eq.s32.totalorder %v4507, 0
      %vm4509 = vcmp.eq.s32.totalorder %v4507, 1
      %v4510 = vsel %vm4509, %v4505, 0.0
      %v4511 = vsel %vm4508, %v4436, %v4510
      %4512 = vst [vmem:[%s182] sm:$0xff] %v4511
      %s4513 = smul.u32 32, %s15
      %p4514 = scmp.lt.s32.totalorder %s4513, 63
      %s4515 = scalar_select %p4514, %s4513, 63
      %s4516 = smul.addr %s4515, 4
      %s4517 = scalar_lea.vmem %s2, %s4516
      %p4518 = scmp.lt.s32.totalorder %s15, 1
      %s4519 = scalar_select %p4518, %s15, 1
      %s4520 = smul.addr %s4519, 8
      %s4521 = scalar_lea.vmem %s3, %s4520
      // Predicated region
      $region29: #{basic_block_forward.5} parent=27 // pred_check
        %p4522 = pneg %p80
      $region30: #{basic_block_forward.5} parent=27 // pred_check_branch
        %4524 = sbr.rel (%p4522) target = $region32
      $region31: #{basic_block_forward.5} parent=27 // pred_region
        %s4525 = smul.u32 32, %s15
      $region32: #{basic_block_forward.5} parent=27 // pred_fallthru
        _
      // Predicated region
      $region33: #{basic_block_forward.5} parent=27 // pred_check
        %p4526 = pneg %p106
      $region34: #{basic_block_forward.5} parent=27 // pred_check_branch
        %4528 = sbr.rel (%p4526) target = $region36
      $region35: #{basic_block_forward.5} parent=27 // pred_region
        _
      $region36: #{basic_block_forward.5} parent=27 // pred_fallthru
        _
    $region28: #{basic_block_forward.5} parent=5 // pred_fallthru
      _
    %p4529 = scmp.le.s32.totalorder 2, %s10
    // Predicated region
    $region37: #{basic_block_forward.5} parent=5 // pred_check
      %p4530 = pneg %p4529
    $region38: #{basic_block_forward.5} parent=5 // pred_check_branch
      %4532 = sbr.rel (%p4530) target = $region40
    $region39: #{basic_block_forward.5} parent=5 // pred_region
      %s4533 = ssub.s32 %s10, 2
      // Predicated region
      $region41: #{basic_block_forward.5} parent=39 // pred_check
        %p4534 = pneg %p86
      $region42: #{basic_block_forward.5} parent=39 // pred_check_branch
        %4536 = sbr.rel (%p4534) target = $region44
      $region43: #{basic_block_forward.5} parent=39 // pred_region
        %s4537 = smul.u32 32, %s16
        %p4538 = scmp.lt.s32.totalorder %s4537, 63
        %s4539 = scalar_select %p4538, %s4537, 63
        %s4540 = smul.addr %s4539, 4
        %s4541 = scalar_lea.vmem %s2, %s4540
      $region44: #{basic_block_forward.5} parent=39 // pred_fallthru
        _
      // Predicated region
      $region45: #{basic_block_forward.5} parent=39 // pred_check
        %p4542 = pneg %p112
      $region46: #{basic_block_forward.5} parent=39 // pred_check_branch
        %4544 = sbr.rel (%p4542) target = $region48
      $region47: #{basic_block_forward.5} parent=39 // pred_region
        %p4545 = scmp.lt.s32.totalorder %s16, 1
        %s4546 = scalar_select %p4545, %s16, 1
        %s4547 = smul.addr %s4546, 8
        %s4548 = scalar_lea.vmem %s3, %s4547
      $region48: #{basic_block_forward.5} parent=39 // pred_fallthru
        _
    $region40: #{basic_block_forward.5} parent=5 // pred_fallthru
      _
  $region6: #{basic_block_forward.5} parent=0 // loop_footer
    %s14 = sadd.s32 1, %s10
  $region7: #{basic_block_forward.5} parent=0 // loop_footer_branch
    %9 = sbr.rel target = $region3
  $region8: #{basic_block_forward.5} parent=0 // loop_exit
    _

</llo_original>
